<compile_context>
chip_gen: v5e
topology: v5e:2x2
jax: 0.10.0
libtpu: 0.0.40
codegen_flags: <defaults>
</compile_context>

<pallas_src>
import jax
import jax.numpy as jnp
from jax import lax
from jax.experimental import pallas as pl
from jax.experimental.pallas import tpu as pltpu

BATCH_TILE = 8  # f32 sublane count


def _vmem_limit_bytes():
    try:
        cap = pltpu.get_tpu_info().vmem_capacity_bytes
        return int(cap * 0.85)          # ~54 MiB v7x, ~109 MiB v5e/v6e
    except Exception:                    # pragma: no cover - conservative fallback
        return 56 * 1024 * 1024


def _attention_kernel(
    x_ref, last_x_ref, state_ref,                # (Tc,BT,Dp) (1,BT,Dp) (3,BT,Dp)
    wk_ref, wv_ref, wr_ref, wo_ref,              # (Dp,Dp) bf16, (in,out)
    td_ref, tf_ref, mk_ref, mv_ref, mr_ref,      # (1,Dp) f32 time params
    out_ref, next_x_ref, next_state_ref,         # (Tc,BT,Dp) (1,BT,Dp) (3,BT,Dp)
    carry_ref,                                   # VMEM (4,BT,Dp) f32 persistent carry
    k_sc, v_sc,                                  # VMEM (Tc,BT,Dp) f32
    wkv_sc,                                      # VMEM (Tc,BT,Dp) bf16
):
    Tc, BT, D = x_ref.shape
    TB = Tc * BT
    f32 = jnp.float32
    bf16 = jnp.bfloat16
    t_idx = pl.program_id(1)

    # (Re)initialise the recurrence carry on the first T-chunk of each batch tile.
    @pl.when(t_idx == 0)
    def _():
        carry_ref[0] = state_ref[0]      # alpha
        carry_ref[1] = state_ref[1]      # beta
        carry_ref[2] = state_ref[2]      # eps
        carry_ref[3] = last_x_ref[0]     # carried x[-1] for the time shift

    x = x_ref[...]                                        # (Tc, BT, D), time-major
    prev = carry_ref[3][None]                             # (1, BT, D)
    shifted = jnp.concatenate([prev, x[: Tc - 1]], axis=0) if Tc > 1 else prev

    xf = x.reshape(TB, D)
    sf = shifted.reshape(TB, D)
    dx = xf - sf                                          # shared by the 3 mixes
    xk = sf + dx * mk_ref[...]
    xv = sf + dx * mv_ref[...]
    xr = sf + dx * mr_ref[...]

    # K / V / R projections on the MXU: bf16 operands, f32 accumulation.
    k = jnp.dot(xk.astype(bf16), wk_ref[...], preferred_element_type=f32)
    v = jnp.dot(xv.astype(bf16), wv_ref[...], preferred_element_type=f32)
    r = jnp.dot(xr.astype(bf16), wr_ref[...], preferred_element_type=f32)

    k_sc[...] = k.reshape(Tc, BT, D)
    v_sc[...] = v.reshape(Tc, BT, D)
    # wkv_sc starts as sigmoid(r); the loop gates wkv in place (bf16), so no
    # separate sr buffer and no post-loop elementwise pass are needed.
    wkv_sc[...] = (1.0 / (1.0 + jnp.exp(-r))).reshape(Tc, BT, D).astype(bf16)

    # Hoisted broadcasts (broadcast_in_dim is not CSE'd inside the loop).
    u = jnp.broadcast_to(tf_ref[...], (BT, D))            # time_first
    w = jnp.broadcast_to(jnp.exp(td_ref[...]), (BT, D))   # exp(time_decay)

    # Sequential, numerically stabilised WKV recurrence ("wkv_with_eps"),
    # batched over BT sublanes.  Exp-halving: for each stabilised pair one
    # exponent is exactly 0, so a single exp(-|diff|) + selects suffices.
    def body(t, carry):
        alpha, beta, eps = carry                          # (BT, D) each
        kt = k_sc[t]
        vt = v_sc[t]
        ukt = kt + u

        d = ukt - eps
        e = jnp.exp(-jnp.abs(d))
        ge = d >= 0.0
        e1 = jnp.where(ge, e, 1.0)                        # exp(eps - max(ukt, eps))
        e2 = jnp.where(ge, 1.0, e)                        # exp(ukt - max(ukt, eps))
        wkv = (e1 * alpha + e2 * vt) * pl.reciprocal(e1 * beta + e2, approx=True)
        wkv_sc[t] = (wkv * wkv_sc[t].astype(f32)).astype(bf16)   # gate by sigmoid(r)

        w_eps = eps - w
        d2 = kt - w_eps
        en = jnp.exp(-jnp.abs(d2))
        gn = d2 >= 0.0
        e1n = jnp.where(gn, en, 1.0)                      # exp(w_eps - max(w_eps, kt))
        e2n = jnp.where(gn, 1.0, en)                      # exp(kt  - max(w_eps, kt))
        return (e1n * alpha + e2n * vt,
                e1n * beta + e2n,
                jnp.maximum(w_eps, kt))

    # Unroll for scheduler visibility, capped so unroll x live-vregs stays small.
    # TODO(synk): for Dp >= ~1024 chunk the recurrence over D (<=512 lanes per
    # pass) so the alpha/beta/eps carry stays resident in the 64-vreg file.
    budget = max(1, 8 // (D // 128))
    unroll = max(f for f in (1, 2, 4, 8) if Tc % f == 0 and f <= budget)
    alpha, beta, eps = lax.fori_loop(
        0, Tc, body, (carry_ref[0], carry_ref[1], carry_ref[2]), unroll=unroll)

    # Output projection straight from the gated bf16 wkv buffer.
    # TODO(synk): software-pipeline chunk i+1's K/V/R projections against chunk
    # i's recurrence so the MXU and EUP phases overlap instead of alternating.
    out = jnp.dot(wkv_sc[...].reshape(TB, D), wo_ref[...], preferred_element_type=f32)
    out_ref[...] = out.reshape(Tc, BT, D).astype(out_ref.dtype)

    # Persist the recurrence carry for the next T-chunk of this batch tile.
    carry_ref[0] = alpha
    carry_ref[1] = beta
    carry_ref[2] = eps
    carry_ref[3] = x[Tc - 1]

    @pl.when(t_idx == pl.num_programs(1) - 1)
    def _():
        next_x_ref[0] = x[Tc - 1]
        next_state_ref[0] = alpha
        next_state_ref[1] = beta
        next_state_ref[2] = eps


def _round_up(n, m):
    return ((n + m - 1) // m) * m


def rwkv_attention(x, last_x, state, params, *, batch_tile=BATCH_TILE, t_chunk=None):
    """x: (B,T,D), last_x: (B,1,D), state: (B,3,D) -> (out, next_x, next_state)."""
    B, T, D = x.shape
    f32 = jnp.float32
    bf16 = jnp.bfloat16

    Dp = _round_up(D, 128)            # lane-dense feature dim
    Bp = _round_up(B, batch_tile)     # sublane-dense batch tiles
    dB, dD = Bp - B, Dp - D

    # T-chunk: largest divisor of T not exceeding the requested cap.
    cap = 128 if t_chunk is None else t_chunk
    Tc = max(c for c in range(1, min(cap, T) + 1) if T % c == 0)

    def pad_w(wm):                    # (D,D) -> (Dp,Dp) bf16 MXU operand
        return jnp.pad(wm.astype(f32), ((0, dD), (0, dD))).astype(bf16)

    def pad_row(p):                   # (...,D) -> (1,Dp) f32
        return jnp.pad(p.astype(f32).reshape(1, D), ((0, 0), (0, dD)))

    wk = pad_w(params["wk"])
    wv = pad_w(params["wv"])
    wr = pad_w(params["wr"])
    wo = pad_w(params["wo"])
    td = pad_row(params["time_decay"])
    tf = pad_row(params["time_first"])
    mk = pad_row(params["time_mix_k"])
    mv = pad_row(params["time_mix_v"])
    mr = pad_row(params["time_mix_r"])

    # Time-major / component-major layout so every per-timestep slice in the
    # kernel is a dense (batch_tile, Dp) sublane x lane tile.
    # TODO(synk): optionally move x/out to bf16 at the pallas_call boundary to
    # halve the activation HBM traffic (in-kernel math stays f32).
    xt = jnp.transpose(jnp.pad(x.astype(f32), ((0, dB), (0, 0), (0, dD))), (1, 0, 2))
    lx = jnp.transpose(jnp.pad(last_x.astype(f32), ((0, dB), (0, 0), (0, dD))), (1, 0, 2))
    st = jnp.transpose(jnp.pad(state.astype(f32), ((0, dB), (0, 0), (0, dD))), (1, 0, 2))

    grid = (Bp // batch_tile, T // Tc)

    def build(single_buffer_weights):
        def const_spec(shape):
            idx = lambda b, t: (0,) * len(shape)
            if single_buffer_weights:
                try:
                    # Grid-invariant: one buffer is enough (no pipelining lost).
                    return pl.BlockSpec(shape, idx, pipeline_mode=pl.Buffered(1))
                except (TypeError, ValueError):
                    pass
            return pl.BlockSpec(shape, idx)

        # TODO(synk): for D >= ~2048 also column-tile the (Dp,Dp) weights via an
        # extra grid axis / manual streaming so they never need to be resident.
        grid_spec = pltpu.PrefetchScalarGridSpec(
            num_scalar_prefetch=0,
            grid=grid,
            in_specs=[
                pl.BlockSpec((Tc, batch_tile, Dp), lambda b, t: (t, b, 0)),   # x
                pl.BlockSpec((1, batch_tile, Dp), lambda b, t: (0, b, 0)),    # last_x
                pl.BlockSpec((3, batch_tile, Dp), lambda b, t: (0, b, 0)),    # state
                const_spec((Dp, Dp)), const_spec((Dp, Dp)),                   # wk, wv
                const_spec((Dp, Dp)), const_spec((Dp, Dp)),                   # wr, wo
                const_spec((1, Dp)), const_spec((1, Dp)), const_spec((1, Dp)),
                const_spec((1, Dp)), const_spec((1, Dp)),
            ],
            out_specs=[
                pl.BlockSpec((Tc, batch_tile, Dp), lambda b, t: (t, b, 0)),   # out
                pl.BlockSpec((1, batch_tile, Dp), lambda b, t: (0, b, 0)),    # next_x
                pl.BlockSpec((3, batch_tile, Dp), lambda b, t: (0, b, 0)),    # next_state
            ],
            scratch_shapes=[
                pltpu.VMEM((4, batch_tile, Dp), f32),     # alpha/beta/eps + x carry
                pltpu.VMEM((Tc, batch_tile, Dp), f32),    # k
                pltpu.VMEM((Tc, batch_tile, Dp), f32),    # v
                pltpu.VMEM((Tc, batch_tile, Dp), bf16),   # sigmoid(r) -> gated wkv
            ],
        )
        return pl.pallas_call(
            _attention_kernel,
            out_shape=(
                jax.ShapeDtypeStruct((T, Bp, Dp), f32),
                jax.ShapeDtypeStruct((1, Bp, Dp), f32),
                jax.ShapeDtypeStruct((3, Bp, Dp), f32),
            ),
            grid_spec=grid_spec,
            compiler_params=pltpu.CompilerParams(
                dimension_semantics=("parallel", "arbitrary"),
                vmem_limit_bytes=_vmem_limit_bytes(),
            ),
        )

    args = (xt, lx, st, wk, wv, wr, wo, td, tf, mk, mv, mr)
    try:
        out_t, nx_t, ns_t = build(True)(*args)
    except Exception:
        # Fall back if single-buffered pipeline_mode is unsupported in this jax.
        out_t, nx_t, ns_t = build(False)(*args)

    # TODO(synk): for B <= batch_tile on v7x add a second parallel split (e.g.
    # over the WO output columns) so the second TensorCore is not idle.
    out = jnp.transpose(out_t, (1, 0, 2))[:B, :, :D]
    next_x = jnp.transpose(nx_t, (1, 0, 2))[:B, :, :D]
    next_state = jnp.transpose(ns_t, (1, 0, 2))[:B, :, :D]
    return out, next_x, next_state


def rwkv_attention_ref(x, last_x, state, params):
    """Pure-JAX f32 reference of the PyTorch forward (for verification)."""
    B, T, D = x.shape
    shifted = jnp.concatenate([last_x, x[:, : T - 1, :]], axis=1)
    mk = params["time_mix_k"][None]        # (1,1,D)
    mv = params["time_mix_v"][None]
    mr = params["time_mix_r"][None]
    k = (x * mk + shifted * (1 - mk)) @ params["wk"]
    v = (x * mv + shifted * (1 - mv)) @ params["wv"]
    r = (x * mr + shifted * (1 - mr)) @ params["wr"]
    sr = jax.nn.sigmoid(r)
    w = jnp.exp(params["time_decay"][0])   # (D,)
    u = params["time_first"][0]            # (D,)
    alpha, beta, eps = state[:, 0], state[:, 1], state[:, 2]
    wkvs = []
    for t in range(T):
        kt, vt = k[:, t], v[:, t]
        ukt = u + kt
        tau = jnp.maximum(ukt, eps)
        e1, e2 = jnp.exp(eps - tau), jnp.exp(ukt - tau)
        wkvs.append((e1 * alpha + e2 * vt) / (e1 * beta + e2))
        w_eps = eps - w
        eps = jnp.maximum(w_eps, kt)
        e1, e2 = jnp.exp(w_eps - eps), jnp.exp(kt - eps)
        alpha = e1 * alpha + e2 * vt
        beta = e1 * beta + e2
    wkv = jnp.stack(wkvs, axis=1)
    out = (wkv * sr) @ params["wo"]
    return out, x[:, -1:, :], jnp.stack([alpha, beta, eps], axis=1)


def _make_params(key, D):
    # Deterministic synthetic parameters (shapes from Attention.__init__).
    # TODO(synk): LoRA wrapping (maybe_lora) and dropout are omitted -- this is
    # the lora_rank=None inference path with plain bias-free Linear layers.
    ks = jax.random.split(key, 9)
    return {
        # nn.Linear(dim, dim, bias=False) weights, pre-transposed to (in, out).
        "wk": jax.random.normal(ks[0], (D, D), jnp.float32) * 0.1,
        "wv": jax.random.normal(ks[1], (D, D), jnp.float32) * 0.1,
        "wr": jax.random.normal(ks[2], (D, D), jnp.float32) * 0.1,
        "wo": jax.random.normal(ks[3], (D, D), jnp.float32) * 0.1,
        "time_decay": jax.random.normal(ks[4], (1, D), jnp.float32) * 0.5,
        "time_first": jax.random.normal(ks[5], (1, D), jnp.float32) * 0.5,
        "time_mix_k": jax.random.uniform(ks[6], (1, D), jnp.float32),
        "time_mix_v": jax.random.uniform(ks[7], (1, D), jnp.float32),
        "time_mix_r": jax.random.uniform(ks[8], (1, D), jnp.float32),
    }


def _run_case(key, B, T, D, atol, rtol, t_chunk=None):
    kp, kx = jax.random.split(key)
    params = _make_params(kp, D)
    x = jax.random.normal(kx, (B, T, D), jnp.float32)
    # state=None path: init_x = zeros, init_state = zeros, repeated over batch.
    last_x = jnp.zeros((B, 1, D), jnp.float32)
    state = jnp.zeros((B, 3, D), jnp.float32)

    out, next_x, next_state = rwkv_attention(x, last_x, state, params,
                                             t_chunk=t_chunk)
    jax.block_until_ready((out, next_x, next_state))

    ref_out, ref_next_x, ref_next_state = rwkv_attention_ref(
        x, last_x, state, params)
    # Tolerances account for bf16 MXU operands, bf16 sigmoid/wkv gating and the
    # approx EUP reciprocal used for the WKV divide.
    assert jnp.allclose(out, ref_out, rtol=rtol, atol=atol), "out mismatch"
    assert jnp.allclose(next_x, ref_next_x, rtol=rtol, atol=atol), "next_x mismatch"
    assert jnp.allclose(next_state, ref_next_state, rtol=rtol, atol=atol), \
        "next_state mismatch"


if __name__ == "__main__":
    key = jax.random.PRNGKey(0)
    k1, k2 = jax.random.split(key)
    # Lane/sublane-dense case; t_chunk=8 forces two T-chunks -> exercises the
    # cross-chunk alpha/beta/eps + time-shift carry and the 2-wide batch grid.
    _run_case(k1, B=16, T=16, D=128, atol=2e-2, rtol=2e-2, t_chunk=8)
    # Small module-scale case exercising the internal B/D padding path.
    _run_case(k2, B=2, T=8, D=32, atol=2e-2, rtol=2e-2)
    print("KERNEL_OK")
</pallas_src>

<mosaic_0001>
module attributes {stable_mosaic.version = 11 : i64} {
  func.func @_attention_kernel(%arg0: i32, %arg1: i32, %arg2: memref<8x8x128xf32, #tpu.memory_space<vmem>>, %arg3: memref<1x8x128xf32, #tpu.memory_space<vmem>>, %arg4: memref<3x8x128xf32, #tpu.memory_space<vmem>>, %arg5: memref<128x128xbf16, #tpu.memory_space<vmem>>, %arg6: memref<128x128xbf16, #tpu.memory_space<vmem>>, %arg7: memref<128x128xbf16, #tpu.memory_space<vmem>>, %arg8: memref<128x128xbf16, #tpu.memory_space<vmem>>, %arg9: memref<1x128xf32, #tpu.memory_space<vmem>>, %arg10: memref<1x128xf32, #tpu.memory_space<vmem>>, %arg11: memref<1x128xf32, #tpu.memory_space<vmem>>, %arg12: memref<1x128xf32, #tpu.memory_space<vmem>>, %arg13: memref<1x128xf32, #tpu.memory_space<vmem>>, %arg14: memref<8x8x128xf32, #tpu.memory_space<vmem>>, %arg15: memref<1x8x128xf32, #tpu.memory_space<vmem>>, %arg16: memref<3x8x128xf32, #tpu.memory_space<vmem>>, %arg17: memref<4x8x128xf32, #tpu.memory_space<vmem>>, %arg18: memref<8x8x128xf32, #tpu.memory_space<vmem>>, %arg19: memref<8x8x128xf32, #tpu.memory_space<vmem>>, %arg20: memref<8x8x128xbf16, #tpu.memory_space<vmem>>) attributes {dimension_semantics = [#tpu.dimension_semantics<parallel>, #tpu.dimension_semantics<arbitrary>], iteration_bounds = array<i64: 2, 2>, scalar_prefetch = 0 : i64, scratch_operands = 4 : i64, tpu.core_type = #tpu.core_type<tc>, window_params = [{transform_indices = @transform_0, window_bounds = array<i64: 8, 8, 128>}, {transform_indices = @transform_1, window_bounds = array<i64: 1, 8, 128>}, {transform_indices = @transform_2, window_bounds = array<i64: 3, 8, 128>}, {pipeline_mode = #tpu.pipeline_mode<synchronous>, transform_indices = @transform_3, window_bounds = array<i64: 128, 128>}, {pipeline_mode = #tpu.pipeline_mode<synchronous>, transform_indices = @transform_4, window_bounds = array<i64: 128, 128>}, {pipeline_mode = #tpu.pipeline_mode<synchronous>, transform_indices = @transform_5, window_bounds = array<i64: 128, 128>}, {pipeline_mode = #tpu.pipeline_mode<synchronous>, transform_indices = @transform_6, window_bounds = array<i64: 128, 128>}, {pipeline_mode = #tpu.pipeline_mode<synchronous>, transform_indices = @transform_7, window_bounds = array<i64: 1, 128>}, {pipeline_mode = #tpu.pipeline_mode<synchronous>, transform_indices = @transform_8, window_bounds = array<i64: 1, 128>}, {pipeline_mode = #tpu.pipeline_mode<synchronous>, transform_indices = @transform_9, window_bounds = array<i64: 1, 128>}, {pipeline_mode = #tpu.pipeline_mode<synchronous>, transform_indices = @transform_10, window_bounds = array<i64: 1, 128>}, {pipeline_mode = #tpu.pipeline_mode<synchronous>, transform_indices = @transform_11, window_bounds = array<i64: 1, 128>}, {transform_indices = @transform_12, window_bounds = array<i64: 8, 8, 128>}, {transform_indices = @transform_13, window_bounds = array<i64: 1, 8, 128>}, {transform_indices = @transform_14, window_bounds = array<i64: 3, 8, 128>}]} {
    %c0_i32 = arith.constant 0 : i32
    %0 = arith.cmpi eq, %arg1, %c0_i32 : i32
    %1 = arith.extui %0 : i1 to i32
    %c0_i32_0 = arith.constant 0 : i32
    %2 = arith.cmpi ne, %1, %c0_i32_0 : i32
    scf.if %2 {
      %c0_194 = arith.constant 0 : index
      %c0_195 = arith.constant 0 : index
      %c0_196 = arith.constant 0 : index
      %507 = vector.load %arg4[%c0_194, %c0_195, %c0_196] : memref<3x8x128xf32, #tpu.memory_space<vmem>>, vector<1x8x128xf32>
      %508 = vector.shape_cast %507 : vector<1x8x128xf32> to vector<8x128xf32>
      %c0_197 = arith.constant 0 : index
      %c0_198 = arith.constant 0 : index
      %c0_199 = arith.constant 0 : index
      %509 = vector.load %arg17[%c0_197, %c0_198, %c0_199] : memref<4x8x128xf32, #tpu.memory_space<vmem>>, vector<1x8x128xf32>
      %510 = vector.shape_cast %509 : vector<1x8x128xf32> to vector<8x128xf32>
      %511 = vector.shape_cast %508 : vector<8x128xf32> to vector<1x8x128xf32>
      tpu.vector_store %arg17[%c0_197, %c0_198, %c0_199], %511 {strides = array<i32>} : memref<4x8x128xf32, #tpu.memory_space<vmem>>, vector<1x8x128xf32>,
      %c1_200 = arith.constant 1 : index
      %c0_201 = arith.constant 0 : index
      %c0_202 = arith.constant 0 : index
      %512 = vector.load %arg4[%c1_200, %c0_201, %c0_202] : memref<3x8x128xf32, #tpu.memory_space<vmem>>, vector<1x8x128xf32>
      %513 = vector.shape_cast %512 : vector<1x8x128xf32> to vector<8x128xf32>
      %c1_203 = arith.constant 1 : index
      %c0_204 = arith.constant 0 : index
      %c0_205 = arith.constant 0 : index
      %514 = vector.load %arg17[%c1_203, %c0_204, %c0_205] : memref<4x8x128xf32, #tpu.memory_space<vmem>>, vector<1x8x128xf32>
      %515 = vector.shape_cast %514 : vector<1x8x128xf32> to vector<8x128xf32>
      %516 = vector.shape_cast %513 : vector<8x128xf32> to vector<1x8x128xf32>
      tpu.vector_store %arg17[%c1_203, %c0_204, %c0_205], %516 {strides = array<i32>} : memref<4x8x128xf32, #tpu.memory_space<vmem>>, vector<1x8x128xf32>,
      %c2_206 = arith.constant 2 : index
      %c0_207 = arith.constant 0 : index
      %c0_208 = arith.constant 0 : index
      %517 = vector.load %arg4[%c2_206, %c0_207, %c0_208] : memref<3x8x128xf32, #tpu.memory_space<vmem>>, vector<1x8x128xf32>
      %518 = vector.shape_cast %517 : vector<1x8x128xf32> to vector<8x128xf32>
      %c2_209 = arith.constant 2 : index
      %c0_210 = arith.constant 0 : index
      %c0_211 = arith.constant 0 : index
      %519 = vector.load %arg17[%c2_209, %c0_210, %c0_211] : memref<4x8x128xf32, #tpu.memory_space<vmem>>, vector<1x8x128xf32>
      %520 = vector.shape_cast %519 : vector<1x8x128xf32> to vector<8x128xf32>
      %521 = vector.shape_cast %518 : vector<8x128xf32> to vector<1x8x128xf32>
      tpu.vector_store %arg17[%c2_209, %c0_210, %c0_211], %521 {strides = array<i32>} : memref<4x8x128xf32, #tpu.memory_space<vmem>>, vector<1x8x128xf32>,
      %c0_212 = arith.constant 0 : index
      %c0_213 = arith.constant 0 : index
      %c0_214 = arith.constant 0 : index
      %522 = vector.load %arg3[%c0_212, %c0_213, %c0_214] : memref<1x8x128xf32, #tpu.memory_space<vmem>>, vector<1x8x128xf32>
      %523 = vector.shape_cast %522 : vector<1x8x128xf32> to vector<8x128xf32>
      %c3_215 = arith.constant 3 : index
      %c0_216 = arith.constant 0 : index
      %c0_217 = arith.constant 0 : index
      %524 = vector.load %arg17[%c3_215, %c0_216, %c0_217] : memref<4x8x128xf32, #tpu.memory_space<vmem>>, vector<1x8x128xf32>
      %525 = vector.shape_cast %524 : vector<1x8x128xf32> to vector<8x128xf32>
      %526 = vector.shape_cast %523 : vector<8x128xf32> to vector<1x8x128xf32>
      tpu.vector_store %arg17[%c3_215, %c0_216, %c0_217], %526 {strides = array<i32>} : memref<4x8x128xf32, #tpu.memory_space<vmem>>, vector<1x8x128xf32>,
    } else {
    }
    %c0 = arith.constant 0 : index
    %c0_1 = arith.constant 0 : index
    %c0_2 = arith.constant 0 : index
    %3 = vector.load %arg2[%c0, %c0_1, %c0_2] : memref<8x8x128xf32, #tpu.memory_space<vmem>>, vector<8x8x128xf32>
    %c3 = arith.constant 3 : index
    %c0_3 = arith.constant 0 : index
    %c0_4 = arith.constant 0 : index
    %4 = vector.load %arg17[%c3, %c0_3, %c0_4] : memref<4x8x128xf32, #tpu.memory_space<vmem>>, vector<1x8x128xf32>
    %5 = vector.shape_cast %4 : vector<1x8x128xf32> to vector<8x128xf32>
    %6 = vector.shape_cast %5 : vector<8x128xf32> to vector<1x8x128xf32>
    %7 = vector.extract_strided_slice %3 {offsets = [0, 0, 0], sizes = [7, 8, 128], strides = [1, 1, 1]} : vector<8x8x128xf32> to vector<7x8x128xf32>
    %8 = tpu.concatenate %6, %7 in 0 : vector<1x8x128xf32>, vector<7x8x128xf32> -> vector<8x8x128xf32>
    %9 = vector.shape_cast %3 : vector<8x8x128xf32> to vector<64x128xf32>
    %10 = vector.shape_cast %8 : vector<8x8x128xf32> to vector<64x128xf32>
    %11 = arith.subf %9, %10 : vector<64x128xf32>
    %c0_5 = arith.constant 0 : index
    %c0_6 = arith.constant 0 : index
    %12 = vector.load %arg11[%c0_5, %c0_6] : memref<1x128xf32, #tpu.memory_space<vmem>>, vector<1x128xf32>
    %13 = vector.broadcast %12 : vector<1x128xf32> to vector<64x128xf32>
    %14 = arith.mulf %11, %13 : vector<64x128xf32>
    %15 = arith.addf %10, %14 : vector<64x128xf32>
    %c0_7 = arith.constant 0 : index
    %c0_8 = arith.constant 0 : index
    %16 = vector.load %arg12[%c0_7, %c0_8] : memref<1x128xf32, #tpu.memory_space<vmem>>, vector<1x128xf32>
    %17 = vector.broadcast %16 : vector<1x128xf32> to vector<64x128xf32>
    %18 = arith.mulf %11, %17 : vector<64x128xf32>
    %19 = arith.addf %10, %18 : vector<64x128xf32>
    %c0_9 = arith.constant 0 : index
    %c0_10 = arith.constant 0 : index
    %20 = vector.load %arg13[%c0_9, %c0_10] : memref<1x128xf32, #tpu.memory_space<vmem>>, vector<1x128xf32>
    %21 = vector.broadcast %20 : vector<1x128xf32> to vector<64x128xf32>
    %22 = arith.mulf %11, %21 : vector<64x128xf32>
    %23 = arith.addf %10, %22 : vector<64x128xf32>
    %24 = arith.truncf %15 : vector<64x128xf32> to vector<64x128xbf16>
    %c0_11 = arith.constant 0 : index
    %c0_12 = arith.constant 0 : index
    %25 = vector.load %arg5[%c0_11, %c0_12] : memref<128x128xbf16, #tpu.memory_space<vmem>>, vector<128x128xbf16>
    %cst = arith.constant dense<0.000000e+00> : vector<64x128xf32>
    %26 = tpu.matmul %24, %25, %cst {dimension_numbers = #tpu.dot_dimension_numbers<[1], [0], [0], [1], [0, 0, 1, 1], [], []>} : vector<64x128xbf16>, vector<128x128xbf16>, vector<64x128xf32> -> vector<64x128xf32>
    %27 = arith.truncf %19 : vector<64x128xf32> to vector<64x128xbf16>
    %c0_13 = arith.constant 0 : index
    %c0_14 = arith.constant 0 : index
    %28 = vector.load %arg6[%c0_13, %c0_14] : memref<128x128xbf16, #tpu.memory_space<vmem>>, vector<128x128xbf16>
    %cst_15 = arith.constant dense<0.000000e+00> : vector<64x128xf32>
    %29 = tpu.matmul %27, %28, %cst_15 {dimension_numbers = #tpu.dot_dimension_numbers<[1], [0], [0], [1], [0, 0, 1, 1], [], []>} : vector<64x128xbf16>, vector<128x128xbf16>, vector<64x128xf32> -> vector<64x128xf32>
    %30 = arith.truncf %23 : vector<64x128xf32> to vector<64x128xbf16>
    %c0_16 = arith.constant 0 : index
    %c0_17 = arith.constant 0 : index
    %31 = vector.load %arg7[%c0_16, %c0_17] : memref<128x128xbf16, #tpu.memory_space<vmem>>, vector<128x128xbf16>
    %cst_18 = arith.constant dense<0.000000e+00> : vector<64x128xf32>
    %32 = tpu.matmul %30, %31, %cst_18 {dimension_numbers = #tpu.dot_dimension_numbers<[1], [0], [0], [1], [0, 0, 1, 1], [], []>} : vector<64x128xbf16>, vector<128x128xbf16>, vector<64x128xf32> -> vector<64x128xf32>
    %33 = vector.shape_cast %26 : vector<64x128xf32> to vector<8x8x128xf32>
    %c0_19 = arith.constant 0 : index
    %c0_20 = arith.constant 0 : index
    %c0_21 = arith.constant 0 : index
    %34 = vector.load %arg18[%c0_19, %c0_20, %c0_21] : memref<8x8x128xf32, #tpu.memory_space<vmem>>, vector<8x8x128xf32>
    tpu.vector_store %arg18[%c0_19, %c0_20, %c0_21], %33 {strides = array<i32>} : memref<8x8x128xf32, #tpu.memory_space<vmem>>, vector<8x8x128xf32>,
    %35 = vector.shape_cast %29 : vector<64x128xf32> to vector<8x8x128xf32>
    %c0_22 = arith.constant 0 : index
    %c0_23 = arith.constant 0 : index
    %c0_24 = arith.constant 0 : index
    %36 = vector.load %arg19[%c0_22, %c0_23, %c0_24] : memref<8x8x128xf32, #tpu.memory_space<vmem>>, vector<8x8x128xf32>
    tpu.vector_store %arg19[%c0_22, %c0_23, %c0_24], %35 {strides = array<i32>} : memref<8x8x128xf32, #tpu.memory_space<vmem>>, vector<8x8x128xf32>,
    %cst_25 = arith.constant 0.000000e+00 : f32
    %37 = vector.broadcast %cst_25 : f32 to vector<64x128xf32>
    %38 = arith.subf %37, %32 : vector<64x128xf32>
    %39 = math.exp %38 : vector<64x128xf32>
    %cst_26 = arith.constant 1.000000e+00 : f32
    %40 = vector.broadcast %cst_26 : f32 to vector<64x128xf32>
    %41 = arith.addf %40, %39 : vector<64x128xf32>
    %cst_27 = arith.constant 1.000000e+00 : f32
    %42 = vector.broadcast %cst_27 : f32 to vector<64x128xf32>
    %43 = arith.divf %42, %41 : vector<64x128xf32>
    %44 = vector.shape_cast %43 : vector<64x128xf32> to vector<8x8x128xf32>
    %45 = arith.truncf %44 : vector<8x8x128xf32> to vector<8x8x128xbf16>
    %c0_28 = arith.constant 0 : index
    %c0_29 = arith.constant 0 : index
    %c0_30 = arith.constant 0 : index
    %46 = vector.load %arg20[%c0_28, %c0_29, %c0_30] : memref<8x8x128xbf16, #tpu.memory_space<vmem>>, vector<8x8x128xbf16>
    tpu.vector_store %arg20[%c0_28, %c0_29, %c0_30], %45 {strides = array<i32>} : memref<8x8x128xbf16, #tpu.memory_space<vmem>>, vector<8x8x128xbf16>,
    %c0_31 = arith.constant 0 : index
    %c0_32 = arith.constant 0 : index
    %47 = vector.load %arg10[%c0_31, %c0_32] : memref<1x128xf32, #tpu.memory_space<vmem>>, vector<1x128xf32>
    %48 = vector.shape_cast %47 : vector<1x128xf32> to vector<1x128xf32>
    %49 = vector.broadcast %48 : vector<1x128xf32> to vector<8x128xf32>
    %c0_33 = arith.constant 0 : index
    %c0_34 = arith.constant 0 : index
    %50 = vector.load %arg9[%c0_33, %c0_34] : memref<1x128xf32, #tpu.memory_space<vmem>>, vector<1x128xf32>
    %51 = math.exp %50 : vector<1x128xf32>
    %52 = vector.shape_cast %51 : vector<1x128xf32> to vector<1x128xf32>
    %53 = vector.broadcast %52 : vector<1x128xf32> to vector<8x128xf32>
    %c0_35 = arith.constant 0 : index
    %c0_36 = arith.constant 0 : index
    %c0_37 = arith.constant 0 : index
    %54 = vector.load %arg17[%c0_35, %c0_36, %c0_37] : memref<4x8x128xf32, #tpu.memory_space<vmem>>, vector<1x8x128xf32>
    %55 = vector.shape_cast %54 : vector<1x8x128xf32> to vector<8x128xf32>
    %c1 = arith.constant 1 : index
    %c0_38 = arith.constant 0 : index
    %c0_39 = arith.constant 0 : index
    %56 = vector.load %arg17[%c1, %c0_38, %c0_39] : memref<4x8x128xf32, #tpu.memory_space<vmem>>, vector<1x8x128xf32>
    %57 = vector.shape_cast %56 : vector<1x8x128xf32> to vector<8x128xf32>
    %c2 = arith.constant 2 : index
    %c0_40 = arith.constant 0 : index
    %c0_41 = arith.constant 0 : index
    %58 = vector.load %arg17[%c2, %c0_40, %c0_41] : memref<4x8x128xf32, #tpu.memory_space<vmem>>, vector<1x8x128xf32>
    %59 = vector.shape_cast %58 : vector<1x8x128xf32> to vector<8x128xf32>
    %c0_i32_42 = arith.constant 0 : i32
    %60 = arith.index_cast %c0_i32_42 : i32 to index
    %c0_43 = arith.constant 0 : index
    %c0_44 = arith.constant 0 : index
    %61 = vector.load %arg18[%60, %c0_43, %c0_44] : memref<8x8x128xf32, #tpu.memory_space<vmem>>, vector<1x8x128xf32>
    %62 = vector.shape_cast %61 : vector<1x8x128xf32> to vector<8x128xf32>
    %63 = arith.index_cast %c0_i32_42 : i32 to index
    %c0_45 = arith.constant 0 : index
    %c0_46 = arith.constant 0 : index
    %64 = vector.load %arg19[%63, %c0_45, %c0_46] : memref<8x8x128xf32, #tpu.memory_space<vmem>>, vector<1x8x128xf32>
    %65 = vector.shape_cast %64 : vector<1x8x128xf32> to vector<8x128xf32>
    %66 = arith.addf %62, %49 : vector<8x128xf32>
    %67 = arith.subf %66, %59 : vector<8x128xf32>
    %68 = math.absf %67 : vector<8x128xf32>
    %cst_47 = arith.constant 0.000000e+00 : f32
    %69 = vector.broadcast %cst_47 : f32 to vector<8x128xf32>
    %70 = arith.subf %69, %68 : vector<8x128xf32>
    %71 = math.exp %70 : vector<8x128xf32>
    %cst_48 = arith.constant 0.000000e+00 : f32
    %72 = vector.broadcast %cst_48 : f32 to vector<8x128xf32>
    %73 = arith.cmpf oge, %67, %72 : vector<8x128xf32>
    %cst_49 = arith.constant 1.000000e+00 : f32
    %74 = vector.broadcast %cst_49 : f32 to vector<8x128xf32>
    %75 = arith.select %73, %71, %74 : vector<8x128xi1>, vector<8x128xf32>
    %cst_50 = arith.constant 1.000000e+00 : f32
    %76 = vector.broadcast %cst_50 : f32 to vector<8x128xf32>
    %77 = arith.select %73, %76, %71 : vector<8x128xi1>, vector<8x128xf32>
    %78 = arith.mulf %75, %55 : vector<8x128xf32>
    %79 = arith.mulf %77, %65 : vector<8x128xf32>
    %80 = arith.addf %78, %79 : vector<8x128xf32>
    %81 = arith.mulf %75, %57 : vector<8x128xf32>
    %82 = arith.addf %81, %77 : vector<8x128xf32>
    %83 = tpu.reciprocal %82 {approx = true} : vector<8x128xf32> -> vector<8x128xf32>
    %84 = arith.mulf %80, %83 : vector<8x128xf32>
    %85 = arith.index_cast %c0_i32_42 : i32 to index
    %c0_51 = arith.constant 0 : index
    %c0_52 = arith.constant 0 : index
    %86 = vector.load %arg20[%85, %c0_51, %c0_52] : memref<8x8x128xbf16, #tpu.memory_space<vmem>>, vector<1x8x128xbf16>
    %87 = vector.shape_cast %86 : vector<1x8x128xbf16> to vector<8x128xbf16>
    %88 = arith.extf %87 : vector<8x128xbf16> to vector<8x128xf32>
    %89 = arith.mulf %84, %88 : vector<8x128xf32>
    %90 = arith.truncf %89 : vector<8x128xf32> to vector<8x128xbf16>
    %91 = arith.index_cast %c0_i32_42 : i32 to index
    %c0_53 = arith.constant 0 : index
    %c0_54 = arith.constant 0 : index
    %92 = vector.load %arg20[%91, %c0_53, %c0_54] : memref<8x8x128xbf16, #tpu.memory_space<vmem>>, vector<1x8x128xbf16>
    %93 = vector.shape_cast %92 : vector<1x8x128xbf16> to vector<8x128xbf16>
    %94 = vector.shape_cast %90 : vector<8x128xbf16> to vector<1x8x128xbf16>
    tpu.vector_store %arg20[%91, %c0_53, %c0_54], %94 {strides = array<i32>} : memref<8x8x128xbf16, #tpu.memory_space<vmem>>, vector<1x8x128xbf16>,
    %95 = arith.subf %59, %53 : vector<8x128xf32>
    %96 = arith.subf %62, %95 : vector<8x128xf32>
    %97 = math.absf %96 : vector<8x128xf32>
    %cst_55 = arith.constant 0.000000e+00 : f32
    %98 = vector.broadcast %cst_55 : f32 to vector<8x128xf32>
    %99 = arith.subf %98, %97 : vector<8x128xf32>
    %100 = math.exp %99 : vector<8x128xf32>
    %cst_56 = arith.constant 0.000000e+00 : f32
    %101 = vector.broadcast %cst_56 : f32 to vector<8x128xf32>
    %102 = arith.cmpf oge, %96, %101 : vector<8x128xf32>
    %cst_57 = arith.constant 1.000000e+00 : f32
    %103 = vector.broadcast %cst_57 : f32 to vector<8x128xf32>
    %104 = arith.select %102, %100, %103 : vector<8x128xi1>, vector<8x128xf32>
    %cst_58 = arith.constant 1.000000e+00 : f32
    %105 = vector.broadcast %cst_58 : f32 to vector<8x128xf32>
    %106 = arith.select %102, %105, %100 : vector<8x128xi1>, vector<8x128xf32>
    %107 = arith.mulf %104, %55 : vector<8x128xf32>
    %108 = arith.mulf %106, %65 : vector<8x128xf32>
    %109 = arith.addf %107, %108 : vector<8x128xf32>
    %110 = arith.mulf %104, %57 : vector<8x128xf32>
    %111 = arith.addf %110, %106 : vector<8x128xf32>
    %112 = arith.maximumf %95, %62 : vector<8x128xf32>
    %c1_i32 = arith.constant 1 : i32
    %113 = arith.index_cast %c1_i32 : i32 to index
    %c0_59 = arith.constant 0 : index
    %c0_60 = arith.constant 0 : index
    %114 = vector.load %arg18[%113, %c0_59, %c0_60] : memref<8x8x128xf32, #tpu.memory_space<vmem>>, vector<1x8x128xf32>
    %115 = vector.shape_cast %114 : vector<1x8x128xf32> to vector<8x128xf32>
    %116 = arith.index_cast %c1_i32 : i32 to index
    %c0_61 = arith.constant 0 : index
    %c0_62 = arith.constant 0 : index
    %117 = vector.load %arg19[%116, %c0_61, %c0_62] : memref<8x8x128xf32, #tpu.memory_space<vmem>>, vector<1x8x128xf32>
    %118 = vector.shape_cast %117 : vector<1x8x128xf32> to vector<8x128xf32>
    %119 = arith.addf %115, %49 : vector<8x128xf32>
    %120 = arith.subf %119, %112 : vector<8x128xf32>
    %121 = math.absf %120 : vector<8x128xf32>
    %cst_63 = arith.constant 0.000000e+00 : f32
    %122 = vector.broadcast %cst_63 : f32 to vector<8x128xf32>
    %123 = arith.subf %122, %121 : vector<8x128xf32>
    %124 = math.exp %123 : vector<8x128xf32>
    %cst_64 = arith.constant 0.000000e+00 : f32
    %125 = vector.broadcast %cst_64 : f32 to vector<8x128xf32>
    %126 = arith.cmpf oge, %120, %125 : vector<8x128xf32>
    %cst_65 = arith.constant 1.000000e+00 : f32
    %127 = vector.broadcast %cst_65 : f32 to vector<8x128xf32>
    %128 = arith.select %126, %124, %127 : vector<8x128xi1>, vector<8x128xf32>
    %cst_66 = arith.constant 1.000000e+00 : f32
    %129 = vector.broadcast %cst_66 : f32 to vector<8x128xf32>
    %130 = arith.select %126, %129, %124 : vector<8x128xi1>, vector<8x128xf32>
    %131 = arith.mulf %128, %109 : vector<8x128xf32>
    %132 = arith.mulf %130, %118 : vector<8x128xf32>
    %133 = arith.addf %131, %132 : vector<8x128xf32>
    %134 = arith.mulf %128, %111 : vector<8x128xf32>
    %135 = arith.addf %134, %130 : vector<8x128xf32>
    %136 = tpu.reciprocal %135 {approx = true} : vector<8x128xf32> -> vector<8x128xf32>
    %137 = arith.mulf %133, %136 : vector<8x128xf32>
    %138 = arith.index_cast %c1_i32 : i32 to index
    %c0_67 = arith.constant 0 : index
    %c0_68 = arith.constant 0 : index
    %139 = vector.load %arg20[%138, %c0_67, %c0_68] : memref<8x8x128xbf16, #tpu.memory_space<vmem>>, vector<1x8x128xbf16>
    %140 = vector.shape_cast %139 : vector<1x8x128xbf16> to vector<8x128xbf16>
    %141 = arith.extf %140 : vector<8x128xbf16> to vector<8x128xf32>
    %142 = arith.mulf %137, %141 : vector<8x128xf32>
    %143 = arith.truncf %142 : vector<8x128xf32> to vector<8x128xbf16>
    %144 = arith.index_cast %c1_i32 : i32 to index
    %c0_69 = arith.constant 0 : index
    %c0_70 = arith.constant 0 : index
    %145 = vector.load %arg20[%144, %c0_69, %c0_70] : memref<8x8x128xbf16, #tpu.memory_space<vmem>>, vector<1x8x128xbf16>
    %146 = vector.shape_cast %145 : vector<1x8x128xbf16> to vector<8x128xbf16>
    %147 = vector.shape_cast %143 : vector<8x128xbf16> to vector<1x8x128xbf16>
    tpu.vector_store %arg20[%144, %c0_69, %c0_70], %147 {strides = array<i32>} : memref<8x8x128xbf16, #tpu.memory_space<vmem>>, vector<1x8x128xbf16>,
    %148 = arith.subf %112, %53 : vector<8x128xf32>
    %149 = arith.subf %115, %148 : vector<8x128xf32>
    %150 = math.absf %149 : vector<8x128xf32>
    %cst_71 = arith.constant 0.000000e+00 : f32
    %151 = vector.broadcast %cst_71 : f32 to vector<8x128xf32>
    %152 = arith.subf %151, %150 : vector<8x128xf32>
    %153 = math.exp %152 : vector<8x128xf32>
    %cst_72 = arith.constant 0.000000e+00 : f32
    %154 = vector.broadcast %cst_72 : f32 to vector<8x128xf32>
    %155 = arith.cmpf oge, %149, %154 : vector<8x128xf32>
    %cst_73 = arith.constant 1.000000e+00 : f32
    %156 = vector.broadcast %cst_73 : f32 to vector<8x128xf32>
    %157 = arith.select %155, %153, %156 : vector<8x128xi1>, vector<8x128xf32>
    %cst_74 = arith.constant 1.000000e+00 : f32
    %158 = vector.broadcast %cst_74 : f32 to vector<8x128xf32>
    %159 = arith.select %155, %158, %153 : vector<8x128xi1>, vector<8x128xf32>
    %160 = arith.mulf %157, %109 : vector<8x128xf32>
    %161 = arith.mulf %159, %118 : vector<8x128xf32>
    %162 = arith.addf %160, %161 : vector<8x128xf32>
    %163 = arith.mulf %157, %111 : vector<8x128xf32>
    %164 = arith.addf %163, %159 : vector<8x128xf32>
    %165 = arith.maximumf %148, %115 : vector<8x128xf32>
    %c2_i32 = arith.constant 2 : i32
    %166 = arith.index_cast %c2_i32 : i32 to index
    %c0_75 = arith.constant 0 : index
    %c0_76 = arith.constant 0 : index
    %167 = vector.load %arg18[%166, %c0_75, %c0_76] : memref<8x8x128xf32, #tpu.memory_space<vmem>>, vector<1x8x128xf32>
    %168 = vector.shape_cast %167 : vector<1x8x128xf32> to vector<8x128xf32>
    %169 = arith.index_cast %c2_i32 : i32 to index
    %c0_77 = arith.constant 0 : index
    %c0_78 = arith.constant 0 : index
    %170 = vector.load %arg19[%169, %c0_77, %c0_78] : memref<8x8x128xf32, #tpu.memory_space<vmem>>, vector<1x8x128xf32>
    %171 = vector.shape_cast %170 : vector<1x8x128xf32> to vector<8x128xf32>
    %172 = arith.addf %168, %49 : vector<8x128xf32>
    %173 = arith.subf %172, %165 : vector<8x128xf32>
    %174 = math.absf %173 : vector<8x128xf32>
    %cst_79 = arith.constant 0.000000e+00 : f32
    %175 = vector.broadcast %cst_79 : f32 to vector<8x128xf32>
    %176 = arith.subf %175, %174 : vector<8x128xf32>
    %177 = math.exp %176 : vector<8x128xf32>
    %cst_80 = arith.constant 0.000000e+00 : f32
    %178 = vector.broadcast %cst_80 : f32 to vector<8x128xf32>
    %179 = arith.cmpf oge, %173, %178 : vector<8x128xf32>
    %cst_81 = arith.constant 1.000000e+00 : f32
    %180 = vector.broadcast %cst_81 : f32 to vector<8x128xf32>
    %181 = arith.select %179, %177, %180 : vector<8x128xi1>, vector<8x128xf32>
    %cst_82 = arith.constant 1.000000e+00 : f32
    %182 = vector.broadcast %cst_82 : f32 to vector<8x128xf32>
    %183 = arith.select %179, %182, %177 : vector<8x128xi1>, vector<8x128xf32>
    %184 = arith.mulf %181, %162 : vector<8x128xf32>
    %185 = arith.mulf %183, %171 : vector<8x128xf32>
    %186 = arith.addf %184, %185 : vector<8x128xf32>
    %187 = arith.mulf %181, %164 : vector<8x128xf32>
    %188 = arith.addf %187, %183 : vector<8x128xf32>
    %189 = tpu.reciprocal %188 {approx = true} : vector<8x128xf32> -> vector<8x128xf32>
    %190 = arith.mulf %186, %189 : vector<8x128xf32>
    %191 = arith.index_cast %c2_i32 : i32 to index
    %c0_83 = arith.constant 0 : index
    %c0_84 = arith.constant 0 : index
    %192 = vector.load %arg20[%191, %c0_83, %c0_84] : memref<8x8x128xbf16, #tpu.memory_space<vmem>>, vector<1x8x128xbf16>
    %193 = vector.shape_cast %192 : vector<1x8x128xbf16> to vector<8x128xbf16>
    %194 = arith.extf %193 : vector<8x128xbf16> to vector<8x128xf32>
    %195 = arith.mulf %190, %194 : vector<8x128xf32>
    %196 = arith.truncf %195 : vector<8x128xf32> to vector<8x128xbf16>
    %197 = arith.index_cast %c2_i32 : i32 to index
    %c0_85 = arith.constant 0 : index
    %c0_86 = arith.constant 0 : index
    %198 = vector.load %arg20[%197, %c0_85, %c0_86] : memref<8x8x128xbf16, #tpu.memory_space<vmem>>, vector<1x8x128xbf16>
    %199 = vector.shape_cast %198 : vector<1x8x128xbf16> to vector<8x128xbf16>
    %200 = vector.shape_cast %196 : vector<8x128xbf16> to vector<1x8x128xbf16>
    tpu.vector_store %arg20[%197, %c0_85, %c0_86], %200 {strides = array<i32>} : memref<8x8x128xbf16, #tpu.memory_space<vmem>>, vector<1x8x128xbf16>,
    %201 = arith.subf %165, %53 : vector<8x128xf32>
    %202 = arith.subf %168, %201 : vector<8x128xf32>
    %203 = math.absf %202 : vector<8x128xf32>
    %cst_87 = arith.constant 0.000000e+00 : f32
    %204 = vector.broadcast %cst_87 : f32 to vector<8x128xf32>
    %205 = arith.subf %204, %203 : vector<8x128xf32>
    %206 = math.exp %205 : vector<8x128xf32>
    %cst_88 = arith.constant 0.000000e+00 : f32
    %207 = vector.broadcast %cst_88 : f32 to vector<8x128xf32>
    %208 = arith.cmpf oge, %202, %207 : vector<8x128xf32>
    %cst_89 = arith.constant 1.000000e+00 : f32
    %209 = vector.broadcast %cst_89 : f32 to vector<8x128xf32>
    %210 = arith.select %208, %206, %209 : vector<8x128xi1>, vector<8x128xf32>
    %cst_90 = arith.constant 1.000000e+00 : f32
    %211 = vector.broadcast %cst_90 : f32 to vector<8x128xf32>
    %212 = arith.select %208, %211, %206 : vector<8x128xi1>, vector<8x128xf32>
    %213 = arith.mulf %210, %162 : vector<8x128xf32>
    %214 = arith.mulf %212, %171 : vector<8x128xf32>
    %215 = arith.addf %213, %214 : vector<8x128xf32>
    %216 = arith.mulf %210, %164 : vector<8x128xf32>
    %217 = arith.addf %216, %212 : vector<8x128xf32>
    %218 = arith.maximumf %201, %168 : vector<8x128xf32>
    %c3_i32 = arith.constant 3 : i32
    %219 = arith.index_cast %c3_i32 : i32 to index
    %c0_91 = arith.constant 0 : index
    %c0_92 = arith.constant 0 : index
    %220 = vector.load %arg18[%219, %c0_91, %c0_92] : memref<8x8x128xf32, #tpu.memory_space<vmem>>, vector<1x8x128xf32>
    %221 = vector.shape_cast %220 : vector<1x8x128xf32> to vector<8x128xf32>
    %222 = arith.index_cast %c3_i32 : i32 to index
    %c0_93 = arith.constant 0 : index
    %c0_94 = arith.constant 0 : index
    %223 = vector.load %arg19[%222, %c0_93, %c0_94] : memref<8x8x128xf32, #tpu.memory_space<vmem>>, vector<1x8x128xf32>
    %224 = vector.shape_cast %223 : vector<1x8x128xf32> to vector<8x128xf32>
    %225 = arith.addf %221, %49 : vector<8x128xf32>
    %226 = arith.subf %225, %218 : vector<8x128xf32>
    %227 = math.absf %226 : vector<8x128xf32>
    %cst_95 = arith.constant 0.000000e+00 : f32
    %228 = vector.broadcast %cst_95 : f32 to vector<8x128xf32>
    %229 = arith.subf %228, %227 : vector<8x128xf32>
    %230 = math.exp %229 : vector<8x128xf32>
    %cst_96 = arith.constant 0.000000e+00 : f32
    %231 = vector.broadcast %cst_96 : f32 to vector<8x128xf32>
    %232 = arith.cmpf oge, %226, %231 : vector<8x128xf32>
    %cst_97 = arith.constant 1.000000e+00 : f32
    %233 = vector.broadcast %cst_97 : f32 to vector<8x128xf32>
    %234 = arith.select %232, %230, %233 : vector<8x128xi1>, vector<8x128xf32>
    %cst_98 = arith.constant 1.000000e+00 : f32
    %235 = vector.broadcast %cst_98 : f32 to vector<8x128xf32>
    %236 = arith.select %232, %235, %230 : vector<8x128xi1>, vector<8x128xf32>
    %237 = arith.mulf %234, %215 : vector<8x128xf32>
    %238 = arith.mulf %236, %224 : vector<8x128xf32>
    %239 = arith.addf %237, %238 : vector<8x128xf32>
    %240 = arith.mulf %234, %217 : vector<8x128xf32>
    %241 = arith.addf %240, %236 : vector<8x128xf32>
    %242 = tpu.reciprocal %241 {approx = true} : vector<8x128xf32> -> vector<8x128xf32>
    %243 = arith.mulf %239, %242 : vector<8x128xf32>
    %244 = arith.index_cast %c3_i32 : i32 to index
    %c0_99 = arith.constant 0 : index
    %c0_100 = arith.constant 0 : index
    %245 = vector.load %arg20[%244, %c0_99, %c0_100] : memref<8x8x128xbf16, #tpu.memory_space<vmem>>, vector<1x8x128xbf16>
    %246 = vector.shape_cast %245 : vector<1x8x128xbf16> to vector<8x128xbf16>
    %247 = arith.extf %246 : vector<8x128xbf16> to vector<8x128xf32>
    %248 = arith.mulf %243, %247 : vector<8x128xf32>
    %249 = arith.truncf %248 : vector<8x128xf32> to vector<8x128xbf16>
    %250 = arith.index_cast %c3_i32 : i32 to index
    %c0_101 = arith.constant 0 : index
    %c0_102 = arith.constant 0 : index
    %251 = vector.load %arg20[%250, %c0_101, %c0_102] : memref<8x8x128xbf16, #tpu.memory_space<vmem>>, vector<1x8x128xbf16>
    %252 = vector.shape_cast %251 : vector<1x8x128xbf16> to vector<8x128xbf16>
    %253 = vector.shape_cast %249 : vector<8x128xbf16> to vector<1x8x128xbf16>
    tpu.vector_store %arg20[%250, %c0_101, %c0_102], %253 {strides = array<i32>} : memref<8x8x128xbf16, #tpu.memory_space<vmem>>, vector<1x8x128xbf16>,
    %254 = arith.subf %218, %53 : vector<8x128xf32>
    %255 = arith.subf %221, %254 : vector<8x128xf32>
    %256 = math.absf %255 : vector<8x128xf32>
    %cst_103 = arith.constant 0.000000e+00 : f32
    %257 = vector.broadcast %cst_103 : f32 to vector<8x128xf32>
    %258 = arith.subf %257, %256 : vector<8x128xf32>
    %259 = math.exp %258 : vector<8x128xf32>
    %cst_104 = arith.constant 0.000000e+00 : f32
    %260 = vector.broadcast %cst_104 : f32 to vector<8x128xf32>
    %261 = arith.cmpf oge, %255, %260 : vector<8x128xf32>
    %cst_105 = arith.constant 1.000000e+00 : f32
    %262 = vector.broadcast %cst_105 : f32 to vector<8x128xf32>
    %263 = arith.select %261, %259, %262 : vector<8x128xi1>, vector<8x128xf32>
    %cst_106 = arith.constant 1.000000e+00 : f32
    %264 = vector.broadcast %cst_106 : f32 to vector<8x128xf32>
    %265 = arith.select %261, %264, %259 : vector<8x128xi1>, vector<8x128xf32>
    %266 = arith.mulf %263, %215 : vector<8x128xf32>
    %267 = arith.mulf %265, %224 : vector<8x128xf32>
    %268 = arith.addf %266, %267 : vector<8x128xf32>
    %269 = arith.mulf %263, %217 : vector<8x128xf32>
    %270 = arith.addf %269, %265 : vector<8x128xf32>
    %271 = arith.maximumf %254, %221 : vector<8x128xf32>
    %c4_i32 = arith.constant 4 : i32
    %272 = arith.index_cast %c4_i32 : i32 to index
    %c0_107 = arith.constant 0 : index
    %c0_108 = arith.constant 0 : index
    %273 = vector.load %arg18[%272, %c0_107, %c0_108] : memref<8x8x128xf32, #tpu.memory_space<vmem>>, vector<1x8x128xf32>
    %274 = vector.shape_cast %273 : vector<1x8x128xf32> to vector<8x128xf32>
    %275 = arith.index_cast %c4_i32 : i32 to index
    %c0_109 = arith.constant 0 : index
    %c0_110 = arith.constant 0 : index
    %276 = vector.load %arg19[%275, %c0_109, %c0_110] : memref<8x8x128xf32, #tpu.memory_space<vmem>>, vector<1x8x128xf32>
    %277 = vector.shape_cast %276 : vector<1x8x128xf32> to vector<8x128xf32>
    %278 = arith.addf %274, %49 : vector<8x128xf32>
    %279 = arith.subf %278, %271 : vector<8x128xf32>
    %280 = math.absf %279 : vector<8x128xf32>
    %cst_111 = arith.constant 0.000000e+00 : f32
    %281 = vector.broadcast %cst_111 : f32 to vector<8x128xf32>
    %282 = arith.subf %281, %280 : vector<8x128xf32>
    %283 = math.exp %282 : vector<8x128xf32>
    %cst_112 = arith.constant 0.000000e+00 : f32
    %284 = vector.broadcast %cst_112 : f32 to vector<8x128xf32>
    %285 = arith.cmpf oge, %279, %284 : vector<8x128xf32>
    %cst_113 = arith.constant 1.000000e+00 : f32
    %286 = vector.broadcast %cst_113 : f32 to vector<8x128xf32>
    %287 = arith.select %285, %283, %286 : vector<8x128xi1>, vector<8x128xf32>
    %cst_114 = arith.constant 1.000000e+00 : f32
    %288 = vector.broadcast %cst_114 : f32 to vector<8x128xf32>
    %289 = arith.select %285, %288, %283 : vector<8x128xi1>, vector<8x128xf32>
    %290 = arith.mulf %287, %268 : vector<8x128xf32>
    %291 = arith.mulf %289, %277 : vector<8x128xf32>
    %292 = arith.addf %290, %291 : vector<8x128xf32>
    %293 = arith.mulf %287, %270 : vector<8x128xf32>
    %294 = arith.addf %293, %289 : vector<8x128xf32>
    %295 = tpu.reciprocal %294 {approx = true} : vector<8x128xf32> -> vector<8x128xf32>
    %296 = arith.mulf %292, %295 : vector<8x128xf32>
    %297 = arith.index_cast %c4_i32 : i32 to index
    %c0_115 = arith.constant 0 : index
    %c0_116 = arith.constant 0 : index
    %298 = vector.load %arg20[%297, %c0_115, %c0_116] : memref<8x8x128xbf16, #tpu.memory_space<vmem>>, vector<1x8x128xbf16>
    %299 = vector.shape_cast %298 : vector<1x8x128xbf16> to vector<8x128xbf16>
    %300 = arith.extf %299 : vector<8x128xbf16> to vector<8x128xf32>
    %301 = arith.mulf %296, %300 : vector<8x128xf32>
    %302 = arith.truncf %301 : vector<8x128xf32> to vector<8x128xbf16>
    %303 = arith.index_cast %c4_i32 : i32 to index
    %c0_117 = arith.constant 0 : index
    %c0_118 = arith.constant 0 : index
    %304 = vector.load %arg20[%303, %c0_117, %c0_118] : memref<8x8x128xbf16, #tpu.memory_space<vmem>>, vector<1x8x128xbf16>
    %305 = vector.shape_cast %304 : vector<1x8x128xbf16> to vector<8x128xbf16>
    %306 = vector.shape_cast %302 : vector<8x128xbf16> to vector<1x8x128xbf16>
    tpu.vector_store %arg20[%303, %c0_117, %c0_118], %306 {strides = array<i32>} : memref<8x8x128xbf16, #tpu.memory_space<vmem>>, vector<1x8x128xbf16>,
    %307 = arith.subf %271, %53 : vector<8x128xf32>
    %308 = arith.subf %274, %307 : vector<8x128xf32>
    %309 = math.absf %308 : vector<8x128xf32>
    %cst_119 = arith.constant 0.000000e+00 : f32
    %310 = vector.broadcast %cst_119 : f32 to vector<8x128xf32>
    %311 = arith.subf %310, %309 : vector<8x128xf32>
    %312 = math.exp %311 : vector<8x128xf32>
    %cst_120 = arith.constant 0.000000e+00 : f32
    %313 = vector.broadcast %cst_120 : f32 to vector<8x128xf32>
    %314 = arith.cmpf oge, %308, %313 : vector<8x128xf32>
    %cst_121 = arith.constant 1.000000e+00 : f32
    %315 = vector.broadcast %cst_121 : f32 to vector<8x128xf32>
    %316 = arith.select %314, %312, %315 : vector<8x128xi1>, vector<8x128xf32>
    %cst_122 = arith.constant 1.000000e+00 : f32
    %317 = vector.broadcast %cst_122 : f32 to vector<8x128xf32>
    %318 = arith.select %314, %317, %312 : vector<8x128xi1>, vector<8x128xf32>
    %319 = arith.mulf %316, %268 : vector<8x128xf32>
    %320 = arith.mulf %318, %277 : vector<8x128xf32>
    %321 = arith.addf %319, %320 : vector<8x128xf32>
    %322 = arith.mulf %316, %270 : vector<8x128xf32>
    %323 = arith.addf %322, %318 : vector<8x128xf32>
    %324 = arith.maximumf %307, %274 : vector<8x128xf32>
    %c5_i32 = arith.constant 5 : i32
    %325 = arith.index_cast %c5_i32 : i32 to index
    %c0_123 = arith.constant 0 : index
    %c0_124 = arith.constant 0 : index
    %326 = vector.load %arg18[%325, %c0_123, %c0_124] : memref<8x8x128xf32, #tpu.memory_space<vmem>>, vector<1x8x128xf32>
    %327 = vector.shape_cast %326 : vector<1x8x128xf32> to vector<8x128xf32>
    %328 = arith.index_cast %c5_i32 : i32 to index
    %c0_125 = arith.constant 0 : index
    %c0_126 = arith.constant 0 : index
    %329 = vector.load %arg19[%328, %c0_125, %c0_126] : memref<8x8x128xf32, #tpu.memory_space<vmem>>, vector<1x8x128xf32>
    %330 = vector.shape_cast %329 : vector<1x8x128xf32> to vector<8x128xf32>
    %331 = arith.addf %327, %49 : vector<8x128xf32>
    %332 = arith.subf %331, %324 : vector<8x128xf32>
    %333 = math.absf %332 : vector<8x128xf32>
    %cst_127 = arith.constant 0.000000e+00 : f32
    %334 = vector.broadcast %cst_127 : f32 to vector<8x128xf32>
    %335 = arith.subf %334, %333 : vector<8x128xf32>
    %336 = math.exp %335 : vector<8x128xf32>
    %cst_128 = arith.constant 0.000000e+00 : f32
    %337 = vector.broadcast %cst_128 : f32 to vector<8x128xf32>
    %338 = arith.cmpf oge, %332, %337 : vector<8x128xf32>
    %cst_129 = arith.constant 1.000000e+00 : f32
    %339 = vector.broadcast %cst_129 : f32 to vector<8x128xf32>
    %340 = arith.select %338, %336, %339 : vector<8x128xi1>, vector<8x128xf32>
    %cst_130 = arith.constant 1.000000e+00 : f32
    %341 = vector.broadcast %cst_130 : f32 to vector<8x128xf32>
    %342 = arith.select %338, %341, %336 : vector<8x128xi1>, vector<8x128xf32>
    %343 = arith.mulf %340, %321 : vector<8x128xf32>
    %344 = arith.mulf %342, %330 : vector<8x128xf32>
    %345 = arith.addf %343, %344 : vector<8x128xf32>
    %346 = arith.mulf %340, %323 : vector<8x128xf32>
    %347 = arith.addf %346, %342 : vector<8x128xf32>
    %348 = tpu.reciprocal %347 {approx = true} : vector<8x128xf32> -> vector<8x128xf32>
    %349 = arith.mulf %345, %348 : vector<8x128xf32>
    %350 = arith.index_cast %c5_i32 : i32 to index
    %c0_131 = arith.constant 0 : index
    %c0_132 = arith.constant 0 : index
    %351 = vector.load %arg20[%350, %c0_131, %c0_132] : memref<8x8x128xbf16, #tpu.memory_space<vmem>>, vector<1x8x128xbf16>
    %352 = vector.shape_cast %351 : vector<1x8x128xbf16> to vector<8x128xbf16>
    %353 = arith.extf %352 : vector<8x128xbf16> to vector<8x128xf32>
    %354 = arith.mulf %349, %353 : vector<8x128xf32>
    %355 = arith.truncf %354 : vector<8x128xf32> to vector<8x128xbf16>
    %356 = arith.index_cast %c5_i32 : i32 to index
    %c0_133 = arith.constant 0 : index
    %c0_134 = arith.constant 0 : index
    %357 = vector.load %arg20[%356, %c0_133, %c0_134] : memref<8x8x128xbf16, #tpu.memory_space<vmem>>, vector<1x8x128xbf16>
    %358 = vector.shape_cast %357 : vector<1x8x128xbf16> to vector<8x128xbf16>
    %359 = vector.shape_cast %355 : vector<8x128xbf16> to vector<1x8x128xbf16>
    tpu.vector_store %arg20[%356, %c0_133, %c0_134], %359 {strides = array<i32>} : memref<8x8x128xbf16, #tpu.memory_space<vmem>>, vector<1x8x128xbf16>,
    %360 = arith.subf %324, %53 : vector<8x128xf32>
    %361 = arith.subf %327, %360 : vector<8x128xf32>
    %362 = math.absf %361 : vector<8x128xf32>
    %cst_135 = arith.constant 0.000000e+00 : f32
    %363 = vector.broadcast %cst_135 : f32 to vector<8x128xf32>
    %364 = arith.subf %363, %362 : vector<8x128xf32>
    %365 = math.exp %364 : vector<8x128xf32>
    %cst_136 = arith.constant 0.000000e+00 : f32
    %366 = vector.broadcast %cst_136 : f32 to vector<8x128xf32>
    %367 = arith.cmpf oge, %361, %366 : vector<8x128xf32>
    %cst_137 = arith.constant 1.000000e+00 : f32
    %368 = vector.broadcast %cst_137 : f32 to vector<8x128xf32>
    %369 = arith.select %367, %365, %368 : vector<8x128xi1>, vector<8x128xf32>
    %cst_138 = arith.constant 1.000000e+00 : f32
    %370 = vector.broadcast %cst_138 : f32 to vector<8x128xf32>
    %371 = arith.select %367, %370, %365 : vector<8x128xi1>, vector<8x128xf32>
    %372 = arith.mulf %369, %321 : vector<8x128xf32>
    %373 = arith.mulf %371, %330 : vector<8x128xf32>
    %374 = arith.addf %372, %373 : vector<8x128xf32>
    %375 = arith.mulf %369, %323 : vector<8x128xf32>
    %376 = arith.addf %375, %371 : vector<8x128xf32>
    %377 = arith.maximumf %360, %327 : vector<8x128xf32>
    %c6_i32 = arith.constant 6 : i32
    %378 = arith.index_cast %c6_i32 : i32 to index
    %c0_139 = arith.constant 0 : index
    %c0_140 = arith.constant 0 : index
    %379 = vector.load %arg18[%378, %c0_139, %c0_140] : memref<8x8x128xf32, #tpu.memory_space<vmem>>, vector<1x8x128xf32>
    %380 = vector.shape_cast %379 : vector<1x8x128xf32> to vector<8x128xf32>
    %381 = arith.index_cast %c6_i32 : i32 to index
    %c0_141 = arith.constant 0 : index
    %c0_142 = arith.constant 0 : index
    %382 = vector.load %arg19[%381, %c0_141, %c0_142] : memref<8x8x128xf32, #tpu.memory_space<vmem>>, vector<1x8x128xf32>
    %383 = vector.shape_cast %382 : vector<1x8x128xf32> to vector<8x128xf32>
    %384 = arith.addf %380, %49 : vector<8x128xf32>
    %385 = arith.subf %384, %377 : vector<8x128xf32>
    %386 = math.absf %385 : vector<8x128xf32>
    %cst_143 = arith.constant 0.000000e+00 : f32
    %387 = vector.broadcast %cst_143 : f32 to vector<8x128xf32>
    %388 = arith.subf %387, %386 : vector<8x128xf32>
    %389 = math.exp %388 : vector<8x128xf32>
    %cst_144 = arith.constant 0.000000e+00 : f32
    %390 = vector.broadcast %cst_144 : f32 to vector<8x128xf32>
    %391 = arith.cmpf oge, %385, %390 : vector<8x128xf32>
    %cst_145 = arith.constant 1.000000e+00 : f32
    %392 = vector.broadcast %cst_145 : f32 to vector<8x128xf32>
    %393 = arith.select %391, %389, %392 : vector<8x128xi1>, vector<8x128xf32>
    %cst_146 = arith.constant 1.000000e+00 : f32
    %394 = vector.broadcast %cst_146 : f32 to vector<8x128xf32>
    %395 = arith.select %391, %394, %389 : vector<8x128xi1>, vector<8x128xf32>
    %396 = arith.mulf %393, %374 : vector<8x128xf32>
    %397 = arith.mulf %395, %383 : vector<8x128xf32>
    %398 = arith.addf %396, %397 : vector<8x128xf32>
    %399 = arith.mulf %393, %376 : vector<8x128xf32>
    %400 = arith.addf %399, %395 : vector<8x128xf32>
    %401 = tpu.reciprocal %400 {approx = true} : vector<8x128xf32> -> vector<8x128xf32>
    %402 = arith.mulf %398, %401 : vector<8x128xf32>
    %403 = arith.index_cast %c6_i32 : i32 to index
    %c0_147 = arith.constant 0 : index
    %c0_148 = arith.constant 0 : index
    %404 = vector.load %arg20[%403, %c0_147, %c0_148] : memref<8x8x128xbf16, #tpu.memory_space<vmem>>, vector<1x8x128xbf16>
    %405 = vector.shape_cast %404 : vector<1x8x128xbf16> to vector<8x128xbf16>
    %406 = arith.extf %405 : vector<8x128xbf16> to vector<8x128xf32>
    %407 = arith.mulf %402, %406 : vector<8x128xf32>
    %408 = arith.truncf %407 : vector<8x128xf32> to vector<8x128xbf16>
    %409 = arith.index_cast %c6_i32 : i32 to index
    %c0_149 = arith.constant 0 : index
    %c0_150 = arith.constant 0 : index
    %410 = vector.load %arg20[%409, %c0_149, %c0_150] : memref<8x8x128xbf16, #tpu.memory_space<vmem>>, vector<1x8x128xbf16>
    %411 = vector.shape_cast %410 : vector<1x8x128xbf16> to vector<8x128xbf16>
    %412 = vector.shape_cast %408 : vector<8x128xbf16> to vector<1x8x128xbf16>
    tpu.vector_store %arg20[%409, %c0_149, %c0_150], %412 {strides = array<i32>} : memref<8x8x128xbf16, #tpu.memory_space<vmem>>, vector<1x8x128xbf16>,
    %413 = arith.subf %377, %53 : vector<8x128xf32>
    %414 = arith.subf %380, %413 : vector<8x128xf32>
    %415 = math.absf %414 : vector<8x128xf32>
    %cst_151 = arith.constant 0.000000e+00 : f32
    %416 = vector.broadcast %cst_151 : f32 to vector<8x128xf32>
    %417 = arith.subf %416, %415 : vector<8x128xf32>
    %418 = math.exp %417 : vector<8x128xf32>
    %cst_152 = arith.constant 0.000000e+00 : f32
    %419 = vector.broadcast %cst_152 : f32 to vector<8x128xf32>
    %420 = arith.cmpf oge, %414, %419 : vector<8x128xf32>
    %cst_153 = arith.constant 1.000000e+00 : f32
    %421 = vector.broadcast %cst_153 : f32 to vector<8x128xf32>
    %422 = arith.select %420, %418, %421 : vector<8x128xi1>, vector<8x128xf32>
    %cst_154 = arith.constant 1.000000e+00 : f32
    %423 = vector.broadcast %cst_154 : f32 to vector<8x128xf32>
    %424 = arith.select %420, %423, %418 : vector<8x128xi1>, vector<8x128xf32>
    %425 = arith.mulf %422, %374 : vector<8x128xf32>
    %426 = arith.mulf %424, %383 : vector<8x128xf32>
    %427 = arith.addf %425, %426 : vector<8x128xf32>
    %428 = arith.mulf %422, %376 : vector<8x128xf32>
    %429 = arith.addf %428, %424 : vector<8x128xf32>
    %430 = arith.maximumf %413, %380 : vector<8x128xf32>
    %c7_i32 = arith.constant 7 : i32
    %431 = arith.index_cast %c7_i32 : i32 to index
    %c0_155 = arith.constant 0 : index
    %c0_156 = arith.constant 0 : index
    %432 = vector.load %arg18[%431, %c0_155, %c0_156] : memref<8x8x128xf32, #tpu.memory_space<vmem>>, vector<1x8x128xf32>
    %433 = vector.shape_cast %432 : vector<1x8x128xf32> to vector<8x128xf32>
    %434 = arith.index_cast %c7_i32 : i32 to index
    %c0_157 = arith.constant 0 : index
    %c0_158 = arith.constant 0 : index
    %435 = vector.load %arg19[%434, %c0_157, %c0_158] : memref<8x8x128xf32, #tpu.memory_space<vmem>>, vector<1x8x128xf32>
    %436 = vector.shape_cast %435 : vector<1x8x128xf32> to vector<8x128xf32>
    %437 = arith.addf %433, %49 : vector<8x128xf32>
    %438 = arith.subf %437, %430 : vector<8x128xf32>
    %439 = math.absf %438 : vector<8x128xf32>
    %cst_159 = arith.constant 0.000000e+00 : f32
    %440 = vector.broadcast %cst_159 : f32 to vector<8x128xf32>
    %441 = arith.subf %440, %439 : vector<8x128xf32>
    %442 = math.exp %441 : vector<8x128xf32>
    %cst_160 = arith.constant 0.000000e+00 : f32
    %443 = vector.broadcast %cst_160 : f32 to vector<8x128xf32>
    %444 = arith.cmpf oge, %438, %443 : vector<8x128xf32>
    %cst_161 = arith.constant 1.000000e+00 : f32
    %445 = vector.broadcast %cst_161 : f32 to vector<8x128xf32>
    %446 = arith.select %444, %442, %445 : vector<8x128xi1>, vector<8x128xf32>
    %cst_162 = arith.constant 1.000000e+00 : f32
    %447 = vector.broadcast %cst_162 : f32 to vector<8x128xf32>
    %448 = arith.select %444, %447, %442 : vector<8x128xi1>, vector<8x128xf32>
    %449 = arith.mulf %446, %427 : vector<8x128xf32>
    %450 = arith.mulf %448, %436 : vector<8x128xf32>
    %451 = arith.addf %449, %450 : vector<8x128xf32>
    %452 = arith.mulf %446, %429 : vector<8x128xf32>
    %453 = arith.addf %452, %448 : vector<8x128xf32>
    %454 = tpu.reciprocal %453 {approx = true} : vector<8x128xf32> -> vector<8x128xf32>
    %455 = arith.mulf %451, %454 : vector<8x128xf32>
    %456 = arith.index_cast %c7_i32 : i32 to index
    %c0_163 = arith.constant 0 : index
    %c0_164 = arith.constant 0 : index
    %457 = vector.load %arg20[%456, %c0_163, %c0_164] : memref<8x8x128xbf16, #tpu.memory_space<vmem>>, vector<1x8x128xbf16>
    %458 = vector.shape_cast %457 : vector<1x8x128xbf16> to vector<8x128xbf16>
    %459 = arith.extf %458 : vector<8x128xbf16> to vector<8x128xf32>
    %460 = arith.mulf %455, %459 : vector<8x128xf32>
    %461 = arith.truncf %460 : vector<8x128xf32> to vector<8x128xbf16>
    %462 = arith.index_cast %c7_i32 : i32 to index
    %c0_165 = arith.constant 0 : index
    %c0_166 = arith.constant 0 : index
    %463 = vector.load %arg20[%462, %c0_165, %c0_166] : memref<8x8x128xbf16, #tpu.memory_space<vmem>>, vector<1x8x128xbf16>
    %464 = vector.shape_cast %463 : vector<1x8x128xbf16> to vector<8x128xbf16>
    %465 = vector.shape_cast %461 : vector<8x128xbf16> to vector<1x8x128xbf16>
    tpu.vector_store %arg20[%462, %c0_165, %c0_166], %465 {strides = array<i32>} : memref<8x8x128xbf16, #tpu.memory_space<vmem>>, vector<1x8x128xbf16>,
    %466 = arith.subf %430, %53 : vector<8x128xf32>
    %467 = arith.subf %433, %466 : vector<8x128xf32>
    %468 = math.absf %467 : vector<8x128xf32>
    %cst_167 = arith.constant 0.000000e+00 : f32
    %469 = vector.broadcast %cst_167 : f32 to vector<8x128xf32>
    %470 = arith.subf %469, %468 : vector<8x128xf32>
    %471 = math.exp %470 : vector<8x128xf32>
    %cst_168 = arith.constant 0.000000e+00 : f32
    %472 = vector.broadcast %cst_168 : f32 to vector<8x128xf32>
    %473 = arith.cmpf oge, %467, %472 : vector<8x128xf32>
    %cst_169 = arith.constant 1.000000e+00 : f32
    %474 = vector.broadcast %cst_169 : f32 to vector<8x128xf32>
    %475 = arith.select %473, %471, %474 : vector<8x128xi1>, vector<8x128xf32>
    %cst_170 = arith.constant 1.000000e+00 : f32
    %476 = vector.broadcast %cst_170 : f32 to vector<8x128xf32>
    %477 = arith.select %473, %476, %471 : vector<8x128xi1>, vector<8x128xf32>
    %478 = arith.mulf %475, %427 : vector<8x128xf32>
    %479 = arith.mulf %477, %436 : vector<8x128xf32>
    %480 = arith.addf %478, %479 : vector<8x128xf32>
    %481 = arith.mulf %475, %429 : vector<8x128xf32>
    %482 = arith.addf %481, %477 : vector<8x128xf32>
    %483 = arith.maximumf %466, %433 : vector<8x128xf32>
    %c8_i32 = arith.constant 8 : i32
    %c0_171 = arith.constant 0 : index
    %c0_172 = arith.constant 0 : index
    %c0_173 = arith.constant 0 : index
    %484 = vector.load %arg20[%c0_171, %c0_172, %c0_173] : memref<8x8x128xbf16, #tpu.memory_space<vmem>>, vector<8x8x128xbf16>
    %485 = vector.shape_cast %484 : vector<8x8x128xbf16> to vector<64x128xbf16>
    %c0_174 = arith.constant 0 : index
    %c0_175 = arith.constant 0 : index
    %486 = vector.load %arg8[%c0_174, %c0_175] : memref<128x128xbf16, #tpu.memory_space<vmem>>, vector<128x128xbf16>
    %cst_176 = arith.constant dense<0.000000e+00> : vector<64x128xf32>
    %487 = tpu.matmul %485, %486, %cst_176 {dimension_numbers = #tpu.dot_dimension_numbers<[1], [0], [0], [1], [0, 0, 1, 1], [], []>} : vector<64x128xbf16>, vector<128x128xbf16>, vector<64x128xf32> -> vector<64x128xf32>
    %488 = vector.shape_cast %487 : vector<64x128xf32> to vector<8x8x128xf32>
    %c0_177 = arith.constant 0 : index
    %c0_178 = arith.constant 0 : index
    %c0_179 = arith.constant 0 : index
    %489 = vector.load %arg14[%c0_177, %c0_178, %c0_179] : memref<8x8x128xf32, #tpu.memory_space<vmem>>, vector<8x8x128xf32>
    tpu.vector_store %arg14[%c0_177, %c0_178, %c0_179], %488 {strides = array<i32>} : memref<8x8x128xf32, #tpu.memory_space<vmem>>, vector<8x8x128xf32>,
    %c0_180 = arith.constant 0 : index
    %c0_181 = arith.constant 0 : index
    %c0_182 = arith.constant 0 : index
    %490 = vector.load %arg17[%c0_180, %c0_181, %c0_182] : memref<4x8x128xf32, #tpu.memory_space<vmem>>, vector<1x8x128xf32>
    %491 = vector.shape_cast %490 : vector<1x8x128xf32> to vector<8x128xf32>
    %492 = vector.shape_cast %480 : vector<8x128xf32> to vector<1x8x128xf32>
    tpu.vector_store %arg17[%c0_180, %c0_181, %c0_182], %492 {strides = array<i32>} : memref<4x8x128xf32, #tpu.memory_space<vmem>>, vector<1x8x128xf32>,
    %c1_183 = arith.constant 1 : index
    %c0_184 = arith.constant 0 : index
    %c0_185 = arith.constant 0 : index
    %493 = vector.load %arg17[%c1_183, %c0_184, %c0_185] : memref<4x8x128xf32, #tpu.memory_space<vmem>>, vector<1x8x128xf32>
    %494 = vector.shape_cast %493 : vector<1x8x128xf32> to vector<8x128xf32>
    %495 = vector.shape_cast %482 : vector<8x128xf32> to vector<1x8x128xf32>
    tpu.vector_store %arg17[%c1_183, %c0_184, %c0_185], %495 {strides = array<i32>} : memref<4x8x128xf32, #tpu.memory_space<vmem>>, vector<1x8x128xf32>,
    %c2_186 = arith.constant 2 : index
    %c0_187 = arith.constant 0 : index
    %c0_188 = arith.constant 0 : index
    %496 = vector.load %arg17[%c2_186, %c0_187, %c0_188] : memref<4x8x128xf32, #tpu.memory_space<vmem>>, vector<1x8x128xf32>
    %497 = vector.shape_cast %496 : vector<1x8x128xf32> to vector<8x128xf32>
    %498 = vector.shape_cast %483 : vector<8x128xf32> to vector<1x8x128xf32>
    tpu.vector_store %arg17[%c2_186, %c0_187, %c0_188], %498 {strides = array<i32>} : memref<4x8x128xf32, #tpu.memory_space<vmem>>, vector<1x8x128xf32>,
    %499 = vector.extract_strided_slice %3 {offsets = [7, 0, 0], sizes = [1, 8, 128], strides = [1, 1, 1]} : vector<8x8x128xf32> to vector<1x8x128xf32>
    %500 = vector.shape_cast %499 : vector<1x8x128xf32> to vector<8x128xf32>
    %c3_189 = arith.constant 3 : index
    %c0_190 = arith.constant 0 : index
    %c0_191 = arith.constant 0 : index
    %501 = vector.load %arg17[%c3_189, %c0_190, %c0_191] : memref<4x8x128xf32, #tpu.memory_space<vmem>>, vector<1x8x128xf32>
    %502 = vector.shape_cast %501 : vector<1x8x128xf32> to vector<8x128xf32>
    %503 = vector.shape_cast %500 : vector<8x128xf32> to vector<1x8x128xf32>
    tpu.vector_store %arg17[%c3_189, %c0_190, %c0_191], %503 {strides = array<i32>} : memref<4x8x128xf32, #tpu.memory_space<vmem>>, vector<1x8x128xf32>,
    %c1_i32_192 = arith.constant 1 : i32
    %504 = arith.cmpi eq, %arg1, %c1_i32_192 : i32
    %505 = arith.extui %504 : i1 to i32
    %c0_i32_193 = arith.constant 0 : i32
    %506 = arith.cmpi ne, %505, %c0_i32_193 : i32
    scf.if %506 {
      %507 = vector.extract_strided_slice %3 {offsets = [7, 0, 0], sizes = [1, 8, 128], strides = [1, 1, 1]} : vector<8x8x128xf32> to vector<1x8x128xf32>
      %508 = vector.shape_cast %507 : vector<1x8x128xf32> to vector<8x128xf32>
      %c0_194 = arith.constant 0 : index
      %c0_195 = arith.constant 0 : index
      %c0_196 = arith.constant 0 : index
      %509 = vector.load %arg15[%c0_194, %c0_195, %c0_196] : memref<1x8x128xf32, #tpu.memory_space<vmem>>, vector<1x8x128xf32>
      %510 = vector.shape_cast %509 : vector<1x8x128xf32> to vector<8x128xf32>
      %511 = vector.shape_cast %508 : vector<8x128xf32> to vector<1x8x128xf32>
      tpu.vector_store %arg15[%c0_194, %c0_195, %c0_196], %511 {strides = array<i32>} : memref<1x8x128xf32, #tpu.memory_space<vmem>>, vector<1x8x128xf32>,
      %c0_197 = arith.constant 0 : index
      %c0_198 = arith.constant 0 : index
      %c0_199 = arith.constant 0 : index
      %512 = vector.load %arg16[%c0_197, %c0_198, %c0_199] : memref<3x8x128xf32, #tpu.memory_space<vmem>>, vector<1x8x128xf32>
      %513 = vector.shape_cast %512 : vector<1x8x128xf32> to vector<8x128xf32>
      %514 = vector.shape_cast %480 : vector<8x128xf32> to vector<1x8x128xf32>
      tpu.vector_store %arg16[%c0_197, %c0_198, %c0_199], %514 {strides = array<i32>} : memref<3x8x128xf32, #tpu.memory_space<vmem>>, vector<1x8x128xf32>,
      %c1_200 = arith.constant 1 : index
      %c0_201 = arith.constant 0 : index
      %c0_202 = arith.constant 0 : index
      %515 = vector.load %arg16[%c1_200, %c0_201, %c0_202] : memref<3x8x128xf32, #tpu.memory_space<vmem>>, vector<1x8x128xf32>
      %516 = vector.shape_cast %515 : vector<1x8x128xf32> to vector<8x128xf32>
      %517 = vector.shape_cast %482 : vector<8x128xf32> to vector<1x8x128xf32>
      tpu.vector_store %arg16[%c1_200, %c0_201, %c0_202], %517 {strides = array<i32>} : memref<3x8x128xf32, #tpu.memory_space<vmem>>, vector<1x8x128xf32>,
      %c2_203 = arith.constant 2 : index
      %c0_204 = arith.constant 0 : index
      %c0_205 = arith.constant 0 : index
      %518 = vector.load %arg16[%c2_203, %c0_204, %c0_205] : memref<3x8x128xf32, #tpu.memory_space<vmem>>, vector<1x8x128xf32>
      %519 = vector.shape_cast %518 : vector<1x8x128xf32> to vector<8x128xf32>
      %520 = vector.shape_cast %483 : vector<8x128xf32> to vector<1x8x128xf32>
      tpu.vector_store %arg16[%c2_203, %c0_204, %c0_205], %520 {strides = array<i32>} : memref<3x8x128xf32, #tpu.memory_space<vmem>>, vector<1x8x128xf32>,
    } else {
    }
    return
  }
  func.func @transform_0(%arg0: i32, %arg1: i32) -> (i32, i32, i32) {
    %c0_i32 = arith.constant 0 : i32
    %c0_i32_0 = arith.constant 0 : i32
    return %arg1, %arg0, %c0_i32 : i32, i32, i32
  }
  func.func @transform_1(%arg0: i32, %arg1: i32) -> (i32, i32, i32) {
    %c0_i32 = arith.constant 0 : i32
    %c0_i32_0 = arith.constant 0 : i32
    %c0_i32_1 = arith.constant 0 : i32
    return %c0_i32, %arg0, %c0_i32_0 : i32, i32, i32
  }
  func.func @transform_2(%arg0: i32, %arg1: i32) -> (i32, i32, i32) {
    %c0_i32 = arith.constant 0 : i32
    %c0_i32_0 = arith.constant 0 : i32
    %c0_i32_1 = arith.constant 0 : i32
    return %c0_i32, %arg0, %c0_i32_0 : i32, i32, i32
  }
  func.func @transform_3(%arg0: i32, %arg1: i32) -> (i32, i32) {
    %c0_i32 = arith.constant 0 : i32
    %c0_i32_0 = arith.constant 0 : i32
    %c0_i32_1 = arith.constant 0 : i32
    return %c0_i32, %c0_i32_0 : i32, i32
  }
  func.func @transform_4(%arg0: i32, %arg1: i32) -> (i32, i32) {
    %c0_i32 = arith.constant 0 : i32
    %c0_i32_0 = arith.constant 0 : i32
    %c0_i32_1 = arith.constant 0 : i32
    return %c0_i32, %c0_i32_0 : i32, i32
  }
  func.func @transform_5(%arg0: i32, %arg1: i32) -> (i32, i32) {
    %c0_i32 = arith.constant 0 : i32
    %c0_i32_0 = arith.constant 0 : i32
    %c0_i32_1 = arith.constant 0 : i32
    return %c0_i32, %c0_i32_0 : i32, i32
  }
  func.func @transform_6(%arg0: i32, %arg1: i32) -> (i32, i32) {
    %c0_i32 = arith.constant 0 : i32
    %c0_i32_0 = arith.constant 0 : i32
    %c0_i32_1 = arith.constant 0 : i32
    return %c0_i32, %c0_i32_0 : i32, i32
  }
  func.func @transform_7(%arg0: i32, %arg1: i32) -> (i32, i32) {
    %c0_i32 = arith.constant 0 : i32
    %c0_i32_0 = arith.constant 0 : i32
    %c0_i32_1 = arith.constant 0 : i32
    return %c0_i32, %c0_i32_0 : i32, i32
  }
  func.func @transform_8(%arg0: i32, %arg1: i32) -> (i32, i32) {
    %c0_i32 = arith.constant 0 : i32
    %c0_i32_0 = arith.constant 0 : i32
    %c0_i32_1 = arith.constant 0 : i32
    return %c0_i32, %c0_i32_0 : i32, i32
  }
  func.func @transform_9(%arg0: i32, %arg1: i32) -> (i32, i32) {
    %c0_i32 = arith.constant 0 : i32
    %c0_i32_0 = arith.constant 0 : i32
    %c0_i32_1 = arith.constant 0 : i32
    return %c0_i32, %c0_i32_0 : i32, i32
  }
  func.func @transform_10(%arg0: i32, %arg1: i32) -> (i32, i32) {
    %c0_i32 = arith.constant 0 : i32
    %c0_i32_0 = arith.constant 0 : i32
    %c0_i32_1 = arith.constant 0 : i32
    return %c0_i32, %c0_i32_0 : i32, i32
  }
  func.func @transform_11(%arg0: i32, %arg1: i32) -> (i32, i32) {
    %c0_i32 = arith.constant 0 : i32
    %c0_i32_0 = arith.constant 0 : i32
    %c0_i32_1 = arith.constant 0 : i32
    return %c0_i32, %c0_i32_0 : i32, i32
  }
  func.func @transform_12(%arg0: i32, %arg1: i32) -> (i32, i32, i32) {
    %c0_i32 = arith.constant 0 : i32
    %c0_i32_0 = arith.constant 0 : i32
    return %arg1, %arg0, %c0_i32 : i32, i32, i32
  }
  func.func @transform_13(%arg0: i32, %arg1: i32) -> (i32, i32, i32) {
    %c0_i32 = arith.constant 0 : i32
    %c0_i32_0 = arith.constant 0 : i32
    %c0_i32_1 = arith.constant 0 : i32
    return %c0_i32, %arg0, %c0_i32_0 : i32, i32, i32
  }
  func.func @transform_14(%arg0: i32, %arg1: i32) -> (i32, i32, i32) {
    %c0_i32 = arith.constant 0 : i32
    %c0_i32_0 = arith.constant 0 : i32
    %c0_i32_1 = arith.constant 0 : i32
    return %c0_i32, %arg0, %c0_i32_0 : i32, i32, i32
  }
}

module attributes {stable_mosaic.version = 11 : i64} {
  func.func @_attention_kernel(%arg0: i32, %arg1: i32, %arg2: memref<8x8x128xf32, #tpu.memory_space<vmem>>, %arg3: memref<1x8x128xf32, #tpu.memory_space<vmem>>, %arg4: memref<3x8x128xf32, #tpu.memory_space<vmem>>, %arg5: memref<128x128xbf16, #tpu.memory_space<vmem>>, %arg6: memref<128x128xbf16, #tpu.memory_space<vmem>>, %arg7: memref<128x128xbf16, #tpu.memory_space<vmem>>, %arg8: memref<128x128xbf16, #tpu.memory_space<vmem>>, %arg9: memref<1x128xf32, #tpu.memory_space<vmem>>, %arg10: memref<1x128xf32, #tpu.memory_space<vmem>>, %arg11: memref<1x128xf32, #tpu.memory_space<vmem>>, %arg12: memref<1x128xf32, #tpu.memory_space<vmem>>, %arg13: memref<1x128xf32, #tpu.memory_space<vmem>>, %arg14: memref<8x8x128xf32, #tpu.memory_space<vmem>>, %arg15: memref<1x8x128xf32, #tpu.memory_space<vmem>>, %arg16: memref<3x8x128xf32, #tpu.memory_space<vmem>>, %arg17: memref<4x8x128xf32, #tpu.memory_space<vmem>>, %arg18: memref<8x8x128xf32, #tpu.memory_space<vmem>>, %arg19: memref<8x8x128xf32, #tpu.memory_space<vmem>>, %arg20: memref<8x8x128xbf16, #tpu.memory_space<vmem>>) attributes {dimension_semantics = [#tpu.dimension_semantics<parallel>, #tpu.dimension_semantics<arbitrary>], iteration_bounds = array<i64: 2, 2>, scalar_prefetch = 0 : i64, scratch_operands = 4 : i64, tpu.core_type = #tpu.core_type<tc>, window_params = [{transform_indices = @transform_0, window_bounds = array<i64: 8, 8, 128>}, {transform_indices = @transform_1, window_bounds = array<i64: 1, 8, 128>}, {transform_indices = @transform_2, window_bounds = array<i64: 3, 8, 128>}, {pipeline_mode = #tpu.pipeline_mode<synchronous>, transform_indices = @transform_3, window_bounds = array<i64: 128, 128>}, {pipeline_mode = #tpu.pipeline_mode<synchronous>, transform_indices = @transform_4, window_bounds = array<i64: 128, 128>}, {pipeline_mode = #tpu.pipeline_mode<synchronous>, transform_indices = @transform_5, window_bounds = array<i64: 128, 128>}, {pipeline_mode = #tpu.pipeline_mode<synchronous>, transform_indices = @transform_6, window_bounds = array<i64: 128, 128>}, {pipeline_mode = #tpu.pipeline_mode<synchronous>, transform_indices = @transform_7, window_bounds = array<i64: 1, 128>}, {pipeline_mode = #tpu.pipeline_mode<synchronous>, transform_indices = @transform_8, window_bounds = array<i64: 1, 128>}, {pipeline_mode = #tpu.pipeline_mode<synchronous>, transform_indices = @transform_9, window_bounds = array<i64: 1, 128>}, {pipeline_mode = #tpu.pipeline_mode<synchronous>, transform_indices = @transform_10, window_bounds = array<i64: 1, 128>}, {pipeline_mode = #tpu.pipeline_mode<synchronous>, transform_indices = @transform_11, window_bounds = array<i64: 1, 128>}, {transform_indices = @transform_12, window_bounds = array<i64: 8, 8, 128>}, {transform_indices = @transform_13, window_bounds = array<i64: 1, 8, 128>}, {transform_indices = @transform_14, window_bounds = array<i64: 3, 8, 128>}]} {
    %c0_i32 = arith.constant 0 : i32
    %0 = arith.cmpi eq, %arg1, %c0_i32 : i32
    %1 = arith.extui %0 : i1 to i32
    %c0_i32_0 = arith.constant 0 : i32
    %2 = arith.cmpi ne, %1, %c0_i32_0 : i32
    scf.if %2 {
      %c0_194 = arith.constant 0 : index
      %c0_195 = arith.constant 0 : index
      %c0_196 = arith.constant 0 : index
      %507 = vector.load %arg4[%c0_194, %c0_195, %c0_196] : memref<3x8x128xf32, #tpu.memory_space<vmem>>, vector<1x8x128xf32>
      %508 = vector.shape_cast %507 : vector<1x8x128xf32> to vector<8x128xf32>
      %c0_197 = arith.constant 0 : index
      %c0_198 = arith.constant 0 : index
      %c0_199 = arith.constant 0 : index
      %509 = vector.load %arg17[%c0_197, %c0_198, %c0_199] : memref<4x8x128xf32, #tpu.memory_space<vmem>>, vector<1x8x128xf32>
      %510 = vector.shape_cast %509 : vector<1x8x128xf32> to vector<8x128xf32>
      %511 = vector.shape_cast %508 : vector<8x128xf32> to vector<1x8x128xf32>
      tpu.vector_store %arg17[%c0_197, %c0_198, %c0_199], %511 {strides = array<i32>} : memref<4x8x128xf32, #tpu.memory_space<vmem>>, vector<1x8x128xf32>,
      %c1_200 = arith.constant 1 : index
      %c0_201 = arith.constant 0 : index
      %c0_202 = arith.constant 0 : index
      %512 = vector.load %arg4[%c1_200, %c0_201, %c0_202] : memref<3x8x128xf32, #tpu.memory_space<vmem>>, vector<1x8x128xf32>
      %513 = vector.shape_cast %512 : vector<1x8x128xf32> to vector<8x128xf32>
      %c1_203 = arith.constant 1 : index
      %c0_204 = arith.constant 0 : index
      %c0_205 = arith.constant 0 : index
      %514 = vector.load %arg17[%c1_203, %c0_204, %c0_205] : memref<4x8x128xf32, #tpu.memory_space<vmem>>, vector<1x8x128xf32>
      %515 = vector.shape_cast %514 : vector<1x8x128xf32> to vector<8x128xf32>
      %516 = vector.shape_cast %513 : vector<8x128xf32> to vector<1x8x128xf32>
      tpu.vector_store %arg17[%c1_203, %c0_204, %c0_205], %516 {strides = array<i32>} : memref<4x8x128xf32, #tpu.memory_space<vmem>>, vector<1x8x128xf32>,
      %c2_206 = arith.constant 2 : index
      %c0_207 = arith.constant 0 : index
      %c0_208 = arith.constant 0 : index
      %517 = vector.load %arg4[%c2_206, %c0_207, %c0_208] : memref<3x8x128xf32, #tpu.memory_space<vmem>>, vector<1x8x128xf32>
      %518 = vector.shape_cast %517 : vector<1x8x128xf32> to vector<8x128xf32>
      %c2_209 = arith.constant 2 : index
      %c0_210 = arith.constant 0 : index
      %c0_211 = arith.constant 0 : index
      %519 = vector.load %arg17[%c2_209, %c0_210, %c0_211] : memref<4x8x128xf32, #tpu.memory_space<vmem>>, vector<1x8x128xf32>
      %520 = vector.shape_cast %519 : vector<1x8x128xf32> to vector<8x128xf32>
      %521 = vector.shape_cast %518 : vector<8x128xf32> to vector<1x8x128xf32>
      tpu.vector_store %arg17[%c2_209, %c0_210, %c0_211], %521 {strides = array<i32>} : memref<4x8x128xf32, #tpu.memory_space<vmem>>, vector<1x8x128xf32>,
      %c0_212 = arith.constant 0 : index
      %c0_213 = arith.constant 0 : index
      %c0_214 = arith.constant 0 : index
      %522 = vector.load %arg3[%c0_212, %c0_213, %c0_214] : memref<1x8x128xf32, #tpu.memory_space<vmem>>, vector<1x8x128xf32>
      %523 = vector.shape_cast %522 : vector<1x8x128xf32> to vector<8x128xf32>
      %c3_215 = arith.constant 3 : index
      %c0_216 = arith.constant 0 : index
      %c0_217 = arith.constant 0 : index
      %524 = vector.load %arg17[%c3_215, %c0_216, %c0_217] : memref<4x8x128xf32, #tpu.memory_space<vmem>>, vector<1x8x128xf32>
      %525 = vector.shape_cast %524 : vector<1x8x128xf32> to vector<8x128xf32>
      %526 = vector.shape_cast %523 : vector<8x128xf32> to vector<1x8x128xf32>
      tpu.vector_store %arg17[%c3_215, %c0_216, %c0_217], %526 {strides = array<i32>} : memref<4x8x128xf32, #tpu.memory_space<vmem>>, vector<1x8x128xf32>,
    } else {
    }
    %c0 = arith.constant 0 : index
    %c0_1 = arith.constant 0 : index
    %c0_2 = arith.constant 0 : index
    %3 = vector.load %arg2[%c0, %c0_1, %c0_2] : memref<8x8x128xf32, #tpu.memory_space<vmem>>, vector<8x8x128xf32>
    %c3 = arith.constant 3 : index
    %c0_3 = arith.constant 0 : index
    %c0_4 = arith.constant 0 : index
    %4 = vector.load %arg17[%c3, %c0_3, %c0_4] : memref<4x8x128xf32, #tpu.memory_space<vmem>>, vector<1x8x128xf32>
    %5 = vector.shape_cast %4 : vector<1x8x128xf32> to vector<8x128xf32>
    %6 = vector.shape_cast %5 : vector<8x128xf32> to vector<1x8x128xf32>
    %7 = vector.extract_strided_slice %3 {offsets = [0, 0, 0], sizes = [7, 8, 128], strides = [1, 1, 1]} : vector<8x8x128xf32> to vector<7x8x128xf32>
    %8 = tpu.concatenate %6, %7 in 0 : vector<1x8x128xf32>, vector<7x8x128xf32> -> vector<8x8x128xf32>
    %9 = vector.shape_cast %3 : vector<8x8x128xf32> to vector<64x128xf32>
    %10 = vector.shape_cast %8 : vector<8x8x128xf32> to vector<64x128xf32>
    %11 = arith.subf %9, %10 : vector<64x128xf32>
    %c0_5 = arith.constant 0 : index
    %c0_6 = arith.constant 0 : index
    %12 = vector.load %arg11[%c0_5, %c0_6] : memref<1x128xf32, #tpu.memory_space<vmem>>, vector<1x128xf32>
    %13 = vector.broadcast %12 : vector<1x128xf32> to vector<64x128xf32>
    %14 = arith.mulf %11, %13 : vector<64x128xf32>
    %15 = arith.addf %10, %14 : vector<64x128xf32>
    %c0_7 = arith.constant 0 : index
    %c0_8 = arith.constant 0 : index
    %16 = vector.load %arg12[%c0_7, %c0_8] : memref<1x128xf32, #tpu.memory_space<vmem>>, vector<1x128xf32>
    %17 = vector.broadcast %16 : vector<1x128xf32> to vector<64x128xf32>
    %18 = arith.mulf %11, %17 : vector<64x128xf32>
    %19 = arith.addf %10, %18 : vector<64x128xf32>
    %c0_9 = arith.constant 0 : index
    %c0_10 = arith.constant 0 : index
    %20 = vector.load %arg13[%c0_9, %c0_10] : memref<1x128xf32, #tpu.memory_space<vmem>>, vector<1x128xf32>
    %21 = vector.broadcast %20 : vector<1x128xf32> to vector<64x128xf32>
    %22 = arith.mulf %11, %21 : vector<64x128xf32>
    %23 = arith.addf %10, %22 : vector<64x128xf32>
    %24 = arith.truncf %15 : vector<64x128xf32> to vector<64x128xbf16>
    %c0_11 = arith.constant 0 : index
    %c0_12 = arith.constant 0 : index
    %25 = vector.load %arg5[%c0_11, %c0_12] : memref<128x128xbf16, #tpu.memory_space<vmem>>, vector<128x128xbf16>
    %cst = arith.constant dense<0.000000e+00> : vector<64x128xf32>
    %26 = tpu.matmul %24, %25, %cst {dimension_numbers = #tpu.dot_dimension_numbers<[1], [0], [0], [1], [0, 0, 1, 1], [], []>} : vector<64x128xbf16>, vector<128x128xbf16>, vector<64x128xf32> -> vector<64x128xf32>
    %27 = arith.truncf %19 : vector<64x128xf32> to vector<64x128xbf16>
    %c0_13 = arith.constant 0 : index
    %c0_14 = arith.constant 0 : index
    %28 = vector.load %arg6[%c0_13, %c0_14] : memref<128x128xbf16, #tpu.memory_space<vmem>>, vector<128x128xbf16>
    %cst_15 = arith.constant dense<0.000000e+00> : vector<64x128xf32>
    %29 = tpu.matmul %27, %28, %cst_15 {dimension_numbers = #tpu.dot_dimension_numbers<[1], [0], [0], [1], [0, 0, 1, 1], [], []>} : vector<64x128xbf16>, vector<128x128xbf16>, vector<64x128xf32> -> vector<64x128xf32>
    %30 = arith.truncf %23 : vector<64x128xf32> to vector<64x128xbf16>
    %c0_16 = arith.constant 0 : index
    %c0_17 = arith.constant 0 : index
    %31 = vector.load %arg7[%c0_16, %c0_17] : memref<128x128xbf16, #tpu.memory_space<vmem>>, vector<128x128xbf16>
    %cst_18 = arith.constant dense<0.000000e+00> : vector<64x128xf32>
    %32 = tpu.matmul %30, %31, %cst_18 {dimension_numbers = #tpu.dot_dimension_numbers<[1], [0], [0], [1], [0, 0, 1, 1], [], []>} : vector<64x128xbf16>, vector<128x128xbf16>, vector<64x128xf32> -> vector<64x128xf32>
    %33 = vector.shape_cast %26 : vector<64x128xf32> to vector<8x8x128xf32>
    %c0_19 = arith.constant 0 : index
    %c0_20 = arith.constant 0 : index
    %c0_21 = arith.constant 0 : index
    %34 = vector.load %arg18[%c0_19, %c0_20, %c0_21] : memref<8x8x128xf32, #tpu.memory_space<vmem>>, vector<8x8x128xf32>
    tpu.vector_store %arg18[%c0_19, %c0_20, %c0_21], %33 {strides = array<i32>} : memref<8x8x128xf32, #tpu.memory_space<vmem>>, vector<8x8x128xf32>,
    %35 = vector.shape_cast %29 : vector<64x128xf32> to vector<8x8x128xf32>
    %c0_22 = arith.constant 0 : index
    %c0_23 = arith.constant 0 : index
    %c0_24 = arith.constant 0 : index
    %36 = vector.load %arg19[%c0_22, %c0_23, %c0_24] : memref<8x8x128xf32, #tpu.memory_space<vmem>>, vector<8x8x128xf32>
    tpu.vector_store %arg19[%c0_22, %c0_23, %c0_24], %35 {strides = array<i32>} : memref<8x8x128xf32, #tpu.memory_space<vmem>>, vector<8x8x128xf32>,
    %cst_25 = arith.constant 0.000000e+00 : f32
    %37 = vector.broadcast %cst_25 : f32 to vector<64x128xf32>
    %38 = arith.subf %37, %32 : vector<64x128xf32>
    %39 = math.exp %38 : vector<64x128xf32>
    %cst_26 = arith.constant 1.000000e+00 : f32
    %40 = vector.broadcast %cst_26 : f32 to vector<64x128xf32>
    %41 = arith.addf %40, %39 : vector<64x128xf32>
    %cst_27 = arith.constant 1.000000e+00 : f32
    %42 = vector.broadcast %cst_27 : f32 to vector<64x128xf32>
    %43 = arith.divf %42, %41 : vector<64x128xf32>
    %44 = vector.shape_cast %43 : vector<64x128xf32> to vector<8x8x128xf32>
    %45 = arith.truncf %44 : vector<8x8x128xf32> to vector<8x8x128xbf16>
    %c0_28 = arith.constant 0 : index
    %c0_29 = arith.constant 0 : index
    %c0_30 = arith.constant 0 : index
    %46 = vector.load %arg20[%c0_28, %c0_29, %c0_30] : memref<8x8x128xbf16, #tpu.memory_space<vmem>>, vector<8x8x128xbf16>
    tpu.vector_store %arg20[%c0_28, %c0_29, %c0_30], %45 {strides = array<i32>} : memref<8x8x128xbf16, #tpu.memory_space<vmem>>, vector<8x8x128xbf16>,
    %c0_31 = arith.constant 0 : index
    %c0_32 = arith.constant 0 : index
    %47 = vector.load %arg10[%c0_31, %c0_32] : memref<1x128xf32, #tpu.memory_space<vmem>>, vector<1x128xf32>
    %48 = vector.shape_cast %47 : vector<1x128xf32> to vector<1x128xf32>
    %49 = vector.broadcast %48 : vector<1x128xf32> to vector<8x128xf32>
    %c0_33 = arith.constant 0 : index
    %c0_34 = arith.constant 0 : index
    %50 = vector.load %arg9[%c0_33, %c0_34] : memref<1x128xf32, #tpu.memory_space<vmem>>, vector<1x128xf32>
    %51 = math.exp %50 : vector<1x128xf32>
    %52 = vector.shape_cast %51 : vector<1x128xf32> to vector<1x128xf32>
    %53 = vector.broadcast %52 : vector<1x128xf32> to vector<8x128xf32>
    %c0_35 = arith.constant 0 : index
    %c0_36 = arith.constant 0 : index
    %c0_37 = arith.constant 0 : index
    %54 = vector.load %arg17[%c0_35, %c0_36, %c0_37] : memref<4x8x128xf32, #tpu.memory_space<vmem>>, vector<1x8x128xf32>
    %55 = vector.shape_cast %54 : vector<1x8x128xf32> to vector<8x128xf32>
    %c1 = arith.constant 1 : index
    %c0_38 = arith.constant 0 : index
    %c0_39 = arith.constant 0 : index
    %56 = vector.load %arg17[%c1, %c0_38, %c0_39] : memref<4x8x128xf32, #tpu.memory_space<vmem>>, vector<1x8x128xf32>
    %57 = vector.shape_cast %56 : vector<1x8x128xf32> to vector<8x128xf32>
    %c2 = arith.constant 2 : index
    %c0_40 = arith.constant 0 : index
    %c0_41 = arith.constant 0 : index
    %58 = vector.load %arg17[%c2, %c0_40, %c0_41] : memref<4x8x128xf32, #tpu.memory_space<vmem>>, vector<1x8x128xf32>
    %59 = vector.shape_cast %58 : vector<1x8x128xf32> to vector<8x128xf32>
    %c0_i32_42 = arith.constant 0 : i32
    %60 = arith.index_cast %c0_i32_42 : i32 to index
    %c0_43 = arith.constant 0 : index
    %c0_44 = arith.constant 0 : index
    %61 = vector.load %arg18[%60, %c0_43, %c0_44] : memref<8x8x128xf32, #tpu.memory_space<vmem>>, vector<1x8x128xf32>
    %62 = vector.shape_cast %61 : vector<1x8x128xf32> to vector<8x128xf32>
    %63 = arith.index_cast %c0_i32_42 : i32 to index
    %c0_45 = arith.constant 0 : index
    %c0_46 = arith.constant 0 : index
    %64 = vector.load %arg19[%63, %c0_45, %c0_46] : memref<8x8x128xf32, #tpu.memory_space<vmem>>, vector<1x8x128xf32>
    %65 = vector.shape_cast %64 : vector<1x8x128xf32> to vector<8x128xf32>
    %66 = arith.addf %62, %49 : vector<8x128xf32>
    %67 = arith.subf %66, %59 : vector<8x128xf32>
    %68 = math.absf %67 : vector<8x128xf32>
    %cst_47 = arith.constant 0.000000e+00 : f32
    %69 = vector.broadcast %cst_47 : f32 to vector<8x128xf32>
    %70 = arith.subf %69, %68 : vector<8x128xf32>
    %71 = math.exp %70 : vector<8x128xf32>
    %cst_48 = arith.constant 0.000000e+00 : f32
    %72 = vector.broadcast %cst_48 : f32 to vector<8x128xf32>
    %73 = arith.cmpf oge, %67, %72 : vector<8x128xf32>
    %cst_49 = arith.constant 1.000000e+00 : f32
    %74 = vector.broadcast %cst_49 : f32 to vector<8x128xf32>
    %75 = arith.select %73, %71, %74 : vector<8x128xi1>, vector<8x128xf32>
    %cst_50 = arith.constant 1.000000e+00 : f32
    %76 = vector.broadcast %cst_50 : f32 to vector<8x128xf32>
    %77 = arith.select %73, %76, %71 : vector<8x128xi1>, vector<8x128xf32>
    %78 = arith.mulf %75, %55 : vector<8x128xf32>
    %79 = arith.mulf %77, %65 : vector<8x128xf32>
    %80 = arith.addf %78, %79 : vector<8x128xf32>
    %81 = arith.mulf %75, %57 : vector<8x128xf32>
    %82 = arith.addf %81, %77 : vector<8x128xf32>
    %83 = tpu.reciprocal %82 {approx = true} : vector<8x128xf32> -> vector<8x128xf32>
    %84 = arith.mulf %80, %83 : vector<8x128xf32>
    %85 = arith.index_cast %c0_i32_42 : i32 to index
    %c0_51 = arith.constant 0 : index
    %c0_52 = arith.constant 0 : index
    %86 = vector.load %arg20[%85, %c0_51, %c0_52] : memref<8x8x128xbf16, #tpu.memory_space<vmem>>, vector<1x8x128xbf16>
    %87 = vector.shape_cast %86 : vector<1x8x128xbf16> to vector<8x128xbf16>
    %88 = arith.extf %87 : vector<8x128xbf16> to vector<8x128xf32>
    %89 = arith.mulf %84, %88 : vector<8x128xf32>
    %90 = arith.truncf %89 : vector<8x128xf32> to vector<8x128xbf16>
    %91 = arith.index_cast %c0_i32_42 : i32 to index
    %c0_53 = arith.constant 0 : index
    %c0_54 = arith.constant 0 : index
    %92 = vector.load %arg20[%91, %c0_53, %c0_54] : memref<8x8x128xbf16, #tpu.memory_space<vmem>>, vector<1x8x128xbf16>
    %93 = vector.shape_cast %92 : vector<1x8x128xbf16> to vector<8x128xbf16>
    %94 = vector.shape_cast %90 : vector<8x128xbf16> to vector<1x8x128xbf16>
    tpu.vector_store %arg20[%91, %c0_53, %c0_54], %94 {strides = array<i32>} : memref<8x8x128xbf16, #tpu.memory_space<vmem>>, vector<1x8x128xbf16>,
    %95 = arith.subf %59, %53 : vector<8x128xf32>
    %96 = arith.subf %62, %95 : vector<8x128xf32>
    %97 = math.absf %96 : vector<8x128xf32>
    %cst_55 = arith.constant 0.000000e+00 : f32
    %98 = vector.broadcast %cst_55 : f32 to vector<8x128xf32>
    %99 = arith.subf %98, %97 : vector<8x128xf32>
    %100 = math.exp %99 : vector<8x128xf32>
    %cst_56 = arith.constant 0.000000e+00 : f32
    %101 = vector.broadcast %cst_56 : f32 to vector<8x128xf32>
    %102 = arith.cmpf oge, %96, %101 : vector<8x128xf32>
    %cst_57 = arith.constant 1.000000e+00 : f32
    %103 = vector.broadcast %cst_57 : f32 to vector<8x128xf32>
    %104 = arith.select %102, %100, %103 : vector<8x128xi1>, vector<8x128xf32>
    %cst_58 = arith.constant 1.000000e+00 : f32
    %105 = vector.broadcast %cst_58 : f32 to vector<8x128xf32>
    %106 = arith.select %102, %105, %100 : vector<8x128xi1>, vector<8x128xf32>
    %107 = arith.mulf %104, %55 : vector<8x128xf32>
    %108 = arith.mulf %106, %65 : vector<8x128xf32>
    %109 = arith.addf %107, %108 : vector<8x128xf32>
    %110 = arith.mulf %104, %57 : vector<8x128xf32>
    %111 = arith.addf %110, %106 : vector<8x128xf32>
    %112 = arith.maximumf %95, %62 : vector<8x128xf32>
    %c1_i32 = arith.constant 1 : i32
    %113 = arith.index_cast %c1_i32 : i32 to index
    %c0_59 = arith.constant 0 : index
    %c0_60 = arith.constant 0 : index
    %114 = vector.load %arg18[%113, %c0_59, %c0_60] : memref<8x8x128xf32, #tpu.memory_space<vmem>>, vector<1x8x128xf32>
    %115 = vector.shape_cast %114 : vector<1x8x128xf32> to vector<8x128xf32>
    %116 = arith.index_cast %c1_i32 : i32 to index
    %c0_61 = arith.constant 0 : index
    %c0_62 = arith.constant 0 : index
    %117 = vector.load %arg19[%116, %c0_61, %c0_62] : memref<8x8x128xf32, #tpu.memory_space<vmem>>, vector<1x8x128xf32>
    %118 = vector.shape_cast %117 : vector<1x8x128xf32> to vector<8x128xf32>
    %119 = arith.addf %115, %49 : vector<8x128xf32>
    %120 = arith.subf %119, %112 : vector<8x128xf32>
    %121 = math.absf %120 : vector<8x128xf32>
    %cst_63 = arith.constant 0.000000e+00 : f32
    %122 = vector.broadcast %cst_63 : f32 to vector<8x128xf32>
    %123 = arith.subf %122, %121 : vector<8x128xf32>
    %124 = math.exp %123 : vector<8x128xf32>
    %cst_64 = arith.constant 0.000000e+00 : f32
    %125 = vector.broadcast %cst_64 : f32 to vector<8x128xf32>
    %126 = arith.cmpf oge, %120, %125 : vector<8x128xf32>
    %cst_65 = arith.constant 1.000000e+00 : f32
    %127 = vector.broadcast %cst_65 : f32 to vector<8x128xf32>
    %128 = arith.select %126, %124, %127 : vector<8x128xi1>, vector<8x128xf32>
    %cst_66 = arith.constant 1.000000e+00 : f32
    %129 = vector.broadcast %cst_66 : f32 to vector<8x128xf32>
    %130 = arith.select %126, %129, %124 : vector<8x128xi1>, vector<8x128xf32>
    %131 = arith.mulf %128, %109 : vector<8x128xf32>
    %132 = arith.mulf %130, %118 : vector<8x128xf32>
    %133 = arith.addf %131, %132 : vector<8x128xf32>
    %134 = arith.mulf %128, %111 : vector<8x128xf32>
    %135 = arith.addf %134, %130 : vector<8x128xf32>
    %136 = tpu.reciprocal %135 {approx = true} : vector<8x128xf32> -> vector<8x128xf32>
    %137 = arith.mulf %133, %136 : vector<8x128xf32>
    %138 = arith.index_cast %c1_i32 : i32 to index
    %c0_67 = arith.constant 0 : index
    %c0_68 = arith.constant 0 : index
    %139 = vector.load %arg20[%138, %c0_67, %c0_68] : memref<8x8x128xbf16, #tpu.memory_space<vmem>>, vector<1x8x128xbf16>
    %140 = vector.shape_cast %139 : vector<1x8x128xbf16> to vector<8x128xbf16>
    %141 = arith.extf %140 : vector<8x128xbf16> to vector<8x128xf32>
    %142 = arith.mulf %137, %141 : vector<8x128xf32>
    %143 = arith.truncf %142 : vector<8x128xf32> to vector<8x128xbf16>
    %144 = arith.index_cast %c1_i32 : i32 to index
    %c0_69 = arith.constant 0 : index
    %c0_70 = arith.constant 0 : index
    %145 = vector.load %arg20[%144, %c0_69, %c0_70] : memref<8x8x128xbf16, #tpu.memory_space<vmem>>, vector<1x8x128xbf16>
    %146 = vector.shape_cast %145 : vector<1x8x128xbf16> to vector<8x128xbf16>
    %147 = vector.shape_cast %143 : vector<8x128xbf16> to vector<1x8x128xbf16>
    tpu.vector_store %arg20[%144, %c0_69, %c0_70], %147 {strides = array<i32>} : memref<8x8x128xbf16, #tpu.memory_space<vmem>>, vector<1x8x128xbf16>,
    %148 = arith.subf %112, %53 : vector<8x128xf32>
    %149 = arith.subf %115, %148 : vector<8x128xf32>
    %150 = math.absf %149 : vector<8x128xf32>
    %cst_71 = arith.constant 0.000000e+00 : f32
    %151 = vector.broadcast %cst_71 : f32 to vector<8x128xf32>
    %152 = arith.subf %151, %150 : vector<8x128xf32>
    %153 = math.exp %152 : vector<8x128xf32>
    %cst_72 = arith.constant 0.000000e+00 : f32
    %154 = vector.broadcast %cst_72 : f32 to vector<8x128xf32>
    %155 = arith.cmpf oge, %149, %154 : vector<8x128xf32>
    %cst_73 = arith.constant 1.000000e+00 : f32
    %156 = vector.broadcast %cst_73 : f32 to vector<8x128xf32>
    %157 = arith.select %155, %153, %156 : vector<8x128xi1>, vector<8x128xf32>
    %cst_74 = arith.constant 1.000000e+00 : f32
    %158 = vector.broadcast %cst_74 : f32 to vector<8x128xf32>
    %159 = arith.select %155, %158, %153 : vector<8x128xi1>, vector<8x128xf32>
    %160 = arith.mulf %157, %109 : vector<8x128xf32>
    %161 = arith.mulf %159, %118 : vector<8x128xf32>
    %162 = arith.addf %160, %161 : vector<8x128xf32>
    %163 = arith.mulf %157, %111 : vector<8x128xf32>
    %164 = arith.addf %163, %159 : vector<8x128xf32>
    %165 = arith.maximumf %148, %115 : vector<8x128xf32>
    %c2_i32 = arith.constant 2 : i32
    %166 = arith.index_cast %c2_i32 : i32 to index
    %c0_75 = arith.constant 0 : index
    %c0_76 = arith.constant 0 : index
    %167 = vector.load %arg18[%166, %c0_75, %c0_76] : memref<8x8x128xf32, #tpu.memory_space<vmem>>, vector<1x8x128xf32>
    %168 = vector.shape_cast %167 : vector<1x8x128xf32> to vector<8x128xf32>
    %169 = arith.index_cast %c2_i32 : i32 to index
    %c0_77 = arith.constant 0 : index
    %c0_78 = arith.constant 0 : index
    %170 = vector.load %arg19[%169, %c0_77, %c0_78] : memref<8x8x128xf32, #tpu.memory_space<vmem>>, vector<1x8x128xf32>
    %171 = vector.shape_cast %170 : vector<1x8x128xf32> to vector<8x128xf32>
    %172 = arith.addf %168, %49 : vector<8x128xf32>
    %173 = arith.subf %172, %165 : vector<8x128xf32>
    %174 = math.absf %173 : vector<8x128xf32>
    %cst_79 = arith.constant 0.000000e+00 : f32
    %175 = vector.broadcast %cst_79 : f32 to vector<8x128xf32>
    %176 = arith.subf %175, %174 : vector<8x128xf32>
    %177 = math.exp %176 : vector<8x128xf32>
    %cst_80 = arith.constant 0.000000e+00 : f32
    %178 = vector.broadcast %cst_80 : f32 to vector<8x128xf32>
    %179 = arith.cmpf oge, %173, %178 : vector<8x128xf32>
    %cst_81 = arith.constant 1.000000e+00 : f32
    %180 = vector.broadcast %cst_81 : f32 to vector<8x128xf32>
    %181 = arith.select %179, %177, %180 : vector<8x128xi1>, vector<8x128xf32>
    %cst_82 = arith.constant 1.000000e+00 : f32
    %182 = vector.broadcast %cst_82 : f32 to vector<8x128xf32>
    %183 = arith.select %179, %182, %177 : vector<8x128xi1>, vector<8x128xf32>
    %184 = arith.mulf %181, %162 : vector<8x128xf32>
    %185 = arith.mulf %183, %171 : vector<8x128xf32>
    %186 = arith.addf %184, %185 : vector<8x128xf32>
    %187 = arith.mulf %181, %164 : vector<8x128xf32>
    %188 = arith.addf %187, %183 : vector<8x128xf32>
    %189 = tpu.reciprocal %188 {approx = true} : vector<8x128xf32> -> vector<8x128xf32>
    %190 = arith.mulf %186, %189 : vector<8x128xf32>
    %191 = arith.index_cast %c2_i32 : i32 to index
    %c0_83 = arith.constant 0 : index
    %c0_84 = arith.constant 0 : index
    %192 = vector.load %arg20[%191, %c0_83, %c0_84] : memref<8x8x128xbf16, #tpu.memory_space<vmem>>, vector<1x8x128xbf16>
    %193 = vector.shape_cast %192 : vector<1x8x128xbf16> to vector<8x128xbf16>
    %194 = arith.extf %193 : vector<8x128xbf16> to vector<8x128xf32>
    %195 = arith.mulf %190, %194 : vector<8x128xf32>
    %196 = arith.truncf %195 : vector<8x128xf32> to vector<8x128xbf16>
    %197 = arith.index_cast %c2_i32 : i32 to index
    %c0_85 = arith.constant 0 : index
    %c0_86 = arith.constant 0 : index
    %198 = vector.load %arg20[%197, %c0_85, %c0_86] : memref<8x8x128xbf16, #tpu.memory_space<vmem>>, vector<1x8x128xbf16>
    %199 = vector.shape_cast %198 : vector<1x8x128xbf16> to vector<8x128xbf16>
    %200 = vector.shape_cast %196 : vector<8x128xbf16> to vector<1x8x128xbf16>
    tpu.vector_store %arg20[%197, %c0_85, %c0_86], %200 {strides = array<i32>} : memref<8x8x128xbf16, #tpu.memory_space<vmem>>, vector<1x8x128xbf16>,
    %201 = arith.subf %165, %53 : vector<8x128xf32>
    %202 = arith.subf %168, %201 : vector<8x128xf32>
    %203 = math.absf %202 : vector<8x128xf32>
    %cst_87 = arith.constant 0.000000e+00 : f32
    %204 = vector.broadcast %cst_87 : f32 to vector<8x128xf32>
    %205 = arith.subf %204, %203 : vector<8x128xf32>
    %206 = math.exp %205 : vector<8x128xf32>
    %cst_88 = arith.constant 0.000000e+00 : f32
    %207 = vector.broadcast %cst_88 : f32 to vector<8x128xf32>
    %208 = arith.cmpf oge, %202, %207 : vector<8x128xf32>
    %cst_89 = arith.constant 1.000000e+00 : f32
    %209 = vector.broadcast %cst_89 : f32 to vector<8x128xf32>
    %210 = arith.select %208, %206, %209 : vector<8x128xi1>, vector<8x128xf32>
    %cst_90 = arith.constant 1.000000e+00 : f32
    %211 = vector.broadcast %cst_90 : f32 to vector<8x128xf32>
    %212 = arith.select %208, %211, %206 : vector<8x128xi1>, vector<8x128xf32>
    %213 = arith.mulf %210, %162 : vector<8x128xf32>
    %214 = arith.mulf %212, %171 : vector<8x128xf32>
    %215 = arith.addf %213, %214 : vector<8x128xf32>
    %216 = arith.mulf %210, %164 : vector<8x128xf32>
    %217 = arith.addf %216, %212 : vector<8x128xf32>
    %218 = arith.maximumf %201, %168 : vector<8x128xf32>
    %c3_i32 = arith.constant 3 : i32
    %219 = arith.index_cast %c3_i32 : i32 to index
    %c0_91 = arith.constant 0 : index
    %c0_92 = arith.constant 0 : index
    %220 = vector.load %arg18[%219, %c0_91, %c0_92] : memref<8x8x128xf32, #tpu.memory_space<vmem>>, vector<1x8x128xf32>
    %221 = vector.shape_cast %220 : vector<1x8x128xf32> to vector<8x128xf32>
    %222 = arith.index_cast %c3_i32 : i32 to index
    %c0_93 = arith.constant 0 : index
    %c0_94 = arith.constant 0 : index
    %223 = vector.load %arg19[%222, %c0_93, %c0_94] : memref<8x8x128xf32, #tpu.memory_space<vmem>>, vector<1x8x128xf32>
    %224 = vector.shape_cast %223 : vector<1x8x128xf32> to vector<8x128xf32>
    %225 = arith.addf %221, %49 : vector<8x128xf32>
    %226 = arith.subf %225, %218 : vector<8x128xf32>
    %227 = math.absf %226 : vector<8x128xf32>
    %cst_95 = arith.constant 0.000000e+00 : f32
    %228 = vector.broadcast %cst_95 : f32 to vector<8x128xf32>
    %229 = arith.subf %228, %227 : vector<8x128xf32>
    %230 = math.exp %229 : vector<8x128xf32>
    %cst_96 = arith.constant 0.000000e+00 : f32
    %231 = vector.broadcast %cst_96 : f32 to vector<8x128xf32>
    %232 = arith.cmpf oge, %226, %231 : vector<8x128xf32>
    %cst_97 = arith.constant 1.000000e+00 : f32
    %233 = vector.broadcast %cst_97 : f32 to vector<8x128xf32>
    %234 = arith.select %232, %230, %233 : vector<8x128xi1>, vector<8x128xf32>
    %cst_98 = arith.constant 1.000000e+00 : f32
    %235 = vector.broadcast %cst_98 : f32 to vector<8x128xf32>
    %236 = arith.select %232, %235, %230 : vector<8x128xi1>, vector<8x128xf32>
    %237 = arith.mulf %234, %215 : vector<8x128xf32>
    %238 = arith.mulf %236, %224 : vector<8x128xf32>
    %239 = arith.addf %237, %238 : vector<8x128xf32>
    %240 = arith.mulf %234, %217 : vector<8x128xf32>
    %241 = arith.addf %240, %236 : vector<8x128xf32>
    %242 = tpu.reciprocal %241 {approx = true} : vector<8x128xf32> -> vector<8x128xf32>
    %243 = arith.mulf %239, %242 : vector<8x128xf32>
    %244 = arith.index_cast %c3_i32 : i32 to index
    %c0_99 = arith.constant 0 : index
    %c0_100 = arith.constant 0 : index
    %245 = vector.load %arg20[%244, %c0_99, %c0_100] : memref<8x8x128xbf16, #tpu.memory_space<vmem>>, vector<1x8x128xbf16>
    %246 = vector.shape_cast %245 : vector<1x8x128xbf16> to vector<8x128xbf16>
    %247 = arith.extf %246 : vector<8x128xbf16> to vector<8x128xf32>
    %248 = arith.mulf %243, %247 : vector<8x128xf32>
    %249 = arith.truncf %248 : vector<8x128xf32> to vector<8x128xbf16>
    %250 = arith.index_cast %c3_i32 : i32 to index
    %c0_101 = arith.constant 0 : index
    %c0_102 = arith.constant 0 : index
    %251 = vector.load %arg20[%250, %c0_101, %c0_102] : memref<8x8x128xbf16, #tpu.memory_space<vmem>>, vector<1x8x128xbf16>
    %252 = vector.shape_cast %251 : vector<1x8x128xbf16> to vector<8x128xbf16>
    %253 = vector.shape_cast %249 : vector<8x128xbf16> to vector<1x8x128xbf16>
    tpu.vector_store %arg20[%250, %c0_101, %c0_102], %253 {strides = array<i32>} : memref<8x8x128xbf16, #tpu.memory_space<vmem>>, vector<1x8x128xbf16>,
    %254 = arith.subf %218, %53 : vector<8x128xf32>
    %255 = arith.subf %221, %254 : vector<8x128xf32>
    %256 = math.absf %255 : vector<8x128xf32>
    %cst_103 = arith.constant 0.000000e+00 : f32
    %257 = vector.broadcast %cst_103 : f32 to vector<8x128xf32>
    %258 = arith.subf %257, %256 : vector<8x128xf32>
    %259 = math.exp %258 : vector<8x128xf32>
    %cst_104 = arith.constant 0.000000e+00 : f32
    %260 = vector.broadcast %cst_104 : f32 to vector<8x128xf32>
    %261 = arith.cmpf oge, %255, %260 : vector<8x128xf32>
    %cst_105 = arith.constant 1.000000e+00 : f32
    %262 = vector.broadcast %cst_105 : f32 to vector<8x128xf32>
    %263 = arith.select %261, %259, %262 : vector<8x128xi1>, vector<8x128xf32>
    %cst_106 = arith.constant 1.000000e+00 : f32
    %264 = vector.broadcast %cst_106 : f32 to vector<8x128xf32>
    %265 = arith.select %261, %264, %259 : vector<8x128xi1>, vector<8x128xf32>
    %266 = arith.mulf %263, %215 : vector<8x128xf32>
    %267 = arith.mulf %265, %224 : vector<8x128xf32>
    %268 = arith.addf %266, %267 : vector<8x128xf32>
    %269 = arith.mulf %263, %217 : vector<8x128xf32>
    %270 = arith.addf %269, %265 : vector<8x128xf32>
    %271 = arith.maximumf %254, %221 : vector<8x128xf32>
    %c4_i32 = arith.constant 4 : i32
    %272 = arith.index_cast %c4_i32 : i32 to index
    %c0_107 = arith.constant 0 : index
    %c0_108 = arith.constant 0 : index
    %273 = vector.load %arg18[%272, %c0_107, %c0_108] : memref<8x8x128xf32, #tpu.memory_space<vmem>>, vector<1x8x128xf32>
    %274 = vector.shape_cast %273 : vector<1x8x128xf32> to vector<8x128xf32>
    %275 = arith.index_cast %c4_i32 : i32 to index
    %c0_109 = arith.constant 0 : index
    %c0_110 = arith.constant 0 : index
    %276 = vector.load %arg19[%275, %c0_109, %c0_110] : memref<8x8x128xf32, #tpu.memory_space<vmem>>, vector<1x8x128xf32>
    %277 = vector.shape_cast %276 : vector<1x8x128xf32> to vector<8x128xf32>
    %278 = arith.addf %274, %49 : vector<8x128xf32>
    %279 = arith.subf %278, %271 : vector<8x128xf32>
    %280 = math.absf %279 : vector<8x128xf32>
    %cst_111 = arith.constant 0.000000e+00 : f32
    %281 = vector.broadcast %cst_111 : f32 to vector<8x128xf32>
    %282 = arith.subf %281, %280 : vector<8x128xf32>
    %283 = math.exp %282 : vector<8x128xf32>
    %cst_112 = arith.constant 0.000000e+00 : f32
    %284 = vector.broadcast %cst_112 : f32 to vector<8x128xf32>
    %285 = arith.cmpf oge, %279, %284 : vector<8x128xf32>
    %cst_113 = arith.constant 1.000000e+00 : f32
    %286 = vector.broadcast %cst_113 : f32 to vector<8x128xf32>
    %287 = arith.select %285, %283, %286 : vector<8x128xi1>, vector<8x128xf32>
    %cst_114 = arith.constant 1.000000e+00 : f32
    %288 = vector.broadcast %cst_114 : f32 to vector<8x128xf32>
    %289 = arith.select %285, %288, %283 : vector<8x128xi1>, vector<8x128xf32>
    %290 = arith.mulf %287, %268 : vector<8x128xf32>
    %291 = arith.mulf %289, %277 : vector<8x128xf32>
    %292 = arith.addf %290, %291 : vector<8x128xf32>
    %293 = arith.mulf %287, %270 : vector<8x128xf32>
    %294 = arith.addf %293, %289 : vector<8x128xf32>
    %295 = tpu.reciprocal %294 {approx = true} : vector<8x128xf32> -> vector<8x128xf32>
    %296 = arith.mulf %292, %295 : vector<8x128xf32>
    %297 = arith.index_cast %c4_i32 : i32 to index
    %c0_115 = arith.constant 0 : index
    %c0_116 = arith.constant 0 : index
    %298 = vector.load %arg20[%297, %c0_115, %c0_116] : memref<8x8x128xbf16, #tpu.memory_space<vmem>>, vector<1x8x128xbf16>
    %299 = vector.shape_cast %298 : vector<1x8x128xbf16> to vector<8x128xbf16>
    %300 = arith.extf %299 : vector<8x128xbf16> to vector<8x128xf32>
    %301 = arith.mulf %296, %300 : vector<8x128xf32>
    %302 = arith.truncf %301 : vector<8x128xf32> to vector<8x128xbf16>
    %303 = arith.index_cast %c4_i32 : i32 to index
    %c0_117 = arith.constant 0 : index
    %c0_118 = arith.constant 0 : index
    %304 = vector.load %arg20[%303, %c0_117, %c0_118] : memref<8x8x128xbf16, #tpu.memory_space<vmem>>, vector<1x8x128xbf16>
    %305 = vector.shape_cast %304 : vector<1x8x128xbf16> to vector<8x128xbf16>
    %306 = vector.shape_cast %302 : vector<8x128xbf16> to vector<1x8x128xbf16>
    tpu.vector_store %arg20[%303, %c0_117, %c0_118], %306 {strides = array<i32>} : memref<8x8x128xbf16, #tpu.memory_space<vmem>>, vector<1x8x128xbf16>,
    %307 = arith.subf %271, %53 : vector<8x128xf32>
    %308 = arith.subf %274, %307 : vector<8x128xf32>
    %309 = math.absf %308 : vector<8x128xf32>
    %cst_119 = arith.constant 0.000000e+00 : f32
    %310 = vector.broadcast %cst_119 : f32 to vector<8x128xf32>
    %311 = arith.subf %310, %309 : vector<8x128xf32>
    %312 = math.exp %311 : vector<8x128xf32>
    %cst_120 = arith.constant 0.000000e+00 : f32
    %313 = vector.broadcast %cst_120 : f32 to vector<8x128xf32>
    %314 = arith.cmpf oge, %308, %313 : vector<8x128xf32>
    %cst_121 = arith.constant 1.000000e+00 : f32
    %315 = vector.broadcast %cst_121 : f32 to vector<8x128xf32>
    %316 = arith.select %314, %312, %315 : vector<8x128xi1>, vector<8x128xf32>
    %cst_122 = arith.constant 1.000000e+00 : f32
    %317 = vector.broadcast %cst_122 : f32 to vector<8x128xf32>
    %318 = arith.select %314, %317, %312 : vector<8x128xi1>, vector<8x128xf32>
    %319 = arith.mulf %316, %268 : vector<8x128xf32>
    %320 = arith.mulf %318, %277 : vector<8x128xf32>
    %321 = arith.addf %319, %320 : vector<8x128xf32>
    %322 = arith.mulf %316, %270 : vector<8x128xf32>
    %323 = arith.addf %322, %318 : vector<8x128xf32>
    %324 = arith.maximumf %307, %274 : vector<8x128xf32>
    %c5_i32 = arith.constant 5 : i32
    %325 = arith.index_cast %c5_i32 : i32 to index
    %c0_123 = arith.constant 0 : index
    %c0_124 = arith.constant 0 : index
    %326 = vector.load %arg18[%325, %c0_123, %c0_124] : memref<8x8x128xf32, #tpu.memory_space<vmem>>, vector<1x8x128xf32>
    %327 = vector.shape_cast %326 : vector<1x8x128xf32> to vector<8x128xf32>
    %328 = arith.index_cast %c5_i32 : i32 to index
    %c0_125 = arith.constant 0 : index
    %c0_126 = arith.constant 0 : index
    %329 = vector.load %arg19[%328, %c0_125, %c0_126] : memref<8x8x128xf32, #tpu.memory_space<vmem>>, vector<1x8x128xf32>
    %330 = vector.shape_cast %329 : vector<1x8x128xf32> to vector<8x128xf32>
    %331 = arith.addf %327, %49 : vector<8x128xf32>
    %332 = arith.subf %331, %324 : vector<8x128xf32>
    %333 = math.absf %332 : vector<8x128xf32>
    %cst_127 = arith.constant 0.000000e+00 : f32
    %334 = vector.broadcast %cst_127 : f32 to vector<8x128xf32>
    %335 = arith.subf %334, %333 : vector<8x128xf32>
    %336 = math.exp %335 : vector<8x128xf32>
    %cst_128 = arith.constant 0.000000e+00 : f32
    %337 = vector.broadcast %cst_128 : f32 to vector<8x128xf32>
    %338 = arith.cmpf oge, %332, %337 : vector<8x128xf32>
    %cst_129 = arith.constant 1.000000e+00 : f32
    %339 = vector.broadcast %cst_129 : f32 to vector<8x128xf32>
    %340 = arith.select %338, %336, %339 : vector<8x128xi1>, vector<8x128xf32>
    %cst_130 = arith.constant 1.000000e+00 : f32
    %341 = vector.broadcast %cst_130 : f32 to vector<8x128xf32>
    %342 = arith.select %338, %341, %336 : vector<8x128xi1>, vector<8x128xf32>
    %343 = arith.mulf %340, %321 : vector<8x128xf32>
    %344 = arith.mulf %342, %330 : vector<8x128xf32>
    %345 = arith.addf %343, %344 : vector<8x128xf32>
    %346 = arith.mulf %340, %323 : vector<8x128xf32>
    %347 = arith.addf %346, %342 : vector<8x128xf32>
    %348 = tpu.reciprocal %347 {approx = true} : vector<8x128xf32> -> vector<8x128xf32>
    %349 = arith.mulf %345, %348 : vector<8x128xf32>
    %350 = arith.index_cast %c5_i32 : i32 to index
    %c0_131 = arith.constant 0 : index
    %c0_132 = arith.constant 0 : index
    %351 = vector.load %arg20[%350, %c0_131, %c0_132] : memref<8x8x128xbf16, #tpu.memory_space<vmem>>, vector<1x8x128xbf16>
    %352 = vector.shape_cast %351 : vector<1x8x128xbf16> to vector<8x128xbf16>
    %353 = arith.extf %352 : vector<8x128xbf16> to vector<8x128xf32>
    %354 = arith.mulf %349, %353 : vector<8x128xf32>
    %355 = arith.truncf %354 : vector<8x128xf32> to vector<8x128xbf16>
    %356 = arith.index_cast %c5_i32 : i32 to index
    %c0_133 = arith.constant 0 : index
    %c0_134 = arith.constant 0 : index
    %357 = vector.load %arg20[%356, %c0_133, %c0_134] : memref<8x8x128xbf16, #tpu.memory_space<vmem>>, vector<1x8x128xbf16>
    %358 = vector.shape_cast %357 : vector<1x8x128xbf16> to vector<8x128xbf16>
    %359 = vector.shape_cast %355 : vector<8x128xbf16> to vector<1x8x128xbf16>
    tpu.vector_store %arg20[%356, %c0_133, %c0_134], %359 {strides = array<i32>} : memref<8x8x128xbf16, #tpu.memory_space<vmem>>, vector<1x8x128xbf16>,
    %360 = arith.subf %324, %53 : vector<8x128xf32>
    %361 = arith.subf %327, %360 : vector<8x128xf32>
    %362 = math.absf %361 : vector<8x128xf32>
    %cst_135 = arith.constant 0.000000e+00 : f32
    %363 = vector.broadcast %cst_135 : f32 to vector<8x128xf32>
    %364 = arith.subf %363, %362 : vector<8x128xf32>
    %365 = math.exp %364 : vector<8x128xf32>
    %cst_136 = arith.constant 0.000000e+00 : f32
    %366 = vector.broadcast %cst_136 : f32 to vector<8x128xf32>
    %367 = arith.cmpf oge, %361, %366 : vector<8x128xf32>
    %cst_137 = arith.constant 1.000000e+00 : f32
    %368 = vector.broadcast %cst_137 : f32 to vector<8x128xf32>
    %369 = arith.select %367, %365, %368 : vector<8x128xi1>, vector<8x128xf32>
    %cst_138 = arith.constant 1.000000e+00 : f32
    %370 = vector.broadcast %cst_138 : f32 to vector<8x128xf32>
    %371 = arith.select %367, %370, %365 : vector<8x128xi1>, vector<8x128xf32>
    %372 = arith.mulf %369, %321 : vector<8x128xf32>
    %373 = arith.mulf %371, %330 : vector<8x128xf32>
    %374 = arith.addf %372, %373 : vector<8x128xf32>
    %375 = arith.mulf %369, %323 : vector<8x128xf32>
    %376 = arith.addf %375, %371 : vector<8x128xf32>
    %377 = arith.maximumf %360, %327 : vector<8x128xf32>
    %c6_i32 = arith.constant 6 : i32
    %378 = arith.index_cast %c6_i32 : i32 to index
    %c0_139 = arith.constant 0 : index
    %c0_140 = arith.constant 0 : index
    %379 = vector.load %arg18[%378, %c0_139, %c0_140] : memref<8x8x128xf32, #tpu.memory_space<vmem>>, vector<1x8x128xf32>
    %380 = vector.shape_cast %379 : vector<1x8x128xf32> to vector<8x128xf32>
    %381 = arith.index_cast %c6_i32 : i32 to index
    %c0_141 = arith.constant 0 : index
    %c0_142 = arith.constant 0 : index
    %382 = vector.load %arg19[%381, %c0_141, %c0_142] : memref<8x8x128xf32, #tpu.memory_space<vmem>>, vector<1x8x128xf32>
    %383 = vector.shape_cast %382 : vector<1x8x128xf32> to vector<8x128xf32>
    %384 = arith.addf %380, %49 : vector<8x128xf32>
    %385 = arith.subf %384, %377 : vector<8x128xf32>
    %386 = math.absf %385 : vector<8x128xf32>
    %cst_143 = arith.constant 0.000000e+00 : f32
    %387 = vector.broadcast %cst_143 : f32 to vector<8x128xf32>
    %388 = arith.subf %387, %386 : vector<8x128xf32>
    %389 = math.exp %388 : vector<8x128xf32>
    %cst_144 = arith.constant 0.000000e+00 : f32
    %390 = vector.broadcast %cst_144 : f32 to vector<8x128xf32>
    %391 = arith.cmpf oge, %385, %390 : vector<8x128xf32>
    %cst_145 = arith.constant 1.000000e+00 : f32
    %392 = vector.broadcast %cst_145 : f32 to vector<8x128xf32>
    %393 = arith.select %391, %389, %392 : vector<8x128xi1>, vector<8x128xf32>
    %cst_146 = arith.constant 1.000000e+00 : f32
    %394 = vector.broadcast %cst_146 : f32 to vector<8x128xf32>
    %395 = arith.select %391, %394, %389 : vector<8x128xi1>, vector<8x128xf32>
    %396 = arith.mulf %393, %374 : vector<8x128xf32>
    %397 = arith.mulf %395, %383 : vector<8x128xf32>
    %398 = arith.addf %396, %397 : vector<8x128xf32>
    %399 = arith.mulf %393, %376 : vector<8x128xf32>
    %400 = arith.addf %399, %395 : vector<8x128xf32>
    %401 = tpu.reciprocal %400 {approx = true} : vector<8x128xf32> -> vector<8x128xf32>
    %402 = arith.mulf %398, %401 : vector<8x128xf32>
    %403 = arith.index_cast %c6_i32 : i32 to index
    %c0_147 = arith.constant 0 : index
    %c0_148 = arith.constant 0 : index
    %404 = vector.load %arg20[%403, %c0_147, %c0_148] : memref<8x8x128xbf16, #tpu.memory_space<vmem>>, vector<1x8x128xbf16>
    %405 = vector.shape_cast %404 : vector<1x8x128xbf16> to vector<8x128xbf16>
    %406 = arith.extf %405 : vector<8x128xbf16> to vector<8x128xf32>
    %407 = arith.mulf %402, %406 : vector<8x128xf32>
    %408 = arith.truncf %407 : vector<8x128xf32> to vector<8x128xbf16>
    %409 = arith.index_cast %c6_i32 : i32 to index
    %c0_149 = arith.constant 0 : index
    %c0_150 = arith.constant 0 : index
    %410 = vector.load %arg20[%409, %c0_149, %c0_150] : memref<8x8x128xbf16, #tpu.memory_space<vmem>>, vector<1x8x128xbf16>
    %411 = vector.shape_cast %410 : vector<1x8x128xbf16> to vector<8x128xbf16>
    %412 = vector.shape_cast %408 : vector<8x128xbf16> to vector<1x8x128xbf16>
    tpu.vector_store %arg20[%409, %c0_149, %c0_150], %412 {strides = array<i32>} : memref<8x8x128xbf16, #tpu.memory_space<vmem>>, vector<1x8x128xbf16>,
    %413 = arith.subf %377, %53 : vector<8x128xf32>
    %414 = arith.subf %380, %413 : vector<8x128xf32>
    %415 = math.absf %414 : vector<8x128xf32>
    %cst_151 = arith.constant 0.000000e+00 : f32
    %416 = vector.broadcast %cst_151 : f32 to vector<8x128xf32>
    %417 = arith.subf %416, %415 : vector<8x128xf32>
    %418 = math.exp %417 : vector<8x128xf32>
    %cst_152 = arith.constant 0.000000e+00 : f32
    %419 = vector.broadcast %cst_152 : f32 to vector<8x128xf32>
    %420 = arith.cmpf oge, %414, %419 : vector<8x128xf32>
    %cst_153 = arith.constant 1.000000e+00 : f32
    %421 = vector.broadcast %cst_153 : f32 to vector<8x128xf32>
    %422 = arith.select %420, %418, %421 : vector<8x128xi1>, vector<8x128xf32>
    %cst_154 = arith.constant 1.000000e+00 : f32
    %423 = vector.broadcast %cst_154 : f32 to vector<8x128xf32>
    %424 = arith.select %420, %423, %418 : vector<8x128xi1>, vector<8x128xf32>
    %425 = arith.mulf %422, %374 : vector<8x128xf32>
    %426 = arith.mulf %424, %383 : vector<8x128xf32>
    %427 = arith.addf %425, %426 : vector<8x128xf32>
    %428 = arith.mulf %422, %376 : vector<8x128xf32>
    %429 = arith.addf %428, %424 : vector<8x128xf32>
    %430 = arith.maximumf %413, %380 : vector<8x128xf32>
    %c7_i32 = arith.constant 7 : i32
    %431 = arith.index_cast %c7_i32 : i32 to index
    %c0_155 = arith.constant 0 : index
    %c0_156 = arith.constant 0 : index
    %432 = vector.load %arg18[%431, %c0_155, %c0_156] : memref<8x8x128xf32, #tpu.memory_space<vmem>>, vector<1x8x128xf32>
    %433 = vector.shape_cast %432 : vector<1x8x128xf32> to vector<8x128xf32>
    %434 = arith.index_cast %c7_i32 : i32 to index
    %c0_157 = arith.constant 0 : index
    %c0_158 = arith.constant 0 : index
    %435 = vector.load %arg19[%434, %c0_157, %c0_158] : memref<8x8x128xf32, #tpu.memory_space<vmem>>, vector<1x8x128xf32>
    %436 = vector.shape_cast %435 : vector<1x8x128xf32> to vector<8x128xf32>
    %437 = arith.addf %433, %49 : vector<8x128xf32>
    %438 = arith.subf %437, %430 : vector<8x128xf32>
    %439 = math.absf %438 : vector<8x128xf32>
    %cst_159 = arith.constant 0.000000e+00 : f32
    %440 = vector.broadcast %cst_159 : f32 to vector<8x128xf32>
    %441 = arith.subf %440, %439 : vector<8x128xf32>
    %442 = math.exp %441 : vector<8x128xf32>
    %cst_160 = arith.constant 0.000000e+00 : f32
    %443 = vector.broadcast %cst_160 : f32 to vector<8x128xf32>
    %444 = arith.cmpf oge, %438, %443 : vector<8x128xf32>
    %cst_161 = arith.constant 1.000000e+00 : f32
    %445 = vector.broadcast %cst_161 : f32 to vector<8x128xf32>
    %446 = arith.select %444, %442, %445 : vector<8x128xi1>, vector<8x128xf32>
    %cst_162 = arith.constant 1.000000e+00 : f32
    %447 = vector.broadcast %cst_162 : f32 to vector<8x128xf32>
    %448 = arith.select %444, %447, %442 : vector<8x128xi1>, vector<8x128xf32>
    %449 = arith.mulf %446, %427 : vector<8x128xf32>
    %450 = arith.mulf %448, %436 : vector<8x128xf32>
    %451 = arith.addf %449, %450 : vector<8x128xf32>
    %452 = arith.mulf %446, %429 : vector<8x128xf32>
    %453 = arith.addf %452, %448 : vector<8x128xf32>
    %454 = tpu.reciprocal %453 {approx = true} : vector<8x128xf32> -> vector<8x128xf32>
    %455 = arith.mulf %451, %454 : vector<8x128xf32>
    %456 = arith.index_cast %c7_i32 : i32 to index
    %c0_163 = arith.constant 0 : index
    %c0_164 = arith.constant 0 : index
    %457 = vector.load %arg20[%456, %c0_163, %c0_164] : memref<8x8x128xbf16, #tpu.memory_space<vmem>>, vector<1x8x128xbf16>
    %458 = vector.shape_cast %457 : vector<1x8x128xbf16> to vector<8x128xbf16>
    %459 = arith.extf %458 : vector<8x128xbf16> to vector<8x128xf32>
    %460 = arith.mulf %455, %459 : vector<8x128xf32>
    %461 = arith.truncf %460 : vector<8x128xf32> to vector<8x128xbf16>
    %462 = arith.index_cast %c7_i32 : i32 to index
    %c0_165 = arith.constant 0 : index
    %c0_166 = arith.constant 0 : index
    %463 = vector.load %arg20[%462, %c0_165, %c0_166] : memref<8x8x128xbf16, #tpu.memory_space<vmem>>, vector<1x8x128xbf16>
    %464 = vector.shape_cast %463 : vector<1x8x128xbf16> to vector<8x128xbf16>
    %465 = vector.shape_cast %461 : vector<8x128xbf16> to vector<1x8x128xbf16>
    tpu.vector_store %arg20[%462, %c0_165, %c0_166], %465 {strides = array<i32>} : memref<8x8x128xbf16, #tpu.memory_space<vmem>>, vector<1x8x128xbf16>,
    %466 = arith.subf %430, %53 : vector<8x128xf32>
    %467 = arith.subf %433, %466 : vector<8x128xf32>
    %468 = math.absf %467 : vector<8x128xf32>
    %cst_167 = arith.constant 0.000000e+00 : f32
    %469 = vector.broadcast %cst_167 : f32 to vector<8x128xf32>
    %470 = arith.subf %469, %468 : vector<8x128xf32>
    %471 = math.exp %470 : vector<8x128xf32>
    %cst_168 = arith.constant 0.000000e+00 : f32
    %472 = vector.broadcast %cst_168 : f32 to vector<8x128xf32>
    %473 = arith.cmpf oge, %467, %472 : vector<8x128xf32>
    %cst_169 = arith.constant 1.000000e+00 : f32
    %474 = vector.broadcast %cst_169 : f32 to vector<8x128xf32>
    %475 = arith.select %473, %471, %474 : vector<8x128xi1>, vector<8x128xf32>
    %cst_170 = arith.constant 1.000000e+00 : f32
    %476 = vector.broadcast %cst_170 : f32 to vector<8x128xf32>
    %477 = arith.select %473, %476, %471 : vector<8x128xi1>, vector<8x128xf32>
    %478 = arith.mulf %475, %427 : vector<8x128xf32>
    %479 = arith.mulf %477, %436 : vector<8x128xf32>
    %480 = arith.addf %478, %479 : vector<8x128xf32>
    %481 = arith.mulf %475, %429 : vector<8x128xf32>
    %482 = arith.addf %481, %477 : vector<8x128xf32>
    %483 = arith.maximumf %466, %433 : vector<8x128xf32>
    %c8_i32 = arith.constant 8 : i32
    %c0_171 = arith.constant 0 : index
    %c0_172 = arith.constant 0 : index
    %c0_173 = arith.constant 0 : index
    %484 = vector.load %arg20[%c0_171, %c0_172, %c0_173] : memref<8x8x128xbf16, #tpu.memory_space<vmem>>, vector<8x8x128xbf16>
    %485 = vector.shape_cast %484 : vector<8x8x128xbf16> to vector<64x128xbf16>
    %c0_174 = arith.constant 0 : index
    %c0_175 = arith.constant 0 : index
    %486 = vector.load %arg8[%c0_174, %c0_175] : memref<128x128xbf16, #tpu.memory_space<vmem>>, vector<128x128xbf16>
    %cst_176 = arith.constant dense<0.000000e+00> : vector<64x128xf32>
    %487 = tpu.matmul %485, %486, %cst_176 {dimension_numbers = #tpu.dot_dimension_numbers<[1], [0], [0], [1], [0, 0, 1, 1], [], []>} : vector<64x128xbf16>, vector<128x128xbf16>, vector<64x128xf32> -> vector<64x128xf32>
    %488 = vector.shape_cast %487 : vector<64x128xf32> to vector<8x8x128xf32>
    %c0_177 = arith.constant 0 : index
    %c0_178 = arith.constant 0 : index
    %c0_179 = arith.constant 0 : index
    %489 = vector.load %arg14[%c0_177, %c0_178, %c0_179] : memref<8x8x128xf32, #tpu.memory_space<vmem>>, vector<8x8x128xf32>
    tpu.vector_store %arg14[%c0_177, %c0_178, %c0_179], %488 {strides = array<i32>} : memref<8x8x128xf32, #tpu.memory_space<vmem>>, vector<8x8x128xf32>,
    %c0_180 = arith.constant 0 : index
    %c0_181 = arith.constant 0 : index
    %c0_182 = arith.constant 0 : index
    %490 = vector.load %arg17[%c0_180, %c0_181, %c0_182] : memref<4x8x128xf32, #tpu.memory_space<vmem>>, vector<1x8x128xf32>
    %491 = vector.shape_cast %490 : vector<1x8x128xf32> to vector<8x128xf32>
    %492 = vector.shape_cast %480 : vector<8x128xf32> to vector<1x8x128xf32>
    tpu.vector_store %arg17[%c0_180, %c0_181, %c0_182], %492 {strides = array<i32>} : memref<4x8x128xf32, #tpu.memory_space<vmem>>, vector<1x8x128xf32>,
    %c1_183 = arith.constant 1 : index
    %c0_184 = arith.constant 0 : index
    %c0_185 = arith.constant 0 : index
    %493 = vector.load %arg17[%c1_183, %c0_184, %c0_185] : memref<4x8x128xf32, #tpu.memory_space<vmem>>, vector<1x8x128xf32>
    %494 = vector.shape_cast %493 : vector<1x8x128xf32> to vector<8x128xf32>
    %495 = vector.shape_cast %482 : vector<8x128xf32> to vector<1x8x128xf32>
    tpu.vector_store %arg17[%c1_183, %c0_184, %c0_185], %495 {strides = array<i32>} : memref<4x8x128xf32, #tpu.memory_space<vmem>>, vector<1x8x128xf32>,
    %c2_186 = arith.constant 2 : index
    %c0_187 = arith.constant 0 : index
    %c0_188 = arith.constant 0 : index
    %496 = vector.load %arg17[%c2_186, %c0_187, %c0_188] : memref<4x8x128xf32, #tpu.memory_space<vmem>>, vector<1x8x128xf32>
    %497 = vector.shape_cast %496 : vector<1x8x128xf32> to vector<8x128xf32>
    %498 = vector.shape_cast %483 : vector<8x128xf32> to vector<1x8x128xf32>
    tpu.vector_store %arg17[%c2_186, %c0_187, %c0_188], %498 {strides = array<i32>} : memref<4x8x128xf32, #tpu.memory_space<vmem>>, vector<1x8x128xf32>,
    %499 = vector.extract_strided_slice %3 {offsets = [7, 0, 0], sizes = [1, 8, 128], strides = [1, 1, 1]} : vector<8x8x128xf32> to vector<1x8x128xf32>
    %500 = vector.shape_cast %499 : vector<1x8x128xf32> to vector<8x128xf32>
    %c3_189 = arith.constant 3 : index
    %c0_190 = arith.constant 0 : index
    %c0_191 = arith.constant 0 : index
    %501 = vector.load %arg17[%c3_189, %c0_190, %c0_191] : memref<4x8x128xf32, #tpu.memory_space<vmem>>, vector<1x8x128xf32>
    %502 = vector.shape_cast %501 : vector<1x8x128xf32> to vector<8x128xf32>
    %503 = vector.shape_cast %500 : vector<8x128xf32> to vector<1x8x128xf32>
    tpu.vector_store %arg17[%c3_189, %c0_190, %c0_191], %503 {strides = array<i32>} : memref<4x8x128xf32, #tpu.memory_space<vmem>>, vector<1x8x128xf32>,
    %c1_i32_192 = arith.constant 1 : i32
    %504 = arith.cmpi eq, %arg1, %c1_i32_192 : i32
    %505 = arith.extui %504 : i1 to i32
    %c0_i32_193 = arith.constant 0 : i32
    %506 = arith.cmpi ne, %505, %c0_i32_193 : i32
    scf.if %506 {
      %507 = vector.extract_strided_slice %3 {offsets = [7, 0, 0], sizes = [1, 8, 128], strides = [1, 1, 1]} : vector<8x8x128xf32> to vector<1x8x128xf32>
      %508 = vector.shape_cast %507 : vector<1x8x128xf32> to vector<8x128xf32>
      %c0_194 = arith.constant 0 : index
      %c0_195 = arith.constant 0 : index
      %c0_196 = arith.constant 0 : index
      %509 = vector.load %arg15[%c0_194, %c0_195, %c0_196] : memref<1x8x128xf32, #tpu.memory_space<vmem>>, vector<1x8x128xf32>
      %510 = vector.shape_cast %509 : vector<1x8x128xf32> to vector<8x128xf32>
      %511 = vector.shape_cast %508 : vector<8x128xf32> to vector<1x8x128xf32>
      tpu.vector_store %arg15[%c0_194, %c0_195, %c0_196], %511 {strides = array<i32>} : memref<1x8x128xf32, #tpu.memory_space<vmem>>, vector<1x8x128xf32>,
      %c0_197 = arith.constant 0 : index
      %c0_198 = arith.constant 0 : index
      %c0_199 = arith.constant 0 : index
      %512 = vector.load %arg16[%c0_197, %c0_198, %c0_199] : memref<3x8x128xf32, #tpu.memory_space<vmem>>, vector<1x8x128xf32>
      %513 = vector.shape_cast %512 : vector<1x8x128xf32> to vector<8x128xf32>
      %514 = vector.shape_cast %480 : vector<8x128xf32> to vector<1x8x128xf32>
      tpu.vector_store %arg16[%c0_197, %c0_198, %c0_199], %514 {strides = array<i32>} : memref<3x8x128xf32, #tpu.memory_space<vmem>>, vector<1x8x128xf32>,
      %c1_200 = arith.constant 1 : index
      %c0_201 = arith.constant 0 : index
      %c0_202 = arith.constant 0 : index
      %515 = vector.load %arg16[%c1_200, %c0_201, %c0_202] : memref<3x8x128xf32, #tpu.memory_space<vmem>>, vector<1x8x128xf32>
      %516 = vector.shape_cast %515 : vector<1x8x128xf32> to vector<8x128xf32>
      %517 = vector.shape_cast %482 : vector<8x128xf32> to vector<1x8x128xf32>
      tpu.vector_store %arg16[%c1_200, %c0_201, %c0_202], %517 {strides = array<i32>} : memref<3x8x128xf32, #tpu.memory_space<vmem>>, vector<1x8x128xf32>,
      %c2_203 = arith.constant 2 : index
      %c0_204 = arith.constant 0 : index
      %c0_205 = arith.constant 0 : index
      %518 = vector.load %arg16[%c2_203, %c0_204, %c0_205] : memref<3x8x128xf32, #tpu.memory_space<vmem>>, vector<1x8x128xf32>
      %519 = vector.shape_cast %518 : vector<1x8x128xf32> to vector<8x128xf32>
      %520 = vector.shape_cast %483 : vector<8x128xf32> to vector<1x8x128xf32>
      tpu.vector_store %arg16[%c2_203, %c0_204, %c0_205], %520 {strides = array<i32>} : memref<3x8x128xf32, #tpu.memory_space<vmem>>, vector<1x8x128xf32>,
    } else {
    }
    return
  }
  func.func @transform_0(%arg0: i32, %arg1: i32) -> (i32, i32, i32) {
    %c0_i32 = arith.constant 0 : i32
    %c0_i32_0 = arith.constant 0 : i32
    return %arg1, %arg0, %c0_i32 : i32, i32, i32
  }
  func.func @transform_1(%arg0: i32, %arg1: i32) -> (i32, i32, i32) {
    %c0_i32 = arith.constant 0 : i32
    %c0_i32_0 = arith.constant 0 : i32
    %c0_i32_1 = arith.constant 0 : i32
    return %c0_i32, %arg0, %c0_i32_0 : i32, i32, i32
  }
  func.func @transform_2(%arg0: i32, %arg1: i32) -> (i32, i32, i32) {
    %c0_i32 = arith.constant 0 : i32
    %c0_i32_0 = arith.constant 0 : i32
    %c0_i32_1 = arith.constant 0 : i32
    return %c0_i32, %arg0, %c0_i32_0 : i32, i32, i32
  }
  func.func @transform_3(%arg0: i32, %arg1: i32) -> (i32, i32) {
    %c0_i32 = arith.constant 0 : i32
    %c0_i32_0 = arith.constant 0 : i32
    %c0_i32_1 = arith.constant 0 : i32
    return %c0_i32, %c0_i32_0 : i32, i32
  }
  func.func @transform_4(%arg0: i32, %arg1: i32) -> (i32, i32) {
    %c0_i32 = arith.constant 0 : i32
    %c0_i32_0 = arith.constant 0 : i32
    %c0_i32_1 = arith.constant 0 : i32
    return %c0_i32, %c0_i32_0 : i32, i32
  }
  func.func @transform_5(%arg0: i32, %arg1: i32) -> (i32, i32) {
    %c0_i32 = arith.constant 0 : i32
    %c0_i32_0 = arith.constant 0 : i32
    %c0_i32_1 = arith.constant 0 : i32
    return %c0_i32, %c0_i32_0 : i32, i32
  }
  func.func @transform_6(%arg0: i32, %arg1: i32) -> (i32, i32) {
    %c0_i32 = arith.constant 0 : i32
    %c0_i32_0 = arith.constant 0 : i32
    %c0_i32_1 = arith.constant 0 : i32
    return %c0_i32, %c0_i32_0 : i32, i32
  }
  func.func @transform_7(%arg0: i32, %arg1: i32) -> (i32, i32) {
    %c0_i32 = arith.constant 0 : i32
    %c0_i32_0 = arith.constant 0 : i32
    %c0_i32_1 = arith.constant 0 : i32
    return %c0_i32, %c0_i32_0 : i32, i32
  }
  func.func @transform_8(%arg0: i32, %arg1: i32) -> (i32, i32) {
    %c0_i32 = arith.constant 0 : i32
    %c0_i32_0 = arith.constant 0 : i32
    %c0_i32_1 = arith.constant 0 : i32
    return %c0_i32, %c0_i32_0 : i32, i32
  }
  func.func @transform_9(%arg0: i32, %arg1: i32) -> (i32, i32) {
    %c0_i32 = arith.constant 0 : i32
    %c0_i32_0 = arith.constant 0 : i32
    %c0_i32_1 = arith.constant 0 : i32
    return %c0_i32, %c0_i32_0 : i32, i32
  }
  func.func @transform_10(%arg0: i32, %arg1: i32) -> (i32, i32) {
    %c0_i32 = arith.constant 0 : i32
    %c0_i32_0 = arith.constant 0 : i32
    %c0_i32_1 = arith.constant 0 : i32
    return %c0_i32, %c0_i32_0 : i32, i32
  }
  func.func @transform_11(%arg0: i32, %arg1: i32) -> (i32, i32) {
    %c0_i32 = arith.constant 0 : i32
    %c0_i32_0 = arith.constant 0 : i32
    %c0_i32_1 = arith.constant 0 : i32
    return %c0_i32, %c0_i32_0 : i32, i32
  }
  func.func @transform_12(%arg0: i32, %arg1: i32) -> (i32, i32, i32) {
    %c0_i32 = arith.constant 0 : i32
    %c0_i32_0 = arith.constant 0 : i32
    return %arg1, %arg0, %c0_i32 : i32, i32, i32
  }
  func.func @transform_13(%arg0: i32, %arg1: i32) -> (i32, i32, i32) {
    %c0_i32 = arith.constant 0 : i32
    %c0_i32_0 = arith.constant 0 : i32
    %c0_i32_1 = arith.constant 0 : i32
    return %c0_i32, %arg0, %c0_i32_0 : i32, i32, i32
  }
  func.func @transform_14(%arg0: i32, %arg1: i32) -> (i32, i32, i32) {
    %c0_i32 = arith.constant 0 : i32
    %c0_i32_0 = arith.constant 0 : i32
    %c0_i32_1 = arith.constant 0 : i32
    return %c0_i32, %arg0, %c0_i32_0 : i32, i32, i32
  }
}

</mosaic_0001>

<llo_original>
// kernel: tpu_custom_call.1
$region0: #{tpu_custom_call.1}
  #allocation0 [shape = 'u32[]', space=smem, size = 0x4, offset = 0x4, fixed_abs, tag = 'smem constant byte address 0x4 - core index']
  #allocation1 [shape = 'u32[72,128]{1,0:T(1,128)}', space=vmem, size = 0x9000, scoped, tag = 'internal scratch']
  #allocation2 [shape = 'f32[4,8,128]{2,1,0:T(8,128)}', space=vmem, size = 0x4000, scoped, tag = 'scratch operand']
  #allocation3 [shape = 'f32[8,8,128]{2,1,0:T(8,128)}', space=vmem, size = 0x8000, scoped, tag = 'scratch operand']
  #allocation4 [shape = 'f32[8,8,128]{2,1,0:T(8,128)}', space=vmem, size = 0x8000, scoped, tag = 'scratch operand']
  #allocation5 [shape = 'bf16[8,8,128]{2,1,0:T(8,128)(2,1)}', space=vmem, size = 0x4000, scoped, tag = 'scratch operand']
  %s0 = inlined_call_operand.hbm [shape: f32[16,16,128], index: 0, kind: input, shape index: {}]
  %s1 = inlined_call_operand.hbm [shape: f32[1,16,128], index: 1, kind: input, shape index: {}]
  %s2 = inlined_call_operand.hbm [shape: f32[3,16,128], index: 2, kind: input, shape index: {}]
  %s3 = inlined_call_operand.hbm [shape: bf16[128,128], index: 3, kind: input, shape index: {}]
  %s4 = inlined_call_operand.hbm [shape: bf16[128,128], index: 4, kind: input, shape index: {}]
  %s5 = inlined_call_operand.hbm [shape: bf16[128,128], index: 5, kind: input, shape index: {}]
  %s6 = inlined_call_operand.hbm [shape: bf16[128,128], index: 6, kind: input, shape index: {}]
  %s7 = inlined_call_operand.vmem [shape: f32[1,128], index: 7, kind: input, shape index: {}]
  %s8 = inlined_call_operand.vmem [shape: f32[1,128], index: 8, kind: input, shape index: {}]
  %s9 = inlined_call_operand.vmem [shape: f32[1,128], index: 9, kind: input, shape index: {}]
  %s10 = inlined_call_operand.vmem [shape: f32[1,128], index: 10, kind: input, shape index: {}]
  %s11 = inlined_call_operand.vmem [shape: f32[1,128], index: 11, kind: input, shape index: {}]
  %s12 = inlined_call_operand.hbm [shape: f32[16,16,128], index: 12, kind: output, shape index: {0}]
  %s13 = inlined_call_operand.hbm [shape: f32[1,16,128], index: 13, kind: output, shape index: {1}]
  %s14 = inlined_call_operand.hbm [shape: f32[3,16,128], index: 14, kind: output, shape index: {2}]
  %15 = xla_tuple %s12, %s13, %s14
  %s16 = sld [smem:[#allocation0]]
  $region133: #{tpu_custom_call.1} parent=0
    _
  %s18 = ssub.s32 1, %s16
  %s19 = scalar_select 0, %s18, %s16
  $region1: #{tpu_custom_call.1} parent=0
    #allocation6 [shape = 'u8[65536]{0}', space=vmem, size = 0x10000, scoped, tag = 'input window, operand 0']
    #allocation7 [shape = 's32[2]{0}', space=sflag, size = 0x8, scoped, tag = 'scoped memory for tpu_custom_call.1']
    #allocation8 [shape = 's32[2]{0}', space=sflag, size = 0x8, scoped, tag = 'scoped memory for tpu_custom_call.1']
    #allocation9 [shape = 'u8[8192]{0}', space=vmem, size = 0x2000, scoped, tag = 'input window, operand 1']
    #allocation10 [shape = 's32[2]{0}', space=sflag, size = 0x8, scoped, tag = 'scoped memory for tpu_custom_call.1']
    #allocation11 [shape = 'u8[24576]{0}', space=vmem, size = 0x6000, scoped, tag = 'input window, operand 2']
    #allocation12 [shape = 'u8[32768]{0}', space=vmem, size = 0x8000, scoped, tag = 'input window, operand 3, single buffered']
    #allocation13 [shape = 's32[1]{0}', space=sflag, size = 0x4, scoped, tag = 'scoped memory for tpu_custom_call.1']
    #allocation14 [shape = 'u8[32768]{0}', space=vmem, size = 0x8000, scoped, tag = 'input window, operand 4, single buffered']
    #allocation15 [shape = 'u8[32768]{0}', space=vmem, size = 0x8000, scoped, tag = 'input window, operand 5, single buffered']
    #allocation16 [shape = 's32[1]{0}', space=sflag, size = 0x4, scoped, tag = 'scoped memory for tpu_custom_call.1']
    #allocation17 [shape = 'u8[32768]{0}', space=vmem, size = 0x8000, scoped, tag = 'input window, operand 6, single buffered']
    #allocation18 [shape = 'u8[65536]{0}', space=vmem, size = 0x10000, scoped, tag = 'output window, operand 0']
    #allocation19 [shape = 'u8[8192]{0}', space=vmem, size = 0x2000, scoped, tag = 'output window, operand 1']
    #allocation20 [shape = 's32[2]{0}', space=sflag, size = 0x8, scoped, tag = 'scoped memory for tpu_custom_call.1']
    #allocation21 [shape = 'u8[24576]{0}', space=vmem, size = 0x6000, scoped, tag = 'output window, operand 2']
    %20 = vsyncpa [#allocation7], 0
    %s21 = scalar_lea.sflag [#allocation7], 1
    %22 = vsyncpa %s21, 0
    %23 = vsyncpa [#allocation10], 0
    %s24 = scalar_lea.sflag [#allocation10], 1
    %25 = vsyncpa %s24, 0
    %26 = vsyncpa [#allocation13], 0
    %27 = vsyncpa [#allocation16], 0
    %28 = vsyncpa [#allocation8], 0
    %s29 = scalar_lea.sflag [#allocation8], 1
    %30 = vsyncpa %s29, 0
    %31 = vsyncpa [#allocation20], 0
    %s32 = scalar_lea.sflag [#allocation20], 1
    %33 = vsyncpa %s32, 0
    loop: start=0, step=1, limit=6
    $region2: #{tpu_custom_call.1} parent=1 // loop_pre_header
      _
    $region3: #{tpu_custom_call.1} parent=1 // loop_header
      %s35 = sphi 0, %s39
      %p36 = scmp.ge.s32.totalorder %s35, 6
      %s42 = sphi 0, %s54
      %s43 = sphi 0, %s50
      %s44 = sphi 0, %s42
      %s45 = sphi 0, %s43
      %s46 = sphi 0, %s44
      %s47 = sphi 0, %s45
      %s59 = sphi 0, %s61
      %s62 = sphi 0, %s59
      %s63 = sphi 0, %s62
      %s79 = sphi 0, %s63
      %s85 = sphi 0, %s87
      %s88 = sphi 0, %s85
      %s89 = sphi 0, %s88
      %s105 = sphi 0, %s89
      %s111 = sphi 0, %s113
      %s114 = sphi 0, %s111
      %s115 = sphi 0, %s114
      %s131 = sphi 0, %s115
      %s135 = sphi 0, %s135
      %s137 = sphi 0, %s135
      %s138 = sphi 0, %s137
      %s152 = sphi 0, %s138
      %s156 = sphi 0, %s156
      %s158 = sphi 0, %s156
      %s159 = sphi 0, %s158
      %s173 = sphi 0, %s159
      %s177 = sphi 0, %s177
      %s179 = sphi 0, %s177
      %s180 = sphi 0, %s179
      %s194 = sphi 0, %s180
      %s198 = sphi 0, %s198
      %s200 = sphi 0, %s198
      %s201 = sphi 0, %s200
      %s215 = sphi 0, %s201
      %s219 = sphi 0, %s219
      %s221 = sphi 0, %s219
      %s222 = sphi 0, %s221
      %s236 = sphi 0, %s222
      %s240 = sphi 0, %s240
      %s242 = sphi 0, %s240
      %s243 = sphi 0, %s242
      %s257 = sphi 0, %s243
      %s261 = sphi 0, %s261
      %s263 = sphi 0, %s261
      %s264 = sphi 0, %s263
      %s278 = sphi 0, %s264
      %s282 = sphi 0, %s282
      %s284 = sphi 0, %s282
      %s285 = sphi 0, %s284
      %s299 = sphi 0, %s285
      %s303 = sphi 0, %s303
      %s305 = sphi 0, %s303
      %s306 = sphi 0, %s305
      %s320 = sphi 0, %s306
      %s328 = sphi 0, %s330
      %s331 = sphi 0, %s328
      %s332 = sphi 0, %s331
      %s348 = sphi 0, %s332
      %s354 = sphi 0, %s356
      %s357 = sphi 0, %s354
      %s358 = sphi 0, %s357
      %s374 = sphi 0, %s358
      %s380 = sphi 0, %s382
      %s383 = sphi 0, %s380
      %s384 = sphi 0, %s383
      %s400 = sphi 0, %s384
    $region4: #{tpu_custom_call.1} parent=1 // loop_header_branch
      %38 = sbr.rel (%p36) target = $region8
    $region5: #{tpu_custom_call.1} parent=1 // loop_body
      %s40 = ssub.s32 %s35, 1
      %s41 = ssub.s32 %s35, 2
      %s48 = sadd.s32 1, %s43
      %p49 = scmp.ge.s32.totalorder %s48, 2
      %s50 = scalar_select %p49, 0, %s48
      %s51 = sadd.s32 1, %s42
      %s52 = scalar_select %p49, %s51, %s42
      %p53 = scmp.ge.s32.totalorder %s52, 2
      %s54 = scalar_select %p53, 0, %s52
      %s55 = ssub.s32 %s43, %s50
      %s56 = ssub.s32 %s42, %s54
      %s57 = sor.u32 %s55, %s56
      %p58 = scmp.eq.s32.totalorder %s57, 0
      %s60 = sadd.s32 %s59, 1
      %s61 = scalar_select %p58, %s59, %s60
      %p64 = pneg %p58
      %p65 = scmp.eq.s32.totalorder %s35, 3
      %p66 = por %p64, %p65
      %p67 = scmp.ne.s32.totalorder %s59, %s62
      %p68 = scmp.eq.s32.totalorder %s35, 0
      %p69 = por %p67, %p68
      %p70 = scmp.ne.s32.totalorder %s59, %s62
      %p71 = scmp.eq.s32.totalorder %s40, 3
      %p72 = por %p70, %p71
      %p73 = scmp.ne.s32.totalorder %s62, %s63
      %p74 = scmp.eq.s32.totalorder %s40, 0
      %p75 = por %p73, %p74
      %p76 = scmp.ne.s32.totalorder %s62, %s63
      %p77 = scmp.eq.s32.totalorder %s41, 3
      %p78 = por %p76, %p77
      %p80 = scmp.ne.s32.totalorder %s63, %s79
      %p81 = scmp.eq.s32.totalorder %s41, 0
      %p82 = por %p80, %p81
      %s83 = ssub.s32 %s42, %s54
      %p84 = scmp.eq.s32.totalorder %s83, 0
      %s86 = sadd.s32 %s85, 1
      %s87 = scalar_select %p84, %s85, %s86
      %p90 = pneg %p84
      %p91 = scmp.eq.s32.totalorder %s35, 3
      %p92 = por %p90, %p91
      %p93 = scmp.ne.s32.totalorder %s85, %s88
      %p94 = scmp.eq.s32.totalorder %s35, 0
      %p95 = por %p93, %p94
      %p96 = scmp.ne.s32.totalorder %s85, %s88
      %p97 = scmp.eq.s32.totalorder %s40, 3
      %p98 = por %p96, %p97
      %p99 = scmp.ne.s32.totalorder %s88, %s89
      %p100 = scmp.eq.s32.totalorder %s40, 0
      %p101 = por %p99, %p100
      %p102 = scmp.ne.s32.totalorder %s88, %s89
      %p103 = scmp.eq.s32.totalorder %s41, 3
      %p104 = por %p102, %p103
      %p106 = scmp.ne.s32.totalorder %s89, %s105
      %p107 = scmp.eq.s32.totalorder %s41, 0
      %p108 = por %p106, %p107
      %s109 = ssub.s32 %s42, %s54
      %p110 = scmp.eq.s32.totalorder %s109, 0
      %s112 = sadd.s32 %s111, 1
      %s113 = scalar_select %p110, %s111, %s112
      %p116 = pneg %p110
      %p117 = scmp.eq.s32.totalorder %s35, 3
      %p118 = por %p116, %p117
      %p119 = scmp.ne.s32.totalorder %s111, %s114
      %p120 = scmp.eq.s32.totalorder %s35, 0
      %p121 = por %p119, %p120
      %p122 = scmp.ne.s32.totalorder %s111, %s114
      %p123 = scmp.eq.s32.totalorder %s40, 3
      %p124 = por %p122, %p123
      %p125 = scmp.ne.s32.totalorder %s114, %s115
      %p126 = scmp.eq.s32.totalorder %s40, 0
      %p127 = por %p125, %p126
      %p128 = scmp.ne.s32.totalorder %s114, %s115
      %p129 = scmp.eq.s32.totalorder %s41, 3
      %p130 = por %p128, %p129
      %p132 = scmp.ne.s32.totalorder %s115, %s131
      %p133 = scmp.eq.s32.totalorder %s41, 0
      %p134 = por %p132, %p133
      %s136 = sadd.s32 %s135, 1
      %p139 = scmp.eq.s32.totalorder %s35, 3
      %p140 = scmp.ne.s32.totalorder %s135, %s137
      %p141 = scmp.eq.s32.totalorder %s35, 0
      %p142 = por %p140, %p141
      %p143 = scmp.ne.s32.totalorder %s135, %s137
      %p144 = scmp.eq.s32.totalorder %s40, 3
      %p145 = por %p143, %p144
      %p146 = scmp.ne.s32.totalorder %s137, %s138
      %p147 = scmp.eq.s32.totalorder %s40, 0
      %p148 = por %p146, %p147
      %p149 = scmp.ne.s32.totalorder %s137, %s138
      %p150 = scmp.eq.s32.totalorder %s41, 3
      %p151 = por %p149, %p150
      %p153 = scmp.ne.s32.totalorder %s138, %s152
      %p154 = scmp.eq.s32.totalorder %s41, 0
      %p155 = por %p153, %p154
      %s157 = sadd.s32 %s156, 1
      %p160 = scmp.eq.s32.totalorder %s35, 3
      %p161 = scmp.ne.s32.totalorder %s156, %s158
      %p162 = scmp.eq.s32.totalorder %s35, 0
      %p163 = por %p161, %p162
      %p164 = scmp.ne.s32.totalorder %s156, %s158
      %p165 = scmp.eq.s32.totalorder %s40, 3
      %p166 = por %p164, %p165
      %p167 = scmp.ne.s32.totalorder %s158, %s159
      %p168 = scmp.eq.s32.totalorder %s40, 0
      %p169 = por %p167, %p168
      %p170 = scmp.ne.s32.totalorder %s158, %s159
      %p171 = scmp.eq.s32.totalorder %s41, 3
      %p172 = por %p170, %p171
      %p174 = scmp.ne.s32.totalorder %s159, %s173
      %p175 = scmp.eq.s32.totalorder %s41, 0
      %p176 = por %p174, %p175
      %s178 = sadd.s32 %s177, 1
      %p181 = scmp.eq.s32.totalorder %s35, 3
      %p182 = scmp.ne.s32.totalorder %s177, %s179
      %p183 = scmp.eq.s32.totalorder %s35, 0
      %p184 = por %p182, %p183
      %p185 = scmp.ne.s32.totalorder %s177, %s179
      %p186 = scmp.eq.s32.totalorder %s40, 3
      %p187 = por %p185, %p186
      %p188 = scmp.ne.s32.totalorder %s179, %s180
      %p189 = scmp.eq.s32.totalorder %s40, 0
      %p190 = por %p188, %p189
      %p191 = scmp.ne.s32.totalorder %s179, %s180
      %p192 = scmp.eq.s32.totalorder %s41, 3
      %p193 = por %p191, %p192
      %p195 = scmp.ne.s32.totalorder %s180, %s194
      %p196 = scmp.eq.s32.totalorder %s41, 0
      %p197 = por %p195, %p196
      %s199 = sadd.s32 %s198, 1
      %p202 = scmp.eq.s32.totalorder %s35, 3
      %p203 = scmp.ne.s32.totalorder %s198, %s200
      %p204 = scmp.eq.s32.totalorder %s35, 0
      %p205 = por %p203, %p204
      %p206 = scmp.ne.s32.totalorder %s198, %s200
      %p207 = scmp.eq.s32.totalorder %s40, 3
      %p208 = por %p206, %p207
      %p209 = scmp.ne.s32.totalorder %s200, %s201
      %p210 = scmp.eq.s32.totalorder %s40, 0
      %p211 = por %p209, %p210
      %p212 = scmp.ne.s32.totalorder %s200, %s201
      %p213 = scmp.eq.s32.totalorder %s41, 3
      %p214 = por %p212, %p213
      %p216 = scmp.ne.s32.totalorder %s201, %s215
      %p217 = scmp.eq.s32.totalorder %s41, 0
      %p218 = por %p216, %p217
      %s220 = sadd.s32 %s219, 1
      %p223 = scmp.eq.s32.totalorder %s35, 3
      %p224 = scmp.ne.s32.totalorder %s219, %s221
      %p225 = scmp.eq.s32.totalorder %s35, 0
      %p226 = por %p224, %p225
      %p227 = scmp.ne.s32.totalorder %s219, %s221
      %p228 = scmp.eq.s32.totalorder %s40, 3
      %p229 = por %p227, %p228
      %p230 = scmp.ne.s32.totalorder %s221, %s222
      %p231 = scmp.eq.s32.totalorder %s40, 0
      %p232 = por %p230, %p231
      %p233 = scmp.ne.s32.totalorder %s221, %s222
      %p234 = scmp.eq.s32.totalorder %s41, 3
      %p235 = por %p233, %p234
      %p237 = scmp.ne.s32.totalorder %s222, %s236
      %p238 = scmp.eq.s32.totalorder %s41, 0
      %p239 = por %p237, %p238
      %s241 = sadd.s32 %s240, 1
      %p244 = scmp.eq.s32.totalorder %s35, 3
      %p245 = scmp.ne.s32.totalorder %s240, %s242
      %p246 = scmp.eq.s32.totalorder %s35, 0
      %p247 = por %p245, %p246
      %p248 = scmp.ne.s32.totalorder %s240, %s242
      %p249 = scmp.eq.s32.totalorder %s40, 3
      %p250 = por %p248, %p249
      %p251 = scmp.ne.s32.totalorder %s242, %s243
      %p252 = scmp.eq.s32.totalorder %s40, 0
      %p253 = por %p251, %p252
      %p254 = scmp.ne.s32.totalorder %s242, %s243
      %p255 = scmp.eq.s32.totalorder %s41, 3
      %p256 = por %p254, %p255
      %p258 = scmp.ne.s32.totalorder %s243, %s257
      %p259 = scmp.eq.s32.totalorder %s41, 0
      %p260 = por %p258, %p259
      %s262 = sadd.s32 %s261, 1
      %p265 = scmp.eq.s32.totalorder %s35, 3
      %p266 = scmp.ne.s32.totalorder %s261, %s263
      %p267 = scmp.eq.s32.totalorder %s35, 0
      %p268 = por %p266, %p267
      %p269 = scmp.ne.s32.totalorder %s261, %s263
      %p270 = scmp.eq.s32.totalorder %s40, 3
      %p271 = por %p269, %p270
      %p272 = scmp.ne.s32.totalorder %s263, %s264
      %p273 = scmp.eq.s32.totalorder %s40, 0
      %p274 = por %p272, %p273
      %p275 = scmp.ne.s32.totalorder %s263, %s264
      %p276 = scmp.eq.s32.totalorder %s41, 3
      %p277 = por %p275, %p276
      %p279 = scmp.ne.s32.totalorder %s264, %s278
      %p280 = scmp.eq.s32.totalorder %s41, 0
      %p281 = por %p279, %p280
      %s283 = sadd.s32 %s282, 1
      %p286 = scmp.eq.s32.totalorder %s35, 3
      %p287 = scmp.ne.s32.totalorder %s282, %s284
      %p288 = scmp.eq.s32.totalorder %s35, 0
      %p289 = por %p287, %p288
      %p290 = scmp.ne.s32.totalorder %s282, %s284
      %p291 = scmp.eq.s32.totalorder %s40, 3
      %p292 = por %p290, %p291
      %p293 = scmp.ne.s32.totalorder %s284, %s285
      %p294 = scmp.eq.s32.totalorder %s40, 0
      %p295 = por %p293, %p294
      %p296 = scmp.ne.s32.totalorder %s284, %s285
      %p297 = scmp.eq.s32.totalorder %s41, 3
      %p298 = por %p296, %p297
      %p300 = scmp.ne.s32.totalorder %s285, %s299
      %p301 = scmp.eq.s32.totalorder %s41, 0
      %p302 = por %p300, %p301
      %s304 = sadd.s32 %s303, 1
      %p307 = scmp.eq.s32.totalorder %s35, 3
      %p308 = scmp.ne.s32.totalorder %s303, %s305
      %p309 = scmp.eq.s32.totalorder %s35, 0
      %p310 = por %p308, %p309
      %p311 = scmp.ne.s32.totalorder %s303, %s305
      %p312 = scmp.eq.s32.totalorder %s40, 3
      %p313 = por %p311, %p312
      %p314 = scmp.ne.s32.totalorder %s305, %s306
      %p315 = scmp.eq.s32.totalorder %s40, 0
      %p316 = por %p314, %p315
      %p317 = scmp.ne.s32.totalorder %s305, %s306
      %p318 = scmp.eq.s32.totalorder %s41, 3
      %p319 = por %p317, %p318
      %p321 = scmp.ne.s32.totalorder %s306, %s320
      %p322 = scmp.eq.s32.totalorder %s41, 0
      %p323 = por %p321, %p322
      %s324 = ssub.s32 %s43, %s50
      %s325 = ssub.s32 %s42, %s54
      %s326 = sor.u32 %s324, %s325
      %p327 = scmp.eq.s32.totalorder %s326, 0
      %s329 = sadd.s32 %s328, 1
      %s330 = scalar_select %p327, %s328, %s329
      %p333 = pneg %p327
      %p334 = scmp.eq.s32.totalorder %s35, 3
      %p335 = por %p333, %p334
      %p336 = scmp.ne.s32.totalorder %s328, %s331
      %p337 = scmp.eq.s32.totalorder %s35, 0
      %p338 = por %p336, %p337
      %p339 = scmp.ne.s32.totalorder %s328, %s331
      %p340 = scmp.eq.s32.totalorder %s40, 3
      %p341 = por %p339, %p340
      %p342 = scmp.ne.s32.totalorder %s331, %s332
      %p343 = scmp.eq.s32.totalorder %s40, 0
      %p344 = por %p342, %p343
      %p345 = scmp.ne.s32.totalorder %s331, %s332
      %p346 = scmp.eq.s32.totalorder %s41, 3
      %p347 = por %p345, %p346
      %p349 = scmp.ne.s32.totalorder %s332, %s348
      %p350 = scmp.eq.s32.totalorder %s41, 0
      %p351 = por %p349, %p350
      %s352 = ssub.s32 %s42, %s54
      %p353 = scmp.eq.s32.totalorder %s352, 0
      %s355 = sadd.s32 %s354, 1
      %s356 = scalar_select %p353, %s354, %s355
      %p359 = pneg %p353
      %p360 = scmp.eq.s32.totalorder %s35, 3
      %p361 = por %p359, %p360
      %p362 = scmp.ne.s32.totalorder %s354, %s357
      %p363 = scmp.eq.s32.totalorder %s35, 0
      %p364 = por %p362, %p363
      %p365 = scmp.ne.s32.totalorder %s354, %s357
      %p366 = scmp.eq.s32.totalorder %s40, 3
      %p367 = por %p365, %p366
      %p368 = scmp.ne.s32.totalorder %s357, %s358
      %p369 = scmp.eq.s32.totalorder %s40, 0
      %p370 = por %p368, %p369
      %p371 = scmp.ne.s32.totalorder %s357, %s358
      %p372 = scmp.eq.s32.totalorder %s41, 3
      %p373 = por %p371, %p372
      %p375 = scmp.ne.s32.totalorder %s358, %s374
      %p376 = scmp.eq.s32.totalorder %s41, 0
      %p377 = por %p375, %p376
      %s378 = ssub.s32 %s42, %s54
      %p379 = scmp.eq.s32.totalorder %s378, 0
      %s381 = sadd.s32 %s380, 1
      %s382 = scalar_select %p379, %s380, %s381
      %p385 = pneg %p379
      %p386 = scmp.eq.s32.totalorder %s35, 3
      %p387 = por %p385, %p386
      %p388 = scmp.ne.s32.totalorder %s380, %s383
      %p389 = scmp.eq.s32.totalorder %s35, 0
      %p390 = por %p388, %p389
      %p391 = scmp.ne.s32.totalorder %s380, %s383
      %p392 = scmp.eq.s32.totalorder %s40, 3
      %p393 = por %p391, %p392
      %p394 = scmp.ne.s32.totalorder %s383, %s384
      %p395 = scmp.eq.s32.totalorder %s40, 0
      %p396 = por %p394, %p395
      %p397 = scmp.ne.s32.totalorder %s383, %s384
      %p398 = scmp.eq.s32.totalorder %s41, 3
      %p399 = por %p397, %p398
      %p401 = scmp.ne.s32.totalorder %s384, %s400
      %p402 = scmp.eq.s32.totalorder %s41, 0
      %p403 = por %p401, %p402
      %p404 = scmp.le.s32.totalorder 1, %s35
      %p405 = scmp.lt.s32.totalorder %s35, 5
      %p406 = pnand %p404, %p405
      %p407 = pneg %p406
      // Predicated region
      $region9: #{tpu_custom_call.1} parent=5 // pred_check
        _
      $region10: #{tpu_custom_call.1} parent=5 // pred_check_branch
        %409 = sbr.rel (%p406) target = $region12
      $region11: #{tpu_custom_call.1} parent=5 // pred_region
        %s410 = ssub.s32 %s35, 1
        // Predicated region
        $region13: #{tpu_custom_call.1} parent=11 // pred_check
          %p411 = pneg %p148
        $region14: #{tpu_custom_call.1} parent=11 // pred_check_branch
          %413 = sbr.rel (%p411) target = $region16
        $region15: #{tpu_custom_call.1} parent=11 // pred_region
          %415 = vsyncadd [#allocation13], 0
          %s416 = sshll.u32 %s3, 4
          %s417 = int_to_ptr.hbm [resolvable:$true] %s416
          %s418 = sshll.u32 [#allocation12], 4
          %s419 = int_to_ptr.vmem [resolvable:$true] %s418
          %424 = dma.hbm_to_vmem [thread:$0]  %s417, 1024, %s419, [#allocation13], 64, 64, 4
        $region16: #{tpu_custom_call.1} parent=11 // pred_fallthru
          _
        // Predicated region
        $region17: #{tpu_custom_call.1} parent=11 // pred_check
          %p425 = pneg %p169
        $region18: #{tpu_custom_call.1} parent=11 // pred_check_branch
          %427 = sbr.rel (%p425) target = $region20
        $region19: #{tpu_custom_call.1} parent=11 // pred_region
          %429 = vsyncadd [#allocation13], 0
          %s430 = sshll.u32 %s4, 4
          %s431 = int_to_ptr.hbm [resolvable:$true] %s430
          %s432 = sshll.u32 [#allocation14], 4
          %s433 = int_to_ptr.vmem [resolvable:$true] %s432
          %438 = dma.hbm_to_vmem [thread:$0]  %s431, 1024, %s433, [#allocation13], 64, 64, 4
        $region20: #{tpu_custom_call.1} parent=11 // pred_fallthru
          _
        // Predicated region
        $region21: #{tpu_custom_call.1} parent=11 // pred_check
          %p439 = pneg %p190
        $region22: #{tpu_custom_call.1} parent=11 // pred_check_branch
          %441 = sbr.rel (%p439) target = $region24
        $region23: #{tpu_custom_call.1} parent=11 // pred_region
          %443 = vsyncadd [#allocation16], 0
          %s444 = sshll.u32 %s5, 4
          %s445 = int_to_ptr.hbm [resolvable:$true] %s444
          %s446 = sshll.u32 [#allocation15], 4
          %s447 = int_to_ptr.vmem [resolvable:$true] %s446
          %452 = dma.hbm_to_vmem [thread:$0]  %s445, 1024, %s447, [#allocation16], 64, 64, 4
        $region24: #{tpu_custom_call.1} parent=11 // pred_fallthru
          _
        // Predicated region
        $region25: #{tpu_custom_call.1} parent=11 // pred_check
          %p453 = pneg %p211
        $region26: #{tpu_custom_call.1} parent=11 // pred_check_branch
          %455 = sbr.rel (%p453) target = $region28
        $region27: #{tpu_custom_call.1} parent=11 // pred_region
          %457 = vsyncadd [#allocation16], 0
          %s458 = sshll.u32 %s6, 4
          %s459 = int_to_ptr.hbm [resolvable:$true] %s458
          %s460 = sshll.u32 [#allocation17], 4
          %s461 = int_to_ptr.vmem [resolvable:$true] %s460
          %466 = dma.hbm_to_vmem [thread:$0]  %s459, 1024, %s461, [#allocation16], 64, 64, 4
        $region28: #{tpu_custom_call.1} parent=11 // pred_fallthru
          _
        // Predicated region
        $region29: #{tpu_custom_call.1} parent=11 // pred_check
          %p467 = pneg %p232
        $region30: #{tpu_custom_call.1} parent=11 // pred_check_branch
          %469 = sbr.rel (%p467) target = $region32
        $region31: #{tpu_custom_call.1} parent=11 // pred_region
          _
        $region32: #{tpu_custom_call.1} parent=11 // pred_fallthru
          _
        // Predicated region
        $region33: #{tpu_custom_call.1} parent=11 // pred_check
          %p470 = pneg %p253
        $region34: #{tpu_custom_call.1} parent=11 // pred_check_branch
          %472 = sbr.rel (%p470) target = $region36
        $region35: #{tpu_custom_call.1} parent=11 // pred_region
          _
        $region36: #{tpu_custom_call.1} parent=11 // pred_fallthru
          _
        // Predicated region
        $region37: #{tpu_custom_call.1} parent=11 // pred_check
          %p473 = pneg %p274
        $region38: #{tpu_custom_call.1} parent=11 // pred_check_branch
          %475 = sbr.rel (%p473) target = $region40
        $region39: #{tpu_custom_call.1} parent=11 // pred_region
          _
        $region40: #{tpu_custom_call.1} parent=11 // pred_fallthru
          _
        // Predicated region
        $region41: #{tpu_custom_call.1} parent=11 // pred_check
          %p476 = pneg %p295
        $region42: #{tpu_custom_call.1} parent=11 // pred_check_branch
          %478 = sbr.rel (%p476) target = $region44
        $region43: #{tpu_custom_call.1} parent=11 // pred_region
          _
        $region44: #{tpu_custom_call.1} parent=11 // pred_fallthru
          _
        // Predicated region
        $region45: #{tpu_custom_call.1} parent=11 // pred_check
          %p479 = pneg %p316
        $region46: #{tpu_custom_call.1} parent=11 // pred_check_branch
          %481 = sbr.rel (%p479) target = $region48
        $region47: #{tpu_custom_call.1} parent=11 // pred_region
          _
        $region48: #{tpu_custom_call.1} parent=11 // pred_fallthru
          _
      $region12: #{tpu_custom_call.1} parent=5 // pred_fallthru
        _
      %p482 = scmp.lt.s32.totalorder %s35, 4
      // Predicated region
      $region49: #{tpu_custom_call.1} parent=5 // pred_check
        %p483 = pneg %p482
      $region50: #{tpu_custom_call.1} parent=5 // pred_check_branch
        %485 = sbr.rel (%p483) target = $region52
      $region51: #{tpu_custom_call.1} parent=5 // pred_region
        // Predicated region
        $region53: #{tpu_custom_call.1} parent=51 // pred_check
          %p486 = pneg %p69
        $region54: #{tpu_custom_call.1} parent=51 // pred_check_branch
          %488 = sbr.rel (%p486) target = $region56
        $region55: #{tpu_custom_call.1} parent=51 // pred_region
          %s489 = sand.u32 %s59, 1
          %s490 = scalar_lea.sflag [#allocation7], %s489
          %s491 = sand.u32 %s59, 1
          %s492 = smul.addr %s491, 64
          %s493 = scalar_lea.vmem [#allocation6], %s492
          %s494 = smul.u32 8, %s43
          %496 = vsyncadd %s490, 0
          %s497 = smul.addr %s494, 2
          %s498 = sadd.s32 %s42, %s497
          %s499 = smul.addr %s498, 8
          %s500 = scalar_lea.hbm %s0, %s499
          %s501 = sshll.u32 %s500, 4
          %s502 = int_to_ptr.hbm [resolvable:$true] %s501
          %s503 = sshll.u32 %s493, 4
          %s504 = int_to_ptr.vmem [resolvable:$true] %s503
          %509 = dma.hbm_to_vmem [thread:$0]  %s502, 1024, %s504, %s490, 256, 128, 8
        $region56: #{tpu_custom_call.1} parent=51 // pred_fallthru
          _
        // Predicated region
        $region57: #{tpu_custom_call.1} parent=51 // pred_check
          %p510 = pneg %p95
        $region58: #{tpu_custom_call.1} parent=51 // pred_check_branch
          %512 = sbr.rel (%p510) target = $region60
        $region59: #{tpu_custom_call.1} parent=51 // pred_region
          %s513 = sand.u32 %s35, 1
          %s514 = scalar_lea.sflag [#allocation10], %s513
          %s515 = sand.u32 %s85, 1
          %s516 = smul.addr %s515, 8
          %s517 = scalar_lea.vmem [#allocation9], %s516
          %519 = vsyncadd %s514, 0
          %s520 = smul.addr %s42, 8
          %s521 = scalar_lea.hbm %s1, %s520
          %s523 = sshll.u32 %s521, 4
          %s524 = int_to_ptr.hbm [resolvable:$true] %s523
          %s525 = sshll.u32 %s517, 4
          %s526 = int_to_ptr.vmem [resolvable:$true] %s525
          %528 = dma.hbm_to_vmem [thread:$0]  %s524, 128, %s526, %s514
        $region60: #{tpu_custom_call.1} parent=51 // pred_fallthru
          _
        // Predicated region
        $region61: #{tpu_custom_call.1} parent=51 // pred_check
          %p529 = pneg %p121
        $region62: #{tpu_custom_call.1} parent=51 // pred_check_branch
          %531 = sbr.rel (%p529) target = $region64
        $region63: #{tpu_custom_call.1} parent=51 // pred_region
          %s532 = sand.u32 %s35, 1
          %s533 = scalar_lea.sflag [#allocation10], %s532
          %s534 = sand.u32 %s111, 1
          %s535 = smul.addr %s534, 24
          %s536 = scalar_lea.vmem [#allocation11], %s535
          %538 = vsyncadd %s533, 0
          %s539 = smul.addr %s42, 8
          %s540 = scalar_lea.hbm %s2, %s539
          %s541 = sshll.u32 %s540, 4
          %s542 = int_to_ptr.hbm [resolvable:$true] %s541
          %s543 = sshll.u32 %s536, 4
          %s544 = int_to_ptr.vmem [resolvable:$true] %s543
          %549 = dma.hbm_to_vmem [thread:$0]  %s542, 384, %s544, %s533, 256, 128, 8
        $region64: #{tpu_custom_call.1} parent=51 // pred_fallthru
          _
      $region52: #{tpu_custom_call.1} parent=5 // pred_fallthru
        _
      %p550 = scmp.le.s32.totalorder 1, %s35
      %p551 = scmp.lt.s32.totalorder %s35, 5
      %p552 = pnand %p550, %p551
      %p553 = pneg %p552
      // Predicated region
      $region65: #{tpu_custom_call.1} parent=5 // pred_check
        _
      $region66: #{tpu_custom_call.1} parent=5 // pred_check_branch
        %555 = sbr.rel (%p552) target = $region68
      $region67: #{tpu_custom_call.1} parent=5 // pred_region
        %s556 = ssub.s32 %s35, 1
        %s557 = sand.u32 %s62, 1
        %s558 = scalar_lea.sflag [#allocation7], %s557
        %s559 = sand.u32 %s62, 1
        %s560 = smul.addr %s559, 64
        %s561 = scalar_lea.vmem [#allocation6], %s560
        // Predicated region
        $region69: #{tpu_custom_call.1} parent=67 // pred_check
          %p562 = pneg %p75
        $region70: #{tpu_custom_call.1} parent=67 // pred_check_branch
          %564 = sbr.rel (%p562) target = $region72
        $region71: #{tpu_custom_call.1} parent=67 // pred_region
          %566 = dma.done %s558, 1024
        $region72: #{tpu_custom_call.1} parent=67 // pred_fallthru
          _
        %s567 = sand.u32 %s40, 1
        %s568 = scalar_lea.sflag [#allocation10], %s567
        %s569 = sand.u32 %s88, 1
        %s570 = smul.addr %s569, 8
        %s571 = scalar_lea.vmem [#allocation9], %s570
        // Predicated region
        $region73: #{tpu_custom_call.1} parent=67 // pred_check
          %p572 = pneg %p101
        $region74: #{tpu_custom_call.1} parent=67 // pred_check_branch
          %574 = sbr.rel (%p572) target = $region76
        $region75: #{tpu_custom_call.1} parent=67 // pred_region
          %576 = dma.done %s568, 128
        $region76: #{tpu_custom_call.1} parent=67 // pred_fallthru
          _
        %s577 = sand.u32 %s40, 1
        %s578 = scalar_lea.sflag [#allocation10], %s577
        %s579 = sand.u32 %s114, 1
        %s580 = smul.addr %s579, 24
        %s581 = scalar_lea.vmem [#allocation11], %s580
        // Predicated region
        $region77: #{tpu_custom_call.1} parent=67 // pred_check
          %p582 = pneg %p127
        $region78: #{tpu_custom_call.1} parent=67 // pred_check_branch
          %584 = sbr.rel (%p582) target = $region80
        $region79: #{tpu_custom_call.1} parent=67 // pred_region
          %586 = dma.done %s578, 384
        $region80: #{tpu_custom_call.1} parent=67 // pred_fallthru
          _
        // Predicated region
        $region81: #{tpu_custom_call.1} parent=67 // pred_check
          %p587 = pneg %p148
        $region82: #{tpu_custom_call.1} parent=67 // pred_check_branch
          %589 = sbr.rel (%p587) target = $region84
        $region83: #{tpu_custom_call.1} parent=67 // pred_region
          %591 = dma.done [#allocation13], 1024
        $region84: #{tpu_custom_call.1} parent=67 // pred_fallthru
          _
        // Predicated region
        $region85: #{tpu_custom_call.1} parent=67 // pred_check
          %p592 = pneg %p169
        $region86: #{tpu_custom_call.1} parent=67 // pred_check_branch
          %594 = sbr.rel (%p592) target = $region88
        $region87: #{tpu_custom_call.1} parent=67 // pred_region
          %596 = dma.done [#allocation13], 1024
        $region88: #{tpu_custom_call.1} parent=67 // pred_fallthru
          _
        // Predicated region
        $region89: #{tpu_custom_call.1} parent=67 // pred_check
          %p597 = pneg %p190
        $region90: #{tpu_custom_call.1} parent=67 // pred_check_branch
          %599 = sbr.rel (%p597) target = $region92
        $region91: #{tpu_custom_call.1} parent=67 // pred_region
          %601 = dma.done [#allocation16], 1024
        $region92: #{tpu_custom_call.1} parent=67 // pred_fallthru
          _
        // Predicated region
        $region93: #{tpu_custom_call.1} parent=67 // pred_check
          %p602 = pneg %p211
        $region94: #{tpu_custom_call.1} parent=67 // pred_check_branch
          %604 = sbr.rel (%p602) target = $region96
        $region95: #{tpu_custom_call.1} parent=67 // pred_region
          %606 = dma.done [#allocation16], 1024
        $region96: #{tpu_custom_call.1} parent=67 // pred_fallthru
          _
        %s607 = sand.u32 %s62, 1
        %s608 = scalar_lea.sflag [#allocation7], %s607
        %s609 = sand.u32 %s62, 1
        %s610 = smul.addr %s609, 64
        %s611 = scalar_lea.vmem [#allocation6], %s610
        %p612 = pneg %p75
        %p613 = pneg %p72
        %s614 = sand.u32 %s40, 1
        %s615 = scalar_lea.sflag [#allocation10], %s614
        %s616 = sand.u32 %s88, 1
        %s617 = smul.addr %s616, 8
        %s618 = scalar_lea.vmem [#allocation9], %s617
        %p619 = pneg %p101
        %p620 = pneg %p98
        %s621 = sand.u32 %s40, 1
        %s622 = scalar_lea.sflag [#allocation10], %s621
        %s623 = sand.u32 %s114, 1
        %s624 = smul.addr %s623, 24
        %s625 = scalar_lea.vmem [#allocation11], %s624
        %p626 = pneg %p127
        %p627 = pneg %p124
        %p628 = pneg %p148
        %p629 = pneg %p145
        %p630 = pneg %p169
        %p631 = pneg %p166
        %p632 = pneg %p190
        %p633 = pneg %p187
        %p634 = pneg %p211
        %p635 = pneg %p208
        %p636 = pneg %p232
        %p637 = pneg %p229
        %p638 = pneg %p253
        %p639 = pneg %p250
        %p640 = pneg %p274
        %p641 = pneg %p271
        %p642 = pneg %p295
        %p643 = pneg %p292
        %p644 = pneg %p316
        %p645 = pneg %p313
        %p646 = pneg %p344
        %p647 = pneg %p341
        %s648 = sand.u32 %s331, 1
        %s649 = scalar_lea.sflag [#allocation8], %s648
        %s650 = sand.u32 %s331, 1
        %s651 = smul.addr %s650, 64
        %s652 = scalar_lea.vmem [#allocation18], %s651
        %p653 = pneg %p370
        %p654 = pneg %p367
        %s655 = sand.u32 %s40, 1
        %s656 = scalar_lea.sflag [#allocation20], %s655
        %s657 = sand.u32 %s357, 1
        %s658 = smul.addr %s657, 8
        %s659 = scalar_lea.vmem [#allocation19], %s658
        %p660 = pneg %p396
        %p661 = pneg %p393
        %s662 = sand.u32 %s40, 1
        %s663 = scalar_lea.sflag [#allocation20], %s662
        %s664 = sand.u32 %s383, 1
        %s665 = smul.addr %s664, 24
        %s666 = scalar_lea.vmem [#allocation21], %s665
        %s667 = smul.u32 8, %s45
        %s668 = smul.u32 8, %s45
        %p669 = scmp.eq.s32.totalorder %s45, 0
        // Predicated region
        $region97: #{tpu_custom_call.1} parent=67 // pred_check
          %p670 = pneg %p669
        $region98: #{tpu_custom_call.1} parent=67 // pred_check_branch
          %672 = sbr.rel (%p670) target = $region100
        $region99: #{tpu_custom_call.1} parent=67 // pred_region
          %v673 = vld [vmem:[%s581] sm:$0xff]
          %674 = vst [vmem:[#allocation2] sm:$0xff] %v673
          %s675 = scalar_lea.vmem %s581, 8 [#allocation11]
          %v676 = vld [vmem:[%s675] sm:$0xff]
          %s677 = scalar_lea.vmem [#allocation2], 8
          %678 = vst [vmem:[%s677] sm:$0xff] %v676
          %s679 = scalar_lea.vmem %s581, 16 [#allocation11]
          %v680 = vld [vmem:[%s679] sm:$0xff]
          %s681 = scalar_lea.vmem [#allocation2], 16
          %682 = vst [vmem:[%s681] sm:$0xff] %v680
          %v683 = vld [vmem:[%s571] sm:$0xff]
          %s684 = scalar_lea.vmem [#allocation2], 24
          %685 = vst [vmem:[%s684] sm:$0xff] %v683
        $region100: #{tpu_custom_call.1} parent=67 // pred_fallthru
          _
        %v686 = vld [vmem:[%s561] sm:$0xff]
        %v687 = vld [vmem:[%s561 + $0x8] sm:$0xff]
        %v688 = vld [vmem:[%s561 + $0x10] sm:$0xff]
        %v689 = vld [vmem:[%s561 + $0x18] sm:$0xff]
        %v690 = vld [vmem:[%s561 + $0x20] sm:$0xff]
        %v691 = vld [vmem:[%s561 + $0x28] sm:$0xff]
        %v692 = vld [vmem:[%s561 + $0x30] sm:$0xff]
        %v693 = vld [vmem:[%s561 + $0x38] sm:$0xff]
        %s694 = scalar_lea.vmem [#allocation2], 24
        %v695 = vld [vmem:[%s694] sm:$0xff]
        %v696 = vsub.f32 %v686, %v695
        %v697 = vsub.f32 %v687, %v686
        %v698 = vsub.f32 %v688, %v687
        %v699 = vsub.f32 %v689, %v688
        %v700 = vsub.f32 %v690, %v689
        %v701 = vsub.f32 %v691, %v690
        %v702 = vsub.f32 %v692, %v691
        %v703 = vsub.f32 %v693, %v692
        %v704 = vld [vmem:[%s9] sm:$0x1]
        %v706 = vperm.slane %v704, 0
        %v708 = vmul.f32 %v696, %v706
        %v709 = vmul.f32 %v697, %v706
        %v710 = vmul.f32 %v698, %v706
        %v711 = vmul.f32 %v699, %v706
        %v712 = vmul.f32 %v700, %v706
        %v713 = vmul.f32 %v701, %v706
        %v714 = vmul.f32 %v702, %v706
        %v715 = vmul.f32 %v703, %v706
        %v716 = vadd.f32 %v695, %v708
        %v717 = vadd.f32 %v686, %v709
        %v718 = vadd.f32 %v687, %v710
        %v719 = vadd.f32 %v688, %v711
        %v720 = vadd.f32 %v689, %v712
        %v721 = vadd.f32 %v690, %v713
        %v722 = vadd.f32 %v691, %v714
        %v723 = vadd.f32 %v692, %v715
        %v724 = vld [vmem:[%s10] sm:$0x1]
        %v726 = vperm.slane %v724, 0
        %v728 = vmul.f32 %v696, %v726
        %v729 = vmul.f32 %v697, %v726
        %v730 = vmul.f32 %v698, %v726
        %v731 = vmul.f32 %v699, %v726
        %v732 = vmul.f32 %v700, %v726
        %v733 = vmul.f32 %v701, %v726
        %v734 = vmul.f32 %v702, %v726
        %v735 = vmul.f32 %v703, %v726
        %v736 = vadd.f32 %v695, %v728
        %v737 = vadd.f32 %v686, %v729
        %v738 = vadd.f32 %v687, %v730
        %v739 = vadd.f32 %v688, %v731
        %v740 = vadd.f32 %v689, %v732
        %v741 = vadd.f32 %v690, %v733
        %v742 = vadd.f32 %v691, %v734
        %v743 = vadd.f32 %v692, %v735
        %v744 = vld [vmem:[%s11] sm:$0x1]
        %v746 = vperm.slane %v744, 0
        %v748 = vmul.f32 %v696, %v746
        %v749 = vmul.f32 %v697, %v746
        %v750 = vmul.f32 %v698, %v746
        %v751 = vmul.f32 %v699, %v746
        %v752 = vmul.f32 %v700, %v746
        %v753 = vmul.f32 %v701, %v746
        %v754 = vmul.f32 %v702, %v746
        %v755 = vmul.f32 %v703, %v746
        %v756 = vadd.f32 %v695, %v748
        %v757 = vadd.f32 %v686, %v749
        %v758 = vadd.f32 %v687, %v750
        %v759 = vadd.f32 %v688, %v751
        %v760 = vadd.f32 %v689, %v752
        %v761 = vadd.f32 %v690, %v753
        %v762 = vadd.f32 %v691, %v754
        %v763 = vadd.f32 %v692, %v755
        %v764 = vpack.c.bf16 %v717, %v716
        %v765 = vpack.c.bf16 %v719, %v718
        %v766 = vpack.c.bf16 %v721, %v720
        %v767 = vpack.c.bf16 %v723, %v722
        %v768 = vld [vmem:[#allocation12] sm:$0xf]
        %v769 = vld [vmem:[#allocation12 + $0x4] sm:$0xf]
        %v770 = vld [vmem:[#allocation12 + $0x8] sm:$0xf]
        %v771 = vld [vmem:[#allocation12 + $0xc] sm:$0xf]
        %v772 = vld [vmem:[#allocation12 + $0x10] sm:$0xf]
        %v773 = vld [vmem:[#allocation12 + $0x14] sm:$0xf]
        %v774 = vld [vmem:[#allocation12 + $0x18] sm:$0xf]
        %v775 = vld [vmem:[#allocation12 + $0x1c] sm:$0xf]
        %v776 = vld [vmem:[#allocation12 + $0x20] sm:$0xf]
        %v777 = vld [vmem:[#allocation12 + $0x24] sm:$0xf]
        %v778 = vld [vmem:[#allocation12 + $0x28] sm:$0xf]
        %v779 = vld [vmem:[#allocation12 + $0x2c] sm:$0xf]
        %v780 = vld [vmem:[#allocation12 + $0x30] sm:$0xf]
        %v781 = vld [vmem:[#allocation12 + $0x34] sm:$0xf]
        %v782 = vld [vmem:[#allocation12 + $0x38] sm:$0xf]
        %v783 = vld [vmem:[#allocation12 + $0x3c] sm:$0xf]
        %v800 = vunpack.c.l.b16 %v768
        %v801 = vunpack.c.l.b16 %v769
        %v802 = vunpack.c.l.b16 %v770
        %v803 = vunpack.c.l.b16 %v771
        %v804 = vunpack.c.l.b16 %v772
        %v805 = vunpack.c.l.b16 %v773
        %v806 = vunpack.c.l.b16 %v774
        %v807 = vunpack.c.l.b16 %v775
        %v808 = vunpack.c.l.b16 %v776
        %v809 = vunpack.c.l.b16 %v777
        %v810 = vunpack.c.l.b16 %v778
        %v811 = vunpack.c.l.b16 %v779
        %v812 = vunpack.c.l.b16 %v780
        %v813 = vunpack.c.l.b16 %v781
        %v814 = vunpack.c.l.b16 %v782
        %v815 = vunpack.c.l.b16 %v783
        %v816 = vpack.c.b16 %v801, %v800
        %v817 = vpack.c.b16 %v803, %v802
        %v818 = vpack.c.b16 %v805, %v804
        %v819 = vpack.c.b16 %v807, %v806
        %v820 = vpack.c.b16 %v809, %v808
        %v821 = vpack.c.b16 %v811, %v810
        %v822 = vpack.c.b16 %v813, %v812
        %v823 = vpack.c.b16 %v815, %v814
        %832 = vmatpush.bf16.msra.mxu0 %v823
        %833 = vmatpush.bf16.msra.mxu0 %v822
        %834 = vmatpush.bf16.msra.mxu0 %v821
        %835 = vmatpush.bf16.msra.mxu0 %v820
        %836 = vmatpush.bf16.msra.mxu0 %v819
        %837 = vmatpush.bf16.msra.mxu0 %v818
        %838 = vmatpush.bf16.msra.mxu0 %v817
        %839 = vmatpush.bf16.msra.mxu0 %v816
        %840 = vmatmul.bf16.gmra.mxu0 %v764
        %v841 = vpop.f32.mrf.mxu0
        %v842 = vadd.f32 0.0, %v841
        %v843 = vpop.f32.mrf.mxu0
        %v844 = vadd.f32 0.0, %v843
        %845 = vmatmul.bf16.gmra.mxu0 %v765
        %v846 = vpop.f32.mrf.mxu0
        %v847 = vadd.f32 0.0, %v846
        %v848 = vpop.f32.mrf.mxu0
        %v849 = vadd.f32 0.0, %v848
        %850 = vmatmul.bf16.gmra.mxu0 %v766
        %v851 = vpop.f32.mrf.mxu0
        %v852 = vadd.f32 0.0, %v851
        %v853 = vpop.f32.mrf.mxu0
        %v854 = vadd.f32 0.0, %v853
        %855 = vmatmul.bf16.gmra.mxu0 %v767
        %v856 = vpop.f32.mrf.mxu0
        %v857 = vadd.f32 0.0, %v856
        %v858 = vpop.f32.mrf.mxu0
        %v859 = vadd.f32 0.0, %v858
        %860 = vdwg.mxu0
        %v861 = vpack.c.bf16 %v737, %v736
        %v862 = vpack.c.bf16 %v739, %v738
        %v863 = vpack.c.bf16 %v741, %v740
        %v864 = vpack.c.bf16 %v743, %v742
        %v865 = vld [vmem:[#allocation14] sm:$0xf]
        %v866 = vld [vmem:[#allocation14 + $0x4] sm:$0xf]
        %v867 = vld [vmem:[#allocation14 + $0x8] sm:$0xf]
        %v868 = vld [vmem:[#allocation14 + $0xc] sm:$0xf]
        %v869 = vld [vmem:[#allocation14 + $0x10] sm:$0xf]
        %v870 = vld [vmem:[#allocation14 + $0x14] sm:$0xf]
        %v871 = vld [vmem:[#allocation14 + $0x18] sm:$0xf]
        %v872 = vld [vmem:[#allocation14 + $0x1c] sm:$0xf]
        %v873 = vld [vmem:[#allocation14 + $0x20] sm:$0xf]
        %v874 = vld [vmem:[#allocation14 + $0x24] sm:$0xf]
        %v875 = vld [vmem:[#allocation14 + $0x28] sm:$0xf]
        %v876 = vld [vmem:[#allocation14 + $0x2c] sm:$0xf]
        %v877 = vld [vmem:[#allocation14 + $0x30] sm:$0xf]
        %v878 = vld [vmem:[#allocation14 + $0x34] sm:$0xf]
        %v879 = vld [vmem:[#allocation14 + $0x38] sm:$0xf]
        %v880 = vld [vmem:[#allocation14 + $0x3c] sm:$0xf]
        %v897 = vunpack.c.l.b16 %v865
        %v898 = vunpack.c.l.b16 %v866
        %v899 = vunpack.c.l.b16 %v867
        %v900 = vunpack.c.l.b16 %v868
        %v901 = vunpack.c.l.b16 %v869
        %v902 = vunpack.c.l.b16 %v870
        %v903 = vunpack.c.l.b16 %v871
        %v904 = vunpack.c.l.b16 %v872
        %v905 = vunpack.c.l.b16 %v873
        %v906 = vunpack.c.l.b16 %v874
        %v907 = vunpack.c.l.b16 %v875
        %v908 = vunpack.c.l.b16 %v876
        %v909 = vunpack.c.l.b16 %v877
        %v910 = vunpack.c.l.b16 %v878
        %v911 = vunpack.c.l.b16 %v879
        %v912 = vunpack.c.l.b16 %v880
        %v913 = vpack.c.b16 %v898, %v897
        %v914 = vpack.c.b16 %v900, %v899
        %v915 = vpack.c.b16 %v902, %v901
        %v916 = vpack.c.b16 %v904, %v903
        %v917 = vpack.c.b16 %v906, %v905
        %v918 = vpack.c.b16 %v908, %v907
        %v919 = vpack.c.b16 %v910, %v909
        %v920 = vpack.c.b16 %v912, %v911
        %929 = vmatpush.bf16.msra.mxu0 %v920
        %930 = vmatpush.bf16.msra.mxu0 %v919
        %931 = vmatpush.bf16.msra.mxu0 %v918
        %932 = vmatpush.bf16.msra.mxu0 %v917
        %933 = vmatpush.bf16.msra.mxu0 %v916
        %934 = vmatpush.bf16.msra.mxu0 %v915
        %935 = vmatpush.bf16.msra.mxu0 %v914
        %936 = vmatpush.bf16.msra.mxu0 %v913
        %937 = vmatmul.bf16.gmra.mxu0 %v861
        %v938 = vpop.f32.mrf.mxu0
        %v939 = vadd.f32 0.0, %v938
        %v940 = vpop.f32.mrf.mxu0
        %v941 = vadd.f32 0.0, %v940
        %942 = vmatmul.bf16.gmra.mxu0 %v862
        %v943 = vpop.f32.mrf.mxu0
        %v944 = vadd.f32 0.0, %v943
        %v945 = vpop.f32.mrf.mxu0
        %v946 = vadd.f32 0.0, %v945
        %947 = vmatmul.bf16.gmra.mxu0 %v863
        %v948 = vpop.f32.mrf.mxu0
        %v949 = vadd.f32 0.0, %v948
        %v950 = vpop.f32.mrf.mxu0
        %v951 = vadd.f32 0.0, %v950
        %952 = vmatmul.bf16.gmra.mxu0 %v864
        %v953 = vpop.f32.mrf.mxu0
        %v954 = vadd.f32 0.0, %v953
        %v955 = vpop.f32.mrf.mxu0
        %v956 = vadd.f32 0.0, %v955
        %957 = vdwg.mxu0
        %v958 = vpack.c.bf16 %v757, %v756
        %v959 = vpack.c.bf16 %v759, %v758
        %v960 = vpack.c.bf16 %v761, %v760
        %v961 = vpack.c.bf16 %v763, %v762
        %v962 = vld [vmem:[#allocation15] sm:$0xf]
        %v963 = vld [vmem:[#allocation15 + $0x4] sm:$0xf]
        %v964 = vld [vmem:[#allocation15 + $0x8] sm:$0xf]
        %v965 = vld [vmem:[#allocation15 + $0xc] sm:$0xf]
        %v966 = vld [vmem:[#allocation15 + $0x10] sm:$0xf]
        %v967 = vld [vmem:[#allocation15 + $0x14] sm:$0xf]
        %v968 = vld [vmem:[#allocation15 + $0x18] sm:$0xf]
        %v969 = vld [vmem:[#allocation15 + $0x1c] sm:$0xf]
        %v970 = vld [vmem:[#allocation15 + $0x20] sm:$0xf]
        %v971 = vld [vmem:[#allocation15 + $0x24] sm:$0xf]
        %v972 = vld [vmem:[#allocation15 + $0x28] sm:$0xf]
        %v973 = vld [vmem:[#allocation15 + $0x2c] sm:$0xf]
        %v974 = vld [vmem:[#allocation15 + $0x30] sm:$0xf]
        %v975 = vld [vmem:[#allocation15 + $0x34] sm:$0xf]
        %v976 = vld [vmem:[#allocation15 + $0x38] sm:$0xf]
        %v977 = vld [vmem:[#allocation15 + $0x3c] sm:$0xf]
        %v994 = vunpack.c.l.b16 %v962
        %v995 = vunpack.c.l.b16 %v963
        %v996 = vunpack.c.l.b16 %v964
        %v997 = vunpack.c.l.b16 %v965
        %v998 = vunpack.c.l.b16 %v966
        %v999 = vunpack.c.l.b16 %v967
        %v1000 = vunpack.c.l.b16 %v968
        %v1001 = vunpack.c.l.b16 %v969
        %v1002 = vunpack.c.l.b16 %v970
        %v1003 = vunpack.c.l.b16 %v971
        %v1004 = vunpack.c.l.b16 %v972
        %v1005 = vunpack.c.l.b16 %v973
        %v1006 = vunpack.c.l.b16 %v974
        %v1007 = vunpack.c.l.b16 %v975
        %v1008 = vunpack.c.l.b16 %v976
        %v1009 = vunpack.c.l.b16 %v977
        %v1010 = vpack.c.b16 %v995, %v994
        %v1011 = vpack.c.b16 %v997, %v996
        %v1012 = vpack.c.b16 %v999, %v998
        %v1013 = vpack.c.b16 %v1001, %v1000
        %v1014 = vpack.c.b16 %v1003, %v1002
        %v1015 = vpack.c.b16 %v1005, %v1004
        %v1016 = vpack.c.b16 %v1007, %v1006
        %v1017 = vpack.c.b16 %v1009, %v1008
        %1026 = vmatpush.bf16.msra.mxu0 %v1017
        %1027 = vmatpush.bf16.msra.mxu0 %v1016
        %1028 = vmatpush.bf16.msra.mxu0 %v1015
        %1029 = vmatpush.bf16.msra.mxu0 %v1014
        %1030 = vmatpush.bf16.msra.mxu0 %v1013
        %1031 = vmatpush.bf16.msra.mxu0 %v1012
        %1032 = vmatpush.bf16.msra.mxu0 %v1011
        %1033 = vmatpush.bf16.msra.mxu0 %v1010
        %1034 = vmatmul.bf16.gmra.mxu0 %v958
        %v1035 = vpop.f32.mrf.mxu0
        %v1036 = vadd.f32 0.0, %v1035
        %v1037 = vpop.f32.mrf.mxu0
        %v1038 = vadd.f32 0.0, %v1037
        %1039 = vmatmul.bf16.gmra.mxu0 %v959
        %v1040 = vpop.f32.mrf.mxu0
        %v1041 = vadd.f32 0.0, %v1040
        %v1042 = vpop.f32.mrf.mxu0
        %v1043 = vadd.f32 0.0, %v1042
        %1044 = vmatmul.bf16.gmra.mxu0 %v960
        %v1045 = vpop.f32.mrf.mxu0
        %v1046 = vadd.f32 0.0, %v1045
        %v1047 = vpop.f32.mrf.mxu0
        %v1048 = vadd.f32 0.0, %v1047
        %1049 = vmatmul.bf16.gmra.mxu0 %v961
        %v1050 = vpop.f32.mrf.mxu0
        %v1051 = vadd.f32 0.0, %v1050
        %v1052 = vpop.f32.mrf.mxu0
        %v1053 = vadd.f32 0.0, %v1052
        %1054 = vdwg.mxu0
        %1055 = vst [vmem:[#allocation3] sm:$0xff] %v842
        %1056 = vst [vmem:[#allocation3 + $0x8] sm:$0xff] %v844
        %1057 = vst [vmem:[#allocation3 + $0x10] sm:$0xff] %v847
        %1058 = vst [vmem:[#allocation3 + $0x18] sm:$0xff] %v849
        %1059 = vst [vmem:[#allocation3 + $0x20] sm:$0xff] %v852
        %1060 = vst [vmem:[#allocation3 + $0x28] sm:$0xff] %v854
        %1061 = vst [vmem:[#allocation3 + $0x30] sm:$0xff] %v857
        %1062 = vst [vmem:[#allocation3 + $0x38] sm:$0xff] %v859
        %1063 = vst [vmem:[#allocation4] sm:$0xff] %v939
        %1064 = vst [vmem:[#allocation4 + $0x8] sm:$0xff] %v941
        %1065 = vst [vmem:[#allocation4 + $0x10] sm:$0xff] %v944
        %1066 = vst [vmem:[#allocation4 + $0x18] sm:$0xff] %v946
        %1067 = vst [vmem:[#allocation4 + $0x20] sm:$0xff] %v949
        %1068 = vst [vmem:[#allocation4 + $0x28] sm:$0xff] %v951
        %1069 = vst [vmem:[#allocation4 + $0x30] sm:$0xff] %v954
        %1070 = vst [vmem:[#allocation4 + $0x38] sm:$0xff] %v956
        %v1071 = vsub.f32 0.0, %v1036
        %v1072 = vsub.f32 0.0, %v1038
        %v1073 = vsub.f32 0.0, %v1041
        %v1074 = vsub.f32 0.0, %v1043
        %v1075 = vsub.f32 0.0, %v1046
        %v1076 = vsub.f32 0.0, %v1048
        %v1077 = vsub.f32 0.0, %v1051
        %v1078 = vsub.f32 0.0, %v1053
        %v1079 = vmul.f32 %v1071, 1.442695
        %v1080 = vpow.pop %v1079
        %v1081 = vmul.f32 %v1072, 1.442695
        %v1082 = vpow.pop %v1081
        %v1083 = vmul.f32 %v1073, 1.442695
        %v1084 = vpow.pop %v1083
        %v1085 = vmul.f32 %v1074, 1.442695
        %v1086 = vpow.pop %v1085
        %v1087 = vmul.f32 %v1075, 1.442695
        %v1088 = vpow.pop %v1087
        %v1089 = vmul.f32 %v1076, 1.442695
        %v1090 = vpow.pop %v1089
        %v1091 = vmul.f32 %v1077, 1.442695
        %v1092 = vpow.pop %v1091
        %v1093 = vmul.f32 %v1078, 1.442695
        %v1094 = vpow.pop %v1093
        %v1095 = vadd.f32 %v1080, 1.0
        %v1096 = vadd.f32 %v1082, 1.0
        %v1097 = vadd.f32 %v1084, 1.0
        %v1098 = vadd.f32 %v1086, 1.0
        %v1099 = vadd.f32 %v1088, 1.0
        %v1100 = vadd.f32 %v1090, 1.0
        %v1101 = vadd.f32 %v1092, 1.0
        %v1102 = vadd.f32 %v1094, 1.0
        %v1103 = vrcp.pop %v1095
        %v1104 = vmul.f32 %v1095, %v1103
        %v1105 = vsub.f32 1.0, %v1104
        %v1106 = vmul.f32 %v1103, %v1105
        %v1107 = vadd.f32 %v1103, %v1106
        %vm1108 = vweird.f32 %v1095
        %vm1109 = vweird.f32 %v1103
        %vm1110 = vmor %vm1108, %vm1109
        %v1111 = vsel %vm1110, %v1103, %v1107
        %v1112 = vand.u32 2147483647, %v1095
        %vm1113 = vcmp.eq.f32.partialorder %v1112, 8.507059e+37
        %v1114 = vand.u32 %v1095, 2147483648
        %v1115 = vor.u32 1.1754944e-38, %v1114
        %v1116 = vsel %vm1113, %v1115, %v1111
        %v1117 = vmul.f32 1.0, %v1116
        %v1118 = vrcp.pop %v1096
        %v1119 = vmul.f32 %v1096, %v1118
        %v1120 = vsub.f32 1.0, %v1119
        %v1121 = vmul.f32 %v1118, %v1120
        %v1122 = vadd.f32 %v1118, %v1121
        %vm1123 = vweird.f32 %v1096
        %vm1124 = vweird.f32 %v1118
        %vm1125 = vmor %vm1123, %vm1124
        %v1126 = vsel %vm1125, %v1118, %v1122
        %v1127 = vand.u32 2147483647, %v1096
        %vm1128 = vcmp.eq.f32.partialorder %v1127, 8.507059e+37
        %v1129 = vand.u32 %v1096, 2147483648
        %v1130 = vor.u32 1.1754944e-38, %v1129
        %v1131 = vsel %vm1128, %v1130, %v1126
        %v1132 = vmul.f32 1.0, %v1131
        %v1133 = vrcp.pop %v1097
        %v1134 = vmul.f32 %v1097, %v1133
        %v1135 = vsub.f32 1.0, %v1134
        %v1136 = vmul.f32 %v1133, %v1135
        %v1137 = vadd.f32 %v1133, %v1136
        %vm1138 = vweird.f32 %v1097
        %vm1139 = vweird.f32 %v1133
        %vm1140 = vmor %vm1138, %vm1139
        %v1141 = vsel %vm1140, %v1133, %v1137
        %v1142 = vand.u32 2147483647, %v1097
        %vm1143 = vcmp.eq.f32.partialorder %v1142, 8.507059e+37
        %v1144 = vand.u32 %v1097, 2147483648
        %v1145 = vor.u32 1.1754944e-38, %v1144
        %v1146 = vsel %vm1143, %v1145, %v1141
        %v1147 = vmul.f32 1.0, %v1146
        %v1148 = vrcp.pop %v1098
        %v1149 = vmul.f32 %v1098, %v1148
        %v1150 = vsub.f32 1.0, %v1149
        %v1151 = vmul.f32 %v1148, %v1150
        %v1152 = vadd.f32 %v1148, %v1151
        %vm1153 = vweird.f32 %v1098
        %vm1154 = vweird.f32 %v1148
        %vm1155 = vmor %vm1153, %vm1154
        %v1156 = vsel %vm1155, %v1148, %v1152
        %v1157 = vand.u32 2147483647, %v1098
        %vm1158 = vcmp.eq.f32.partialorder %v1157, 8.507059e+37
        %v1159 = vand.u32 %v1098, 2147483648
        %v1160 = vor.u32 1.1754944e-38, %v1159
        %v1161 = vsel %vm1158, %v1160, %v1156
        %v1162 = vmul.f32 1.0, %v1161
        %v1163 = vrcp.pop %v1099
        %v1164 = vmul.f32 %v1099, %v1163
        %v1165 = vsub.f32 1.0, %v1164
        %v1166 = vmul.f32 %v1163, %v1165
        %v1167 = vadd.f32 %v1163, %v1166
        %vm1168 = vweird.f32 %v1099
        %vm1169 = vweird.f32 %v1163
        %vm1170 = vmor %vm1168, %vm1169
        %v1171 = vsel %vm1170, %v1163, %v1167
        %v1172 = vand.u32 2147483647, %v1099
        %vm1173 = vcmp.eq.f32.partialorder %v1172, 8.507059e+37
        %v1174 = vand.u32 %v1099, 2147483648
        %v1175 = vor.u32 1.1754944e-38, %v1174
        %v1176 = vsel %vm1173, %v1175, %v1171
        %v1177 = vmul.f32 1.0, %v1176
        %v1178 = vrcp.pop %v1100
        %v1179 = vmul.f32 %v1100, %v1178
        %v1180 = vsub.f32 1.0, %v1179
        %v1181 = vmul.f32 %v1178, %v1180
        %v1182 = vadd.f32 %v1178, %v1181
        %vm1183 = vweird.f32 %v1100
        %vm1184 = vweird.f32 %v1178
        %vm1185 = vmor %vm1183, %vm1184
        %v1186 = vsel %vm1185, %v1178, %v1182
        %v1187 = vand.u32 2147483647, %v1100
        %vm1188 = vcmp.eq.f32.partialorder %v1187, 8.507059e+37
        %v1189 = vand.u32 %v1100, 2147483648
        %v1190 = vor.u32 1.1754944e-38, %v1189
        %v1191 = vsel %vm1188, %v1190, %v1186
        %v1192 = vmul.f32 1.0, %v1191
        %v1193 = vrcp.pop %v1101
        %v1194 = vmul.f32 %v1101, %v1193
        %v1195 = vsub.f32 1.0, %v1194
        %v1196 = vmul.f32 %v1193, %v1195
        %v1197 = vadd.f32 %v1193, %v1196
        %vm1198 = vweird.f32 %v1101
        %vm1199 = vweird.f32 %v1193
        %vm1200 = vmor %vm1198, %vm1199
        %v1201 = vsel %vm1200, %v1193, %v1197
        %v1202 = vand.u32 2147483647, %v1101
        %vm1203 = vcmp.eq.f32.partialorder %v1202, 8.507059e+37
        %v1204 = vand.u32 %v1101, 2147483648
        %v1205 = vor.u32 1.1754944e-38, %v1204
        %v1206 = vsel %vm1203, %v1205, %v1201
        %v1207 = vmul.f32 1.0, %v1206
        %v1208 = vrcp.pop %v1102
        %v1209 = vmul.f32 %v1102, %v1208
        %v1210 = vsub.f32 1.0, %v1209
        %v1211 = vmul.f32 %v1208, %v1210
        %v1212 = vadd.f32 %v1208, %v1211
        %vm1213 = vweird.f32 %v1102
        %vm1214 = vweird.f32 %v1208
        %vm1215 = vmor %vm1213, %vm1214
        %v1216 = vsel %vm1215, %v1208, %v1212
        %v1217 = vand.u32 2147483647, %v1102
        %vm1218 = vcmp.eq.f32.partialorder %v1217, 8.507059e+37
        %v1219 = vand.u32 %v1102, 2147483648
        %v1220 = vor.u32 1.1754944e-38, %v1219
        %v1221 = vsel %vm1218, %v1220, %v1216
        %v1222 = vmul.f32 1.0, %v1221
        %v1223 = vpack.c.bf16 %v1117, %v1117
        %v1224 = vpack.c.bf16 %v1132, %v1132
        %v1225 = vpack.c.bf16 %v1147, %v1147
        %v1226 = vpack.c.bf16 %v1162, %v1162
        %v1227 = vpack.c.bf16 %v1177, %v1177
        %v1228 = vpack.c.bf16 %v1192, %v1192
        %v1229 = vpack.c.bf16 %v1207, %v1207
        %v1230 = vpack.c.bf16 %v1222, %v1222
        %1231 = vst [vmem:[#allocation5] sm:$0xf] %v1223
        %1232 = vst [vmem:[#allocation5 + $0x4] sm:$0xf] %v1224
        %1233 = vst [vmem:[#allocation5 + $0x8] sm:$0xf] %v1225
        %1234 = vst [vmem:[#allocation5 + $0xc] sm:$0xf] %v1226
        %1235 = vst [vmem:[#allocation5 + $0x10] sm:$0xf] %v1227
        %1236 = vst [vmem:[#allocation5 + $0x14] sm:$0xf] %v1228
        %1237 = vst [vmem:[#allocation5 + $0x18] sm:$0xf] %v1229
        %1238 = vst [vmem:[#allocation5 + $0x1c] sm:$0xf] %v1230
        %v1239 = vld [vmem:[%s8] sm:$0x1]
        %v1241 = vperm.slane %v1239, 0
        %v1243 = vld [vmem:[%s7] sm:$0x1]
        %v1244 = vmul.f32 %v1243, 1.442695
        %v1245 = vpow.pop %v1244
        %v1247 = vperm.slane %v1245, 0
        %v1249 = vld [vmem:[#allocation2] sm:$0xff]
        %s1250 = scalar_lea.vmem [#allocation2], 8
        %v1251 = vld [vmem:[%s1250] sm:$0xff]
        %s1252 = scalar_lea.vmem [#allocation2], 16
        %v1253 = vld [vmem:[%s1252] sm:$0xff]
        %v1254 = vld [vmem:[#allocation3] sm:$0xff]
        %v1255 = vld [vmem:[#allocation4] sm:$0xff]
        %v1256 = vadd.f32 %v1254, %v1241
        %v1257 = vsub.f32 %v1256, %v1253
        %v1258 = vand.u32 2147483647, %v1257
        %v1259 = vsub.f32 0.0, %v1258
        %v1260 = vmul.f32 %v1259, 1.442695
        %v1261 = vpow.pop %v1260
        %vm1262 = vcmp.ge.f32.partialorder %v1257, 0.0
        %v1263 = vsel %vm1262, %v1261, 1.0
        %v1264 = vsel %vm1262, 1.0, %v1261
        %v1265 = vmul.f32 %v1263, %v1249
        %v1266 = vmul.f32 %v1264, %v1255
        %v1267 = vadd.f32 %v1265, %v1266
        %v1268 = vmul.f32 %v1263, %v1251
        %v1269 = vadd.f32 %v1268, %v1264
        %v1270 = vrcp.pop %v1269
        %v1271 = vmul.f32 %v1267, %v1270
        %v1272 = vld [vmem:[#allocation5] sm:$0xf]
        %v1273 = vunpack.c.l.bf16 %v1272
        %v1274 = vmul.f32 %v1271, %v1273
        %v1275 = vpack.c.bf16 %v1274, %v1274
        %1276 = vst [vmem:[#allocation5] sm:$0xf] %v1275
        %v1277 = vsub.f32 %v1253, %v1247
        %v1278 = vsub.f32 %v1254, %v1277
        %v1279 = vand.u32 2147483647, %v1278
        %v1280 = vsub.f32 0.0, %v1279
        %v1281 = vmul.f32 %v1280, 1.442695
        %v1282 = vpow.pop %v1281
        %vm1283 = vcmp.ge.f32.partialorder %v1278, 0.0
        %v1284 = vsel %vm1283, %v1282, 1.0
        %v1285 = vsel %vm1283, 1.0, %v1282
        %v1286 = vmul.f32 %v1284, %v1249
        %v1287 = vmul.f32 %v1285, %v1255
        %v1288 = vadd.f32 %v1286, %v1287
        %v1289 = vmul.f32 %v1284, %v1251
        %v1290 = vadd.f32 %v1289, %v1285
        %v1291 = vmax.f32 %v1277, %v1254
        %s1292 = scalar_lea.vmem [#allocation3], 8
        %v1293 = vld [vmem:[%s1292] sm:$0xff]
        %s1294 = scalar_lea.vmem [#allocation4], 8
        %v1295 = vld [vmem:[%s1294] sm:$0xff]
        %v1296 = vadd.f32 %v1293, %v1241
        %v1297 = vsub.f32 %v1296, %v1291
        %v1298 = vand.u32 2147483647, %v1297
        %v1299 = vsub.f32 0.0, %v1298
        %v1300 = vmul.f32 %v1299, 1.442695
        %v1301 = vpow.pop %v1300
        %vm1302 = vcmp.ge.f32.partialorder %v1297, 0.0
        %v1303 = vsel %vm1302, %v1301, 1.0
        %v1304 = vsel %vm1302, 1.0, %v1301
        %v1305 = vmul.f32 %v1303, %v1288
        %v1306 = vmul.f32 %v1304, %v1295
        %v1307 = vadd.f32 %v1305, %v1306
        %v1308 = vmul.f32 %v1303, %v1290
        %v1309 = vadd.f32 %v1308, %v1304
        %v1310 = vrcp.pop %v1309
        %v1311 = vmul.f32 %v1307, %v1310
        %s1312 = scalar_lea.vmem [#allocation5], 4
        %v1313 = vld [vmem:[%s1312] sm:$0xf]
        %v1314 = vunpack.c.l.bf16 %v1313
        %v1315 = vmul.f32 %v1311, %v1314
        %v1316 = vpack.c.bf16 %v1315, %v1315
        %1317 = vst [vmem:[%s1312] sm:$0xf] %v1316
        %v1318 = vsub.f32 %v1291, %v1247
        %v1319 = vsub.f32 %v1293, %v1318
        %v1320 = vand.u32 2147483647, %v1319
        %v1321 = vsub.f32 0.0, %v1320
        %v1322 = vmul.f32 %v1321, 1.442695
        %v1323 = vpow.pop %v1322
        %vm1324 = vcmp.ge.f32.partialorder %v1319, 0.0
        %v1325 = vsel %vm1324, %v1323, 1.0
        %v1326 = vsel %vm1324, 1.0, %v1323
        %v1327 = vmul.f32 %v1325, %v1288
        %v1328 = vmul.f32 %v1326, %v1295
        %v1329 = vadd.f32 %v1327, %v1328
        %v1330 = vmul.f32 %v1325, %v1290
        %v1331 = vadd.f32 %v1330, %v1326
        %v1332 = vmax.f32 %v1318, %v1293
        %s1333 = scalar_lea.vmem [#allocation3], 16
        %v1334 = vld [vmem:[%s1333] sm:$0xff]
        %s1335 = scalar_lea.vmem [#allocation4], 16
        %v1336 = vld [vmem:[%s1335] sm:$0xff]
        %v1337 = vadd.f32 %v1334, %v1241
        %v1338 = vsub.f32 %v1337, %v1332
        %v1339 = vand.u32 2147483647, %v1338
        %v1340 = vsub.f32 0.0, %v1339
        %v1341 = vmul.f32 %v1340, 1.442695
        %v1342 = vpow.pop %v1341
        %vm1343 = vcmp.ge.f32.partialorder %v1338, 0.0
        %v1344 = vsel %vm1343, %v1342, 1.0
        %v1345 = vsel %vm1343, 1.0, %v1342
        %v1346 = vmul.f32 %v1344, %v1329
        %v1347 = vmul.f32 %v1345, %v1336
        %v1348 = vadd.f32 %v1346, %v1347
        %v1349 = vmul.f32 %v1344, %v1331
        %v1350 = vadd.f32 %v1349, %v1345
        %v1351 = vrcp.pop %v1350
        %v1352 = vmul.f32 %v1348, %v1351
        %s1353 = scalar_lea.vmem [#allocation5], 8
        %v1354 = vld [vmem:[%s1353] sm:$0xf]
        %v1355 = vunpack.c.l.bf16 %v1354
        %v1356 = vmul.f32 %v1352, %v1355
        %v1357 = vpack.c.bf16 %v1356, %v1356
        %1358 = vst [vmem:[%s1353] sm:$0xf] %v1357
        %v1359 = vsub.f32 %v1332, %v1247
        %v1360 = vsub.f32 %v1334, %v1359
        %v1361 = vand.u32 2147483647, %v1360
        %v1362 = vsub.f32 0.0, %v1361
        %v1363 = vmul.f32 %v1362, 1.442695
        %v1364 = vpow.pop %v1363
        %vm1365 = vcmp.ge.f32.partialorder %v1360, 0.0
        %v1366 = vsel %vm1365, %v1364, 1.0
        %v1367 = vsel %vm1365, 1.0, %v1364
        %v1368 = vmul.f32 %v1366, %v1329
        %v1369 = vmul.f32 %v1367, %v1336
        %v1370 = vadd.f32 %v1368, %v1369
        %v1371 = vmul.f32 %v1366, %v1331
        %v1372 = vadd.f32 %v1371, %v1367
        %v1373 = vmax.f32 %v1359, %v1334
        %s1374 = scalar_lea.vmem [#allocation3], 24
        %v1375 = vld [vmem:[%s1374] sm:$0xff]
        %s1376 = scalar_lea.vmem [#allocation4], 24
        %v1377 = vld [vmem:[%s1376] sm:$0xff]
        %v1378 = vadd.f32 %v1375, %v1241
        %v1379 = vsub.f32 %v1378, %v1373
        %v1380 = vand.u32 2147483647, %v1379
        %v1381 = vsub.f32 0.0, %v1380
        %v1382 = vmul.f32 %v1381, 1.442695
        %v1383 = vpow.pop %v1382
        %vm1384 = vcmp.ge.f32.partialorder %v1379, 0.0
        %v1385 = vsel %vm1384, %v1383, 1.0
        %v1386 = vsel %vm1384, 1.0, %v1383
        %v1387 = vmul.f32 %v1385, %v1370
        %v1388 = vmul.f32 %v1386, %v1377
        %v1389 = vadd.f32 %v1387, %v1388
        %v1390 = vmul.f32 %v1385, %v1372
        %v1391 = vadd.f32 %v1390, %v1386
        %v1392 = vrcp.pop %v1391
        %v1393 = vmul.f32 %v1389, %v1392
        %s1394 = scalar_lea.vmem [#allocation5], 12
        %v1395 = vld [vmem:[%s1394] sm:$0xf]
        %v1396 = vunpack.c.l.bf16 %v1395
        %v1397 = vmul.f32 %v1393, %v1396
        %v1398 = vpack.c.bf16 %v1397, %v1397
        %1399 = vst [vmem:[%s1394] sm:$0xf] %v1398
        %v1400 = vsub.f32 %v1373, %v1247
        %v1401 = vsub.f32 %v1375, %v1400
        %v1402 = vand.u32 2147483647, %v1401
        %v1403 = vsub.f32 0.0, %v1402
        %v1404 = vmul.f32 %v1403, 1.442695
        %v1405 = vpow.pop %v1404
        %vm1406 = vcmp.ge.f32.partialorder %v1401, 0.0
        %v1407 = vsel %vm1406, %v1405, 1.0
        %v1408 = vsel %vm1406, 1.0, %v1405
        %v1409 = vmul.f32 %v1407, %v1370
        %v1410 = vmul.f32 %v1408, %v1377
        %v1411 = vadd.f32 %v1409, %v1410
        %v1412 = vmul.f32 %v1407, %v1372
        %v1413 = vadd.f32 %v1412, %v1408
        %v1414 = vmax.f32 %v1400, %v1375
        %s1415 = scalar_lea.vmem [#allocation3], 32
        %v1416 = vld [vmem:[%s1415] sm:$0xff]
        %s1417 = scalar_lea.vmem [#allocation4], 32
        %v1418 = vld [vmem:[%s1417] sm:$0xff]
        %v1419 = vadd.f32 %v1416, %v1241
        %v1420 = vsub.f32 %v1419, %v1414
        %v1421 = vand.u32 2147483647, %v1420
        %v1422 = vsub.f32 0.0, %v1421
        %v1423 = vmul.f32 %v1422, 1.442695
        %v1424 = vpow.pop %v1423
        %vm1425 = vcmp.ge.f32.partialorder %v1420, 0.0
        %v1426 = vsel %vm1425, %v1424, 1.0
        %v1427 = vsel %vm1425, 1.0, %v1424
        %v1428 = vmul.f32 %v1426, %v1411
        %v1429 = vmul.f32 %v1427, %v1418
        %v1430 = vadd.f32 %v1428, %v1429
        %v1431 = vmul.f32 %v1426, %v1413
        %v1432 = vadd.f32 %v1431, %v1427
        %v1433 = vrcp.pop %v1432
        %v1434 = vmul.f32 %v1430, %v1433
        %s1435 = scalar_lea.vmem [#allocation5], 16
        %v1436 = vld [vmem:[%s1435] sm:$0xf]
        %v1437 = vunpack.c.l.bf16 %v1436
        %v1438 = vmul.f32 %v1434, %v1437
        %v1439 = vpack.c.bf16 %v1438, %v1438
        %1440 = vst [vmem:[%s1435] sm:$0xf] %v1439
        %v1441 = vsub.f32 %v1414, %v1247
        %v1442 = vsub.f32 %v1416, %v1441
        %v1443 = vand.u32 2147483647, %v1442
        %v1444 = vsub.f32 0.0, %v1443
        %v1445 = vmul.f32 %v1444, 1.442695
        %v1446 = vpow.pop %v1445
        %vm1447 = vcmp.ge.f32.partialorder %v1442, 0.0
        %v1448 = vsel %vm1447, %v1446, 1.0
        %v1449 = vsel %vm1447, 1.0, %v1446
        %v1450 = vmul.f32 %v1448, %v1411
        %v1451 = vmul.f32 %v1449, %v1418
        %v1452 = vadd.f32 %v1450, %v1451
        %v1453 = vmul.f32 %v1448, %v1413
        %v1454 = vadd.f32 %v1453, %v1449
        %v1455 = vmax.f32 %v1441, %v1416
        %s1456 = scalar_lea.vmem [#allocation3], 40
        %v1457 = vld [vmem:[%s1456] sm:$0xff]
        %s1458 = scalar_lea.vmem [#allocation4], 40
        %v1459 = vld [vmem:[%s1458] sm:$0xff]
        %v1460 = vadd.f32 %v1457, %v1241
        %v1461 = vsub.f32 %v1460, %v1455
        %v1462 = vand.u32 2147483647, %v1461
        %v1463 = vsub.f32 0.0, %v1462
        %v1464 = vmul.f32 %v1463, 1.442695
        %v1465 = vpow.pop %v1464
        %vm1466 = vcmp.ge.f32.partialorder %v1461, 0.0
        %v1467 = vsel %vm1466, %v1465, 1.0
        %v1468 = vsel %vm1466, 1.0, %v1465
        %v1469 = vmul.f32 %v1467, %v1452
        %v1470 = vmul.f32 %v1468, %v1459
        %v1471 = vadd.f32 %v1469, %v1470
        %v1472 = vmul.f32 %v1467, %v1454
        %v1473 = vadd.f32 %v1472, %v1468
        %v1474 = vrcp.pop %v1473
        %v1475 = vmul.f32 %v1471, %v1474
        %s1476 = scalar_lea.vmem [#allocation5], 20
        %v1477 = vld [vmem:[%s1476] sm:$0xf]
        %v1478 = vunpack.c.l.bf16 %v1477
        %v1479 = vmul.f32 %v1475, %v1478
        %v1480 = vpack.c.bf16 %v1479, %v1479
        %1481 = vst [vmem:[%s1476] sm:$0xf] %v1480
        %v1482 = vsub.f32 %v1455, %v1247
        %v1483 = vsub.f32 %v1457, %v1482
        %v1484 = vand.u32 2147483647, %v1483
        %v1485 = vsub.f32 0.0, %v1484
        %v1486 = vmul.f32 %v1485, 1.442695
        %v1487 = vpow.pop %v1486
        %vm1488 = vcmp.ge.f32.partialorder %v1483, 0.0
        %v1489 = vsel %vm1488, %v1487, 1.0
        %v1490 = vsel %vm1488, 1.0, %v1487
        %v1491 = vmul.f32 %v1489, %v1452
        %v1492 = vmul.f32 %v1490, %v1459
        %v1493 = vadd.f32 %v1491, %v1492
        %v1494 = vmul.f32 %v1489, %v1454
        %v1495 = vadd.f32 %v1494, %v1490
        %v1496 = vmax.f32 %v1482, %v1457
        %s1497 = scalar_lea.vmem [#allocation3], 48
        %v1498 = vld [vmem:[%s1497] sm:$0xff]
        %s1499 = scalar_lea.vmem [#allocation4], 48
        %v1500 = vld [vmem:[%s1499] sm:$0xff]
        %v1501 = vadd.f32 %v1498, %v1241
        %v1502 = vsub.f32 %v1501, %v1496
        %v1503 = vand.u32 2147483647, %v1502
        %v1504 = vsub.f32 0.0, %v1503
        %v1505 = vmul.f32 %v1504, 1.442695
        %v1506 = vpow.pop %v1505
        %vm1507 = vcmp.ge.f32.partialorder %v1502, 0.0
        %v1508 = vsel %vm1507, %v1506, 1.0
        %v1509 = vsel %vm1507, 1.0, %v1506
        %v1510 = vmul.f32 %v1508, %v1493
        %v1511 = vmul.f32 %v1509, %v1500
        %v1512 = vadd.f32 %v1510, %v1511
        %v1513 = vmul.f32 %v1508, %v1495
        %v1514 = vadd.f32 %v1513, %v1509
        %v1515 = vrcp.pop %v1514
        %v1516 = vmul.f32 %v1512, %v1515
        %s1517 = scalar_lea.vmem [#allocation5], 24
        %v1518 = vld [vmem:[%s1517] sm:$0xf]
        %v1519 = vunpack.c.l.bf16 %v1518
        %v1520 = vmul.f32 %v1516, %v1519
        %v1521 = vpack.c.bf16 %v1520, %v1520
        %1522 = vst [vmem:[%s1517] sm:$0xf] %v1521
        %v1523 = vsub.f32 %v1496, %v1247
        %v1524 = vsub.f32 %v1498, %v1523
        %v1525 = vand.u32 2147483647, %v1524
        %v1526 = vsub.f32 0.0, %v1525
        %v1527 = vmul.f32 %v1526, 1.442695
        %v1528 = vpow.pop %v1527
        %vm1529 = vcmp.ge.f32.partialorder %v1524, 0.0
        %v1530 = vsel %vm1529, %v1528, 1.0
        %v1531 = vsel %vm1529, 1.0, %v1528
        %v1532 = vmul.f32 %v1530, %v1493
        %v1533 = vmul.f32 %v1531, %v1500
        %v1534 = vadd.f32 %v1532, %v1533
        %v1535 = vmul.f32 %v1530, %v1495
        %v1536 = vadd.f32 %v1535, %v1531
        %v1537 = vmax.f32 %v1523, %v1498
        %s1538 = scalar_lea.vmem [#allocation3], 56
        %v1539 = vld [vmem:[%s1538] sm:$0xff]
        %s1540 = scalar_lea.vmem [#allocation4], 56
        %v1541 = vld [vmem:[%s1540] sm:$0xff]
        %v1542 = vadd.f32 %v1539, %v1241
        %v1543 = vsub.f32 %v1542, %v1537
        %v1544 = vand.u32 2147483647, %v1543
        %v1545 = vsub.f32 0.0, %v1544
        %v1546 = vmul.f32 %v1545, 1.442695
        %v1547 = vpow.pop %v1546
        %vm1548 = vcmp.ge.f32.partialorder %v1543, 0.0
        %v1549 = vsel %vm1548, %v1547, 1.0
        %v1550 = vsel %vm1548, 1.0, %v1547
        %v1551 = vmul.f32 %v1549, %v1534
        %v1552 = vmul.f32 %v1550, %v1541
        %v1553 = vadd.f32 %v1551, %v1552
        %v1554 = vmul.f32 %v1549, %v1536
        %v1555 = vadd.f32 %v1554, %v1550
        %v1556 = vrcp.pop %v1555
        %v1557 = vmul.f32 %v1553, %v1556
        %s1558 = scalar_lea.vmem [#allocation5], 28
        %v1559 = vld [vmem:[%s1558] sm:$0xf]
        %v1560 = vunpack.c.l.bf16 %v1559
        %v1561 = vmul.f32 %v1557, %v1560
        %v1562 = vpack.c.bf16 %v1561, %v1561
        %1563 = vst [vmem:[%s1558] sm:$0xf] %v1562
        %v1564 = vsub.f32 %v1537, %v1247
        %v1565 = vsub.f32 %v1539, %v1564
        %v1566 = vand.u32 2147483647, %v1565
        %v1567 = vsub.f32 0.0, %v1566
        %v1568 = vmul.f32 %v1567, 1.442695
        %v1569 = vpow.pop %v1568
        %vm1570 = vcmp.ge.f32.partialorder %v1565, 0.0
        %v1571 = vsel %vm1570, %v1569, 1.0
        %v1572 = vsel %vm1570, 1.0, %v1569
        %v1573 = vmul.f32 %v1571, %v1534
        %v1574 = vmul.f32 %v1572, %v1541
        %v1575 = vadd.f32 %v1573, %v1574
        %v1576 = vmul.f32 %v1571, %v1536
        %v1577 = vadd.f32 %v1576, %v1572
        %v1578 = vmax.f32 %v1564, %v1539
        %v1579 = vld [vmem:[#allocation5] sm:$0xf]
        %v1580 = vld [vmem:[#allocation5 + $0x4] sm:$0xf]
        %v1581 = vld [vmem:[#allocation5 + $0x8] sm:$0xf]
        %v1582 = vld [vmem:[#allocation5 + $0xc] sm:$0xf]
        %v1583 = vld [vmem:[#allocation5 + $0x10] sm:$0xf]
        %v1584 = vld [vmem:[#allocation5 + $0x14] sm:$0xf]
        %v1585 = vld [vmem:[#allocation5 + $0x18] sm:$0xf]
        %v1586 = vld [vmem:[#allocation5 + $0x1c] sm:$0xf]
        %v1587 = vld [vmem:[#allocation17] sm:$0xf]
        %v1588 = vld [vmem:[#allocation17 + $0x4] sm:$0xf]
        %v1589 = vld [vmem:[#allocation17 + $0x8] sm:$0xf]
        %v1590 = vld [vmem:[#allocation17 + $0xc] sm:$0xf]
        %v1591 = vld [vmem:[#allocation17 + $0x10] sm:$0xf]
        %v1592 = vld [vmem:[#allocation17 + $0x14] sm:$0xf]
        %v1593 = vld [vmem:[#allocation17 + $0x18] sm:$0xf]
        %v1594 = vld [vmem:[#allocation17 + $0x1c] sm:$0xf]
        %v1595 = vld [vmem:[#allocation17 + $0x20] sm:$0xf]
        %v1596 = vld [vmem:[#allocation17 + $0x24] sm:$0xf]
        %v1597 = vld [vmem:[#allocation17 + $0x28] sm:$0xf]
        %v1598 = vld [vmem:[#allocation17 + $0x2c] sm:$0xf]
        %v1599 = vld [vmem:[#allocation17 + $0x30] sm:$0xf]
        %v1600 = vld [vmem:[#allocation17 + $0x34] sm:$0xf]
        %v1601 = vld [vmem:[#allocation17 + $0x38] sm:$0xf]
        %v1602 = vld [vmem:[#allocation17 + $0x3c] sm:$0xf]
        %v1611 = vunpack.c.l.b16 %v1579
        %v1612 = vunpack.c.l.b16 %v1580
        %v1613 = vunpack.c.l.b16 %v1581
        %v1614 = vunpack.c.l.b16 %v1582
        %v1615 = vunpack.c.l.b16 %v1583
        %v1616 = vunpack.c.l.b16 %v1584
        %v1617 = vunpack.c.l.b16 %v1585
        %v1618 = vunpack.c.l.b16 %v1586
        %v1619 = vpack.c.b16 %v1612, %v1611
        %v1620 = vpack.c.b16 %v1614, %v1613
        %v1621 = vpack.c.b16 %v1616, %v1615
        %v1622 = vpack.c.b16 %v1618, %v1617
        %v1643 = vunpack.c.l.b16 %v1587
        %v1644 = vunpack.c.l.b16 %v1588
        %v1645 = vunpack.c.l.b16 %v1589
        %v1646 = vunpack.c.l.b16 %v1590
        %v1647 = vunpack.c.l.b16 %v1591
        %v1648 = vunpack.c.l.b16 %v1592
        %v1649 = vunpack.c.l.b16 %v1593
        %v1650 = vunpack.c.l.b16 %v1594
        %v1651 = vunpack.c.l.b16 %v1595
        %v1652 = vunpack.c.l.b16 %v1596
        %v1653 = vunpack.c.l.b16 %v1597
        %v1654 = vunpack.c.l.b16 %v1598
        %v1655 = vunpack.c.l.b16 %v1599
        %v1656 = vunpack.c.l.b16 %v1600
        %v1657 = vunpack.c.l.b16 %v1601
        %v1658 = vunpack.c.l.b16 %v1602
        %v1659 = vpack.c.b16 %v1644, %v1643
        %v1660 = vpack.c.b16 %v1646, %v1645
        %v1661 = vpack.c.b16 %v1648, %v1647
        %v1662 = vpack.c.b16 %v1650, %v1649
        %v1663 = vpack.c.b16 %v1652, %v1651
        %v1664 = vpack.c.b16 %v1654, %v1653
        %v1665 = vpack.c.b16 %v1656, %v1655
        %v1666 = vpack.c.b16 %v1658, %v1657
        %1675 = vmatpush.bf16.msra.mxu0 %v1666
        %1676 = vmatpush.bf16.msra.mxu0 %v1665
        %1677 = vmatpush.bf16.msra.mxu0 %v1664
        %1678 = vmatpush.bf16.msra.mxu0 %v1663
        %1679 = vmatpush.bf16.msra.mxu0 %v1662
        %1680 = vmatpush.bf16.msra.mxu0 %v1661
        %1681 = vmatpush.bf16.msra.mxu0 %v1660
        %1682 = vmatpush.bf16.msra.mxu0 %v1659
        %1683 = vmatmul.bf16.gmra.mxu0 %v1619
        %v1684 = vpop.f32.mrf.mxu0
        %v1685 = vadd.f32 0.0, %v1684
        %v1686 = vpop.f32.mrf.mxu0
        %v1687 = vadd.f32 0.0, %v1686
        %1688 = vmatmul.bf16.gmra.mxu0 %v1620
        %v1689 = vpop.f32.mrf.mxu0
        %v1690 = vadd.f32 0.0, %v1689
        %v1691 = vpop.f32.mrf.mxu0
        %v1692 = vadd.f32 0.0, %v1691
        %1693 = vmatmul.bf16.gmra.mxu0 %v1621
        %v1694 = vpop.f32.mrf.mxu0
        %v1695 = vadd.f32 0.0, %v1694
        %v1696 = vpop.f32.mrf.mxu0
        %v1697 = vadd.f32 0.0, %v1696
        %1698 = vmatmul.bf16.gmra.mxu0 %v1622
        %v1699 = vpop.f32.mrf.mxu0
        %v1700 = vadd.f32 0.0, %v1699
        %v1701 = vpop.f32.mrf.mxu0
        %v1702 = vadd.f32 0.0, %v1701
        %1703 = vdwg.mxu0
        %1704 = vst [vmem:[%s652] sm:$0xff] %v1685
        %1705 = vst [vmem:[%s652 + $0x8] sm:$0xff] %v1687
        %1706 = vst [vmem:[%s652 + $0x10] sm:$0xff] %v1690
        %1707 = vst [vmem:[%s652 + $0x18] sm:$0xff] %v1692
        %1708 = vst [vmem:[%s652 + $0x20] sm:$0xff] %v1695
        %1709 = vst [vmem:[%s652 + $0x28] sm:$0xff] %v1697
        %1710 = vst [vmem:[%s652 + $0x30] sm:$0xff] %v1700
        %1711 = vst [vmem:[%s652 + $0x38] sm:$0xff] %v1702
        %1712 = vst [vmem:[#allocation2] sm:$0xff] %v1575
        %1713 = vst [vmem:[%s1250] sm:$0xff] %v1577
        %1714 = vst [vmem:[%s1252] sm:$0xff] %v1578
        %1715 = vst [vmem:[%s694] sm:$0xff] %v693
        %p1716 = scmp.eq.s32.totalorder %s45, 1
        // Predicated region
        $region101: #{tpu_custom_call.1} parent=67 // pred_check
          %p1717 = pneg %p1716
        $region102: #{tpu_custom_call.1} parent=67 // pred_check_branch
          %1719 = sbr.rel (%p1717) target = $region104
        $region103: #{tpu_custom_call.1} parent=67 // pred_region
          %1720 = vst [vmem:[%s659] sm:$0xff] %v693
          %1721 = vst [vmem:[%s666] sm:$0xff] %v1575
          %s1722 = scalar_lea.vmem %s666, 8 [#allocation21]
          %1723 = vst [vmem:[%s1722] sm:$0xff] %v1577
          %s1724 = scalar_lea.vmem %s666, 16 [#allocation21]
          %1725 = vst [vmem:[%s1724] sm:$0xff] %v1578
        $region104: #{tpu_custom_call.1} parent=67 // pred_fallthru
          _
        %s1726 = sand.u32 %s331, 1
        %s1727 = scalar_lea.sflag [#allocation8], %s1726
        %s1728 = sand.u32 %s331, 1
        %s1729 = smul.addr %s1728, 64
        %s1730 = scalar_lea.vmem [#allocation18], %s1729
        %s1731 = sand.u32 %s40, 1
        %s1732 = scalar_lea.sflag [#allocation20], %s1731
        %s1733 = sand.u32 %s357, 1
        %s1734 = smul.addr %s1733, 8
        %s1735 = scalar_lea.vmem [#allocation19], %s1734
        %s1736 = sand.u32 %s40, 1
        %s1737 = scalar_lea.sflag [#allocation20], %s1736
        %s1738 = sand.u32 %s383, 1
        %s1739 = smul.addr %s1738, 24
        %s1740 = scalar_lea.vmem [#allocation21], %s1739
        // Predicated region
        $region105: #{tpu_custom_call.1} parent=67 // pred_check
          %p1741 = pneg %p341
        $region106: #{tpu_custom_call.1} parent=67 // pred_check_branch
          %1743 = sbr.rel (%p1741) target = $region108
        $region107: #{tpu_custom_call.1} parent=67 // pred_region
          %s1744 = smul.u32 8, %s45
          %1746 = vsyncadd %s1727, 0
          %s1747 = smul.addr %s1744, 2
          %s1748 = sadd.s32 %s44, %s1747
          %s1749 = smul.addr %s1748, 8
          %s1750 = scalar_lea.hbm %s12, %s1749
          %s1751 = sshll.u32 %s1730, 4
          %s1752 = int_to_ptr.vmem [resolvable:$true] %s1751
          %s1753 = sshll.u32 %s1750, 4
          %s1754 = int_to_ptr.hbm [resolvable:$true] %s1753
          %1759 = dma.vmem_to_hbm [thread:$0]  %s1752, 1024, %s1754, %s1727, 128, 256, 8
        $region108: #{tpu_custom_call.1} parent=67 // pred_fallthru
          _
        // Predicated region
        $region109: #{tpu_custom_call.1} parent=67 // pred_check
          %p1760 = pneg %p367
        $region110: #{tpu_custom_call.1} parent=67 // pred_check_branch
          %1762 = sbr.rel (%p1760) target = $region112
        $region111: #{tpu_custom_call.1} parent=67 // pred_region
          %1764 = vsyncadd %s1732, 0
          %s1765 = smul.addr %s44, 8
          %s1766 = scalar_lea.hbm %s13, %s1765
          %s1768 = sshll.u32 %s1735, 4
          %s1769 = int_to_ptr.vmem [resolvable:$true] %s1768
          %s1770 = sshll.u32 %s1766, 4
          %s1771 = int_to_ptr.hbm [resolvable:$true] %s1770
          %1773 = dma.vmem_to_hbm [thread:$0]  %s1769, 128, %s1771, %s1732
        $region112: #{tpu_custom_call.1} parent=67 // pred_fallthru
          _
        // Predicated region
        $region113: #{tpu_custom_call.1} parent=67 // pred_check
          %p1774 = pneg %p393
        $region114: #{tpu_custom_call.1} parent=67 // pred_check_branch
          %1776 = sbr.rel (%p1774) target = $region116
        $region115: #{tpu_custom_call.1} parent=67 // pred_region
          %1778 = vsyncadd %s1737, 0
          %s1779 = smul.addr %s44, 8
          %s1780 = scalar_lea.hbm %s14, %s1779
          %s1781 = sshll.u32 %s1740, 4
          %s1782 = int_to_ptr.vmem [resolvable:$true] %s1781
          %s1783 = sshll.u32 %s1780, 4
          %s1784 = int_to_ptr.hbm [resolvable:$true] %s1783
          %1789 = dma.vmem_to_hbm [thread:$0]  %s1782, 384, %s1784, %s1737, 128, 256, 8
        $region116: #{tpu_custom_call.1} parent=67 // pred_fallthru
          _
      $region68: #{tpu_custom_call.1} parent=5 // pred_fallthru
        _
      %p1790 = scmp.le.s32.totalorder 2, %s35
      // Predicated region
      $region117: #{tpu_custom_call.1} parent=5 // pred_check
        %p1791 = pneg %p1790
      $region118: #{tpu_custom_call.1} parent=5 // pred_check_branch
        %1793 = sbr.rel (%p1791) target = $region120
      $region119: #{tpu_custom_call.1} parent=5 // pred_region
        %s1794 = ssub.s32 %s35, 2
        // Predicated region
        $region121: #{tpu_custom_call.1} parent=119 // pred_check
          %p1795 = pneg %p347
        $region122: #{tpu_custom_call.1} parent=119 // pred_check_branch
          %1797 = sbr.rel (%p1795) target = $region124
        $region123: #{tpu_custom_call.1} parent=119 // pred_region
          %s1798 = sand.u32 %s332, 1
          %s1799 = scalar_lea.sflag [#allocation8], %s1798
          %s1800 = sand.u32 %s332, 1
          %s1801 = smul.addr %s1800, 64
          %s1802 = scalar_lea.vmem [#allocation18], %s1801
          %1804 = dma.done %s1799, 1024
        $region124: #{tpu_custom_call.1} parent=119 // pred_fallthru
          _
        // Predicated region
        $region125: #{tpu_custom_call.1} parent=119 // pred_check
          %p1805 = pneg %p373
        $region126: #{tpu_custom_call.1} parent=119 // pred_check_branch
          %1807 = sbr.rel (%p1805) target = $region128
        $region127: #{tpu_custom_call.1} parent=119 // pred_region
          %s1808 = sand.u32 %s41, 1
          %s1809 = scalar_lea.sflag [#allocation20], %s1808
          %s1810 = sand.u32 %s358, 1
          %s1811 = smul.addr %s1810, 8
          %s1812 = scalar_lea.vmem [#allocation19], %s1811
          %1814 = dma.done %s1809, 128
        $region128: #{tpu_custom_call.1} parent=119 // pred_fallthru
          _
        // Predicated region
        $region129: #{tpu_custom_call.1} parent=119 // pred_check
          %p1815 = pneg %p399
        $region130: #{tpu_custom_call.1} parent=119 // pred_check_branch
          %1817 = sbr.rel (%p1815) target = $region132
        $region131: #{tpu_custom_call.1} parent=119 // pred_region
          %s1818 = sand.u32 %s41, 1
          %s1819 = scalar_lea.sflag [#allocation20], %s1818
          %s1820 = sand.u32 %s384, 1
          %s1821 = smul.addr %s1820, 24
          %s1822 = scalar_lea.vmem [#allocation21], %s1821
          %1824 = dma.done %s1819, 384
        $region132: #{tpu_custom_call.1} parent=119 // pred_fallthru
          _
      $region120: #{tpu_custom_call.1} parent=5 // pred_fallthru
        _
    $region6: #{tpu_custom_call.1} parent=1 // loop_footer
      %s39 = sadd.s32 1, %s35
    $region7: #{tpu_custom_call.1} parent=1 // loop_footer_branch
      %34 = sbr.rel target = $region3
    $region8: #{tpu_custom_call.1} parent=1 // loop_exit
      _
    %1825 = vsyncpa [#allocation7], 1
    %s1826 = scalar_lea.sflag [#allocation7], 1
    %1827 = vsyncpa %s1826, 1
    %1828 = vsyncpa [#allocation10], 1
    %s1829 = scalar_lea.sflag [#allocation10], 1
    %1830 = vsyncpa %s1829, 1
    %1831 = vsyncpa [#allocation13], 1
    %1832 = vsyncpa [#allocation16], 1
    %1833 = vsyncpa [#allocation8], 1
    %s1834 = scalar_lea.sflag [#allocation8], 1
    %1835 = vsyncpa %s1834, 1
    %1836 = vsyncpa [#allocation20], 1
    %s1837 = scalar_lea.sflag [#allocation20], 1
    %1838 = vsyncpa %s1837, 1

// kernel: tpu_custom_call.1
$region0: #{tpu_custom_call.1}
  #allocation0 [shape = 'u32[]', space=smem, size = 0x4, offset = 0x4, fixed_abs, tag = 'smem constant byte address 0x4 - core index']
  #allocation1 [shape = 'u32[72,128]{1,0:T(1,128)}', space=vmem, size = 0x9000, scoped, tag = 'internal scratch']
  #allocation2 [shape = 'f32[4,8,128]{2,1,0:T(8,128)}', space=vmem, size = 0x4000, scoped, tag = 'scratch operand']
  #allocation3 [shape = 'f32[8,8,128]{2,1,0:T(8,128)}', space=vmem, size = 0x8000, scoped, tag = 'scratch operand']
  #allocation4 [shape = 'f32[8,8,128]{2,1,0:T(8,128)}', space=vmem, size = 0x8000, scoped, tag = 'scratch operand']
  #allocation5 [shape = 'bf16[8,8,128]{2,1,0:T(8,128)(2,1)}', space=vmem, size = 0x4000, scoped, tag = 'scratch operand']
  %s0 = inlined_call_operand.hbm [shape: f32[16,16,128], index: 0, kind: input, shape index: {}]
  %s1 = inlined_call_operand.hbm [shape: f32[1,16,128], index: 1, kind: input, shape index: {}]
  %s2 = inlined_call_operand.hbm [shape: f32[3,16,128], index: 2, kind: input, shape index: {}]
  %s3 = inlined_call_operand.hbm [shape: bf16[128,128], index: 3, kind: input, shape index: {}]
  %s4 = inlined_call_operand.hbm [shape: bf16[128,128], index: 4, kind: input, shape index: {}]
  %s5 = inlined_call_operand.hbm [shape: bf16[128,128], index: 5, kind: input, shape index: {}]
  %s6 = inlined_call_operand.hbm [shape: bf16[128,128], index: 6, kind: input, shape index: {}]
  %s7 = inlined_call_operand.vmem [shape: f32[1,128], index: 7, kind: input, shape index: {}]
  %s8 = inlined_call_operand.vmem [shape: f32[1,128], index: 8, kind: input, shape index: {}]
  %s9 = inlined_call_operand.vmem [shape: f32[1,128], index: 9, kind: input, shape index: {}]
  %s10 = inlined_call_operand.vmem [shape: f32[1,128], index: 10, kind: input, shape index: {}]
  %s11 = inlined_call_operand.vmem [shape: f32[1,128], index: 11, kind: input, shape index: {}]
  %s12 = inlined_call_operand.hbm [shape: f32[16,16,128], index: 12, kind: output, shape index: {0}]
  %s13 = inlined_call_operand.hbm [shape: f32[1,16,128], index: 13, kind: output, shape index: {1}]
  %s14 = inlined_call_operand.hbm [shape: f32[3,16,128], index: 14, kind: output, shape index: {2}]
  %15 = xla_tuple %s12, %s13, %s14
  %s16 = sld [smem:[#allocation0]]
  $region133: #{tpu_custom_call.1} parent=0
    _
  %s18 = ssub.s32 1, %s16
  %s19 = scalar_select 0, %s18, %s16
  $region1: #{tpu_custom_call.1} parent=0
    #allocation6 [shape = 'u8[65536]{0}', space=vmem, size = 0x10000, scoped, tag = 'input window, operand 0']
    #allocation7 [shape = 's32[2]{0}', space=sflag, size = 0x8, scoped, tag = 'scoped memory for tpu_custom_call.1']
    #allocation8 [shape = 's32[2]{0}', space=sflag, size = 0x8, scoped, tag = 'scoped memory for tpu_custom_call.1']
    #allocation9 [shape = 'u8[8192]{0}', space=vmem, size = 0x2000, scoped, tag = 'input window, operand 1']
    #allocation10 [shape = 's32[2]{0}', space=sflag, size = 0x8, scoped, tag = 'scoped memory for tpu_custom_call.1']
    #allocation11 [shape = 'u8[24576]{0}', space=vmem, size = 0x6000, scoped, tag = 'input window, operand 2']
    #allocation12 [shape = 'u8[32768]{0}', space=vmem, size = 0x8000, scoped, tag = 'input window, operand 3, single buffered']
    #allocation13 [shape = 's32[1]{0}', space=sflag, size = 0x4, scoped, tag = 'scoped memory for tpu_custom_call.1']
    #allocation14 [shape = 'u8[32768]{0}', space=vmem, size = 0x8000, scoped, tag = 'input window, operand 4, single buffered']
    #allocation15 [shape = 'u8[32768]{0}', space=vmem, size = 0x8000, scoped, tag = 'input window, operand 5, single buffered']
    #allocation16 [shape = 's32[1]{0}', space=sflag, size = 0x4, scoped, tag = 'scoped memory for tpu_custom_call.1']
    #allocation17 [shape = 'u8[32768]{0}', space=vmem, size = 0x8000, scoped, tag = 'input window, operand 6, single buffered']
    #allocation18 [shape = 'u8[65536]{0}', space=vmem, size = 0x10000, scoped, tag = 'output window, operand 0']
    #allocation19 [shape = 'u8[8192]{0}', space=vmem, size = 0x2000, scoped, tag = 'output window, operand 1']
    #allocation20 [shape = 's32[2]{0}', space=sflag, size = 0x8, scoped, tag = 'scoped memory for tpu_custom_call.1']
    #allocation21 [shape = 'u8[24576]{0}', space=vmem, size = 0x6000, scoped, tag = 'output window, operand 2']
    %20 = vsyncpa [#allocation7], 0
    %s21 = scalar_lea.sflag [#allocation7], 1
    %22 = vsyncpa %s21, 0
    %23 = vsyncpa [#allocation10], 0
    %s24 = scalar_lea.sflag [#allocation10], 1
    %25 = vsyncpa %s24, 0
    %26 = vsyncpa [#allocation13], 0
    %27 = vsyncpa [#allocation16], 0
    %28 = vsyncpa [#allocation8], 0
    %s29 = scalar_lea.sflag [#allocation8], 1
    %30 = vsyncpa %s29, 0
    %31 = vsyncpa [#allocation20], 0
    %s32 = scalar_lea.sflag [#allocation20], 1
    %33 = vsyncpa %s32, 0
    loop: start=0, step=1, limit=6
    $region2: #{tpu_custom_call.1} parent=1 // loop_pre_header
      _
    $region3: #{tpu_custom_call.1} parent=1 // loop_header
      %s35 = sphi 0, %s39
      %p36 = scmp.ge.s32.totalorder %s35, 6
      %s42 = sphi 0, %s54
      %s43 = sphi 0, %s50
      %s44 = sphi 0, %s42
      %s45 = sphi 0, %s43
      %s46 = sphi 0, %s44
      %s47 = sphi 0, %s45
      %s59 = sphi 0, %s61
      %s62 = sphi 0, %s59
      %s63 = sphi 0, %s62
      %s79 = sphi 0, %s63
      %s85 = sphi 0, %s87
      %s88 = sphi 0, %s85
      %s89 = sphi 0, %s88
      %s105 = sphi 0, %s89
      %s111 = sphi 0, %s113
      %s114 = sphi 0, %s111
      %s115 = sphi 0, %s114
      %s131 = sphi 0, %s115
      %s135 = sphi 0, %s135
      %s137 = sphi 0, %s135
      %s138 = sphi 0, %s137
      %s152 = sphi 0, %s138
      %s156 = sphi 0, %s156
      %s158 = sphi 0, %s156
      %s159 = sphi 0, %s158
      %s173 = sphi 0, %s159
      %s177 = sphi 0, %s177
      %s179 = sphi 0, %s177
      %s180 = sphi 0, %s179
      %s194 = sphi 0, %s180
      %s198 = sphi 0, %s198
      %s200 = sphi 0, %s198
      %s201 = sphi 0, %s200
      %s215 = sphi 0, %s201
      %s219 = sphi 0, %s219
      %s221 = sphi 0, %s219
      %s222 = sphi 0, %s221
      %s236 = sphi 0, %s222
      %s240 = sphi 0, %s240
      %s242 = sphi 0, %s240
      %s243 = sphi 0, %s242
      %s257 = sphi 0, %s243
      %s261 = sphi 0, %s261
      %s263 = sphi 0, %s261
      %s264 = sphi 0, %s263
      %s278 = sphi 0, %s264
      %s282 = sphi 0, %s282
      %s284 = sphi 0, %s282
      %s285 = sphi 0, %s284
      %s299 = sphi 0, %s285
      %s303 = sphi 0, %s303
      %s305 = sphi 0, %s303
      %s306 = sphi 0, %s305
      %s320 = sphi 0, %s306
      %s328 = sphi 0, %s330
      %s331 = sphi 0, %s328
      %s332 = sphi 0, %s331
      %s348 = sphi 0, %s332
      %s354 = sphi 0, %s356
      %s357 = sphi 0, %s354
      %s358 = sphi 0, %s357
      %s374 = sphi 0, %s358
      %s380 = sphi 0, %s382
      %s383 = sphi 0, %s380
      %s384 = sphi 0, %s383
      %s400 = sphi 0, %s384
    $region4: #{tpu_custom_call.1} parent=1 // loop_header_branch
      %38 = sbr.rel (%p36) target = $region8
    $region5: #{tpu_custom_call.1} parent=1 // loop_body
      %s40 = ssub.s32 %s35, 1
      %s41 = ssub.s32 %s35, 2
      %s48 = sadd.s32 1, %s43
      %p49 = scmp.ge.s32.totalorder %s48, 2
      %s50 = scalar_select %p49, 0, %s48
      %s51 = sadd.s32 1, %s42
      %s52 = scalar_select %p49, %s51, %s42
      %p53 = scmp.ge.s32.totalorder %s52, 2
      %s54 = scalar_select %p53, 0, %s52
      %s55 = ssub.s32 %s43, %s50
      %s56 = ssub.s32 %s42, %s54
      %s57 = sor.u32 %s55, %s56
      %p58 = scmp.eq.s32.totalorder %s57, 0
      %s60 = sadd.s32 %s59, 1
      %s61 = scalar_select %p58, %s59, %s60
      %p64 = pneg %p58
      %p65 = scmp.eq.s32.totalorder %s35, 3
      %p66 = por %p64, %p65
      %p67 = scmp.ne.s32.totalorder %s59, %s62
      %p68 = scmp.eq.s32.totalorder %s35, 0
      %p69 = por %p67, %p68
      %p70 = scmp.ne.s32.totalorder %s59, %s62
      %p71 = scmp.eq.s32.totalorder %s40, 3
      %p72 = por %p70, %p71
      %p73 = scmp.ne.s32.totalorder %s62, %s63
      %p74 = scmp.eq.s32.totalorder %s40, 0
      %p75 = por %p73, %p74
      %p76 = scmp.ne.s32.totalorder %s62, %s63
      %p77 = scmp.eq.s32.totalorder %s41, 3
      %p78 = por %p76, %p77
      %p80 = scmp.ne.s32.totalorder %s63, %s79
      %p81 = scmp.eq.s32.totalorder %s41, 0
      %p82 = por %p80, %p81
      %s83 = ssub.s32 %s42, %s54
      %p84 = scmp.eq.s32.totalorder %s83, 0
      %s86 = sadd.s32 %s85, 1
      %s87 = scalar_select %p84, %s85, %s86
      %p90 = pneg %p84
      %p91 = scmp.eq.s32.totalorder %s35, 3
      %p92 = por %p90, %p91
      %p93 = scmp.ne.s32.totalorder %s85, %s88
      %p94 = scmp.eq.s32.totalorder %s35, 0
      %p95 = por %p93, %p94
      %p96 = scmp.ne.s32.totalorder %s85, %s88
      %p97 = scmp.eq.s32.totalorder %s40, 3
      %p98 = por %p96, %p97
      %p99 = scmp.ne.s32.totalorder %s88, %s89
      %p100 = scmp.eq.s32.totalorder %s40, 0
      %p101 = por %p99, %p100
      %p102 = scmp.ne.s32.totalorder %s88, %s89
      %p103 = scmp.eq.s32.totalorder %s41, 3
      %p104 = por %p102, %p103
      %p106 = scmp.ne.s32.totalorder %s89, %s105
      %p107 = scmp.eq.s32.totalorder %s41, 0
      %p108 = por %p106, %p107
      %s109 = ssub.s32 %s42, %s54
      %p110 = scmp.eq.s32.totalorder %s109, 0
      %s112 = sadd.s32 %s111, 1
      %s113 = scalar_select %p110, %s111, %s112
      %p116 = pneg %p110
      %p117 = scmp.eq.s32.totalorder %s35, 3
      %p118 = por %p116, %p117
      %p119 = scmp.ne.s32.totalorder %s111, %s114
      %p120 = scmp.eq.s32.totalorder %s35, 0
      %p121 = por %p119, %p120
      %p122 = scmp.ne.s32.totalorder %s111, %s114
      %p123 = scmp.eq.s32.totalorder %s40, 3
      %p124 = por %p122, %p123
      %p125 = scmp.ne.s32.totalorder %s114, %s115
      %p126 = scmp.eq.s32.totalorder %s40, 0
      %p127 = por %p125, %p126
      %p128 = scmp.ne.s32.totalorder %s114, %s115
      %p129 = scmp.eq.s32.totalorder %s41, 3
      %p130 = por %p128, %p129
      %p132 = scmp.ne.s32.totalorder %s115, %s131
      %p133 = scmp.eq.s32.totalorder %s41, 0
      %p134 = por %p132, %p133
      %s136 = sadd.s32 %s135, 1
      %p139 = scmp.eq.s32.totalorder %s35, 3
      %p140 = scmp.ne.s32.totalorder %s135, %s137
      %p141 = scmp.eq.s32.totalorder %s35, 0
      %p142 = por %p140, %p141
      %p143 = scmp.ne.s32.totalorder %s135, %s137
      %p144 = scmp.eq.s32.totalorder %s40, 3
      %p145 = por %p143, %p144
      %p146 = scmp.ne.s32.totalorder %s137, %s138
      %p147 = scmp.eq.s32.totalorder %s40, 0
      %p148 = por %p146, %p147
      %p149 = scmp.ne.s32.totalorder %s137, %s138
      %p150 = scmp.eq.s32.totalorder %s41, 3
      %p151 = por %p149, %p150
      %p153 = scmp.ne.s32.totalorder %s138, %s152
      %p154 = scmp.eq.s32.totalorder %s41, 0
      %p155 = por %p153, %p154
      %s157 = sadd.s32 %s156, 1
      %p160 = scmp.eq.s32.totalorder %s35, 3
      %p161 = scmp.ne.s32.totalorder %s156, %s158
      %p162 = scmp.eq.s32.totalorder %s35, 0
      %p163 = por %p161, %p162
      %p164 = scmp.ne.s32.totalorder %s156, %s158
      %p165 = scmp.eq.s32.totalorder %s40, 3
      %p166 = por %p164, %p165
      %p167 = scmp.ne.s32.totalorder %s158, %s159
      %p168 = scmp.eq.s32.totalorder %s40, 0
      %p169 = por %p167, %p168
      %p170 = scmp.ne.s32.totalorder %s158, %s159
      %p171 = scmp.eq.s32.totalorder %s41, 3
      %p172 = por %p170, %p171
      %p174 = scmp.ne.s32.totalorder %s159, %s173
      %p175 = scmp.eq.s32.totalorder %s41, 0
      %p176 = por %p174, %p175
      %s178 = sadd.s32 %s177, 1
      %p181 = scmp.eq.s32.totalorder %s35, 3
      %p182 = scmp.ne.s32.totalorder %s177, %s179
      %p183 = scmp.eq.s32.totalorder %s35, 0
      %p184 = por %p182, %p183
      %p185 = scmp.ne.s32.totalorder %s177, %s179
      %p186 = scmp.eq.s32.totalorder %s40, 3
      %p187 = por %p185, %p186
      %p188 = scmp.ne.s32.totalorder %s179, %s180
      %p189 = scmp.eq.s32.totalorder %s40, 0
      %p190 = por %p188, %p189
      %p191 = scmp.ne.s32.totalorder %s179, %s180
      %p192 = scmp.eq.s32.totalorder %s41, 3
      %p193 = por %p191, %p192
      %p195 = scmp.ne.s32.totalorder %s180, %s194
      %p196 = scmp.eq.s32.totalorder %s41, 0
      %p197 = por %p195, %p196
      %s199 = sadd.s32 %s198, 1
      %p202 = scmp.eq.s32.totalorder %s35, 3
      %p203 = scmp.ne.s32.totalorder %s198, %s200
      %p204 = scmp.eq.s32.totalorder %s35, 0
      %p205 = por %p203, %p204
      %p206 = scmp.ne.s32.totalorder %s198, %s200
      %p207 = scmp.eq.s32.totalorder %s40, 3
      %p208 = por %p206, %p207
      %p209 = scmp.ne.s32.totalorder %s200, %s201
      %p210 = scmp.eq.s32.totalorder %s40, 0
      %p211 = por %p209, %p210
      %p212 = scmp.ne.s32.totalorder %s200, %s201
      %p213 = scmp.eq.s32.totalorder %s41, 3
      %p214 = por %p212, %p213
      %p216 = scmp.ne.s32.totalorder %s201, %s215
      %p217 = scmp.eq.s32.totalorder %s41, 0
      %p218 = por %p216, %p217
      %s220 = sadd.s32 %s219, 1
      %p223 = scmp.eq.s32.totalorder %s35, 3
      %p224 = scmp.ne.s32.totalorder %s219, %s221
      %p225 = scmp.eq.s32.totalorder %s35, 0
      %p226 = por %p224, %p225
      %p227 = scmp.ne.s32.totalorder %s219, %s221
      %p228 = scmp.eq.s32.totalorder %s40, 3
      %p229 = por %p227, %p228
      %p230 = scmp.ne.s32.totalorder %s221, %s222
      %p231 = scmp.eq.s32.totalorder %s40, 0
      %p232 = por %p230, %p231
      %p233 = scmp.ne.s32.totalorder %s221, %s222
      %p234 = scmp.eq.s32.totalorder %s41, 3
      %p235 = por %p233, %p234
      %p237 = scmp.ne.s32.totalorder %s222, %s236
      %p238 = scmp.eq.s32.totalorder %s41, 0
      %p239 = por %p237, %p238
      %s241 = sadd.s32 %s240, 1
      %p244 = scmp.eq.s32.totalorder %s35, 3
      %p245 = scmp.ne.s32.totalorder %s240, %s242
      %p246 = scmp.eq.s32.totalorder %s35, 0
      %p247 = por %p245, %p246
      %p248 = scmp.ne.s32.totalorder %s240, %s242
      %p249 = scmp.eq.s32.totalorder %s40, 3
      %p250 = por %p248, %p249
      %p251 = scmp.ne.s32.totalorder %s242, %s243
      %p252 = scmp.eq.s32.totalorder %s40, 0
      %p253 = por %p251, %p252
      %p254 = scmp.ne.s32.totalorder %s242, %s243
      %p255 = scmp.eq.s32.totalorder %s41, 3
      %p256 = por %p254, %p255
      %p258 = scmp.ne.s32.totalorder %s243, %s257
      %p259 = scmp.eq.s32.totalorder %s41, 0
      %p260 = por %p258, %p259
      %s262 = sadd.s32 %s261, 1
      %p265 = scmp.eq.s32.totalorder %s35, 3
      %p266 = scmp.ne.s32.totalorder %s261, %s263
      %p267 = scmp.eq.s32.totalorder %s35, 0
      %p268 = por %p266, %p267
      %p269 = scmp.ne.s32.totalorder %s261, %s263
      %p270 = scmp.eq.s32.totalorder %s40, 3
      %p271 = por %p269, %p270
      %p272 = scmp.ne.s32.totalorder %s263, %s264
      %p273 = scmp.eq.s32.totalorder %s40, 0
      %p274 = por %p272, %p273
      %p275 = scmp.ne.s32.totalorder %s263, %s264
      %p276 = scmp.eq.s32.totalorder %s41, 3
      %p277 = por %p275, %p276
      %p279 = scmp.ne.s32.totalorder %s264, %s278
      %p280 = scmp.eq.s32.totalorder %s41, 0
      %p281 = por %p279, %p280
      %s283 = sadd.s32 %s282, 1
      %p286 = scmp.eq.s32.totalorder %s35, 3
      %p287 = scmp.ne.s32.totalorder %s282, %s284
      %p288 = scmp.eq.s32.totalorder %s35, 0
      %p289 = por %p287, %p288
      %p290 = scmp.ne.s32.totalorder %s282, %s284
      %p291 = scmp.eq.s32.totalorder %s40, 3
      %p292 = por %p290, %p291
      %p293 = scmp.ne.s32.totalorder %s284, %s285
      %p294 = scmp.eq.s32.totalorder %s40, 0
      %p295 = por %p293, %p294
      %p296 = scmp.ne.s32.totalorder %s284, %s285
      %p297 = scmp.eq.s32.totalorder %s41, 3
      %p298 = por %p296, %p297
      %p300 = scmp.ne.s32.totalorder %s285, %s299
      %p301 = scmp.eq.s32.totalorder %s41, 0
      %p302 = por %p300, %p301
      %s304 = sadd.s32 %s303, 1
      %p307 = scmp.eq.s32.totalorder %s35, 3
      %p308 = scmp.ne.s32.totalorder %s303, %s305
      %p309 = scmp.eq.s32.totalorder %s35, 0
      %p310 = por %p308, %p309
      %p311 = scmp.ne.s32.totalorder %s303, %s305
      %p312 = scmp.eq.s32.totalorder %s40, 3
      %p313 = por %p311, %p312
      %p314 = scmp.ne.s32.totalorder %s305, %s306
      %p315 = scmp.eq.s32.totalorder %s40, 0
      %p316 = por %p314, %p315
      %p317 = scmp.ne.s32.totalorder %s305, %s306
      %p318 = scmp.eq.s32.totalorder %s41, 3
      %p319 = por %p317, %p318
      %p321 = scmp.ne.s32.totalorder %s306, %s320
      %p322 = scmp.eq.s32.totalorder %s41, 0
      %p323 = por %p321, %p322
      %s324 = ssub.s32 %s43, %s50
      %s325 = ssub.s32 %s42, %s54
      %s326 = sor.u32 %s324, %s325
      %p327 = scmp.eq.s32.totalorder %s326, 0
      %s329 = sadd.s32 %s328, 1
      %s330 = scalar_select %p327, %s328, %s329
      %p333 = pneg %p327
      %p334 = scmp.eq.s32.totalorder %s35, 3
      %p335 = por %p333, %p334
      %p336 = scmp.ne.s32.totalorder %s328, %s331
      %p337 = scmp.eq.s32.totalorder %s35, 0
      %p338 = por %p336, %p337
      %p339 = scmp.ne.s32.totalorder %s328, %s331
      %p340 = scmp.eq.s32.totalorder %s40, 3
      %p341 = por %p339, %p340
      %p342 = scmp.ne.s32.totalorder %s331, %s332
      %p343 = scmp.eq.s32.totalorder %s40, 0
      %p344 = por %p342, %p343
      %p345 = scmp.ne.s32.totalorder %s331, %s332
      %p346 = scmp.eq.s32.totalorder %s41, 3
      %p347 = por %p345, %p346
      %p349 = scmp.ne.s32.totalorder %s332, %s348
      %p350 = scmp.eq.s32.totalorder %s41, 0
      %p351 = por %p349, %p350
      %s352 = ssub.s32 %s42, %s54
      %p353 = scmp.eq.s32.totalorder %s352, 0
      %s355 = sadd.s32 %s354, 1
      %s356 = scalar_select %p353, %s354, %s355
      %p359 = pneg %p353
      %p360 = scmp.eq.s32.totalorder %s35, 3
      %p361 = por %p359, %p360
      %p362 = scmp.ne.s32.totalorder %s354, %s357
      %p363 = scmp.eq.s32.totalorder %s35, 0
      %p364 = por %p362, %p363
      %p365 = scmp.ne.s32.totalorder %s354, %s357
      %p366 = scmp.eq.s32.totalorder %s40, 3
      %p367 = por %p365, %p366
      %p368 = scmp.ne.s32.totalorder %s357, %s358
      %p369 = scmp.eq.s32.totalorder %s40, 0
      %p370 = por %p368, %p369
      %p371 = scmp.ne.s32.totalorder %s357, %s358
      %p372 = scmp.eq.s32.totalorder %s41, 3
      %p373 = por %p371, %p372
      %p375 = scmp.ne.s32.totalorder %s358, %s374
      %p376 = scmp.eq.s32.totalorder %s41, 0
      %p377 = por %p375, %p376
      %s378 = ssub.s32 %s42, %s54
      %p379 = scmp.eq.s32.totalorder %s378, 0
      %s381 = sadd.s32 %s380, 1
      %s382 = scalar_select %p379, %s380, %s381
      %p385 = pneg %p379
      %p386 = scmp.eq.s32.totalorder %s35, 3
      %p387 = por %p385, %p386
      %p388 = scmp.ne.s32.totalorder %s380, %s383
      %p389 = scmp.eq.s32.totalorder %s35, 0
      %p390 = por %p388, %p389
      %p391 = scmp.ne.s32.totalorder %s380, %s383
      %p392 = scmp.eq.s32.totalorder %s40, 3
      %p393 = por %p391, %p392
      %p394 = scmp.ne.s32.totalorder %s383, %s384
      %p395 = scmp.eq.s32.totalorder %s40, 0
      %p396 = por %p394, %p395
      %p397 = scmp.ne.s32.totalorder %s383, %s384
      %p398 = scmp.eq.s32.totalorder %s41, 3
      %p399 = por %p397, %p398
      %p401 = scmp.ne.s32.totalorder %s384, %s400
      %p402 = scmp.eq.s32.totalorder %s41, 0
      %p403 = por %p401, %p402
      %p404 = scmp.le.s32.totalorder 1, %s35
      %p405 = scmp.lt.s32.totalorder %s35, 5
      %p406 = pnand %p404, %p405
      %p407 = pneg %p406
      // Predicated region
      $region9: #{tpu_custom_call.1} parent=5 // pred_check
        _
      $region10: #{tpu_custom_call.1} parent=5 // pred_check_branch
        %409 = sbr.rel (%p406) target = $region12
      $region11: #{tpu_custom_call.1} parent=5 // pred_region
        %s410 = ssub.s32 %s35, 1
        // Predicated region
        $region13: #{tpu_custom_call.1} parent=11 // pred_check
          %p411 = pneg %p148
        $region14: #{tpu_custom_call.1} parent=11 // pred_check_branch
          %413 = sbr.rel (%p411) target = $region16
        $region15: #{tpu_custom_call.1} parent=11 // pred_region
          %415 = vsyncadd [#allocation13], 0
          %s416 = sshll.u32 %s3, 4
          %s417 = int_to_ptr.hbm [resolvable:$true] %s416
          %s418 = sshll.u32 [#allocation12], 4
          %s419 = int_to_ptr.vmem [resolvable:$true] %s418
          %424 = dma.hbm_to_vmem [thread:$0]  %s417, 1024, %s419, [#allocation13], 64, 64, 4
        $region16: #{tpu_custom_call.1} parent=11 // pred_fallthru
          _
        // Predicated region
        $region17: #{tpu_custom_call.1} parent=11 // pred_check
          %p425 = pneg %p169
        $region18: #{tpu_custom_call.1} parent=11 // pred_check_branch
          %427 = sbr.rel (%p425) target = $region20
        $region19: #{tpu_custom_call.1} parent=11 // pred_region
          %429 = vsyncadd [#allocation13], 0
          %s430 = sshll.u32 %s4, 4
          %s431 = int_to_ptr.hbm [resolvable:$true] %s430
          %s432 = sshll.u32 [#allocation14], 4
          %s433 = int_to_ptr.vmem [resolvable:$true] %s432
          %438 = dma.hbm_to_vmem [thread:$0]  %s431, 1024, %s433, [#allocation13], 64, 64, 4
        $region20: #{tpu_custom_call.1} parent=11 // pred_fallthru
          _
        // Predicated region
        $region21: #{tpu_custom_call.1} parent=11 // pred_check
          %p439 = pneg %p190
        $region22: #{tpu_custom_call.1} parent=11 // pred_check_branch
          %441 = sbr.rel (%p439) target = $region24
        $region23: #{tpu_custom_call.1} parent=11 // pred_region
          %443 = vsyncadd [#allocation16], 0
          %s444 = sshll.u32 %s5, 4
          %s445 = int_to_ptr.hbm [resolvable:$true] %s444
          %s446 = sshll.u32 [#allocation15], 4
          %s447 = int_to_ptr.vmem [resolvable:$true] %s446
          %452 = dma.hbm_to_vmem [thread:$0]  %s445, 1024, %s447, [#allocation16], 64, 64, 4
        $region24: #{tpu_custom_call.1} parent=11 // pred_fallthru
          _
        // Predicated region
        $region25: #{tpu_custom_call.1} parent=11 // pred_check
          %p453 = pneg %p211
        $region26: #{tpu_custom_call.1} parent=11 // pred_check_branch
          %455 = sbr.rel (%p453) target = $region28
        $region27: #{tpu_custom_call.1} parent=11 // pred_region
          %457 = vsyncadd [#allocation16], 0
          %s458 = sshll.u32 %s6, 4
          %s459 = int_to_ptr.hbm [resolvable:$true] %s458
          %s460 = sshll.u32 [#allocation17], 4
          %s461 = int_to_ptr.vmem [resolvable:$true] %s460
          %466 = dma.hbm_to_vmem [thread:$0]  %s459, 1024, %s461, [#allocation16], 64, 64, 4
        $region28: #{tpu_custom_call.1} parent=11 // pred_fallthru
          _
        // Predicated region
        $region29: #{tpu_custom_call.1} parent=11 // pred_check
          %p467 = pneg %p232
        $region30: #{tpu_custom_call.1} parent=11 // pred_check_branch
          %469 = sbr.rel (%p467) target = $region32
        $region31: #{tpu_custom_call.1} parent=11 // pred_region
          _
        $region32: #{tpu_custom_call.1} parent=11 // pred_fallthru
          _
        // Predicated region
        $region33: #{tpu_custom_call.1} parent=11 // pred_check
          %p470 = pneg %p253
        $region34: #{tpu_custom_call.1} parent=11 // pred_check_branch
          %472 = sbr.rel (%p470) target = $region36
        $region35: #{tpu_custom_call.1} parent=11 // pred_region
          _
        $region36: #{tpu_custom_call.1} parent=11 // pred_fallthru
          _
        // Predicated region
        $region37: #{tpu_custom_call.1} parent=11 // pred_check
          %p473 = pneg %p274
        $region38: #{tpu_custom_call.1} parent=11 // pred_check_branch
          %475 = sbr.rel (%p473) target = $region40
        $region39: #{tpu_custom_call.1} parent=11 // pred_region
          _
        $region40: #{tpu_custom_call.1} parent=11 // pred_fallthru
          _
        // Predicated region
        $region41: #{tpu_custom_call.1} parent=11 // pred_check
          %p476 = pneg %p295
        $region42: #{tpu_custom_call.1} parent=11 // pred_check_branch
          %478 = sbr.rel (%p476) target = $region44
        $region43: #{tpu_custom_call.1} parent=11 // pred_region
          _
        $region44: #{tpu_custom_call.1} parent=11 // pred_fallthru
          _
        // Predicated region
        $region45: #{tpu_custom_call.1} parent=11 // pred_check
          %p479 = pneg %p316
        $region46: #{tpu_custom_call.1} parent=11 // pred_check_branch
          %481 = sbr.rel (%p479) target = $region48
        $region47: #{tpu_custom_call.1} parent=11 // pred_region
          _
        $region48: #{tpu_custom_call.1} parent=11 // pred_fallthru
          _
      $region12: #{tpu_custom_call.1} parent=5 // pred_fallthru
        _
      %p482 = scmp.lt.s32.totalorder %s35, 4
      // Predicated region
      $region49: #{tpu_custom_call.1} parent=5 // pred_check
        %p483 = pneg %p482
      $region50: #{tpu_custom_call.1} parent=5 // pred_check_branch
        %485 = sbr.rel (%p483) target = $region52
      $region51: #{tpu_custom_call.1} parent=5 // pred_region
        // Predicated region
        $region53: #{tpu_custom_call.1} parent=51 // pred_check
          %p486 = pneg %p69
        $region54: #{tpu_custom_call.1} parent=51 // pred_check_branch
          %488 = sbr.rel (%p486) target = $region56
        $region55: #{tpu_custom_call.1} parent=51 // pred_region
          %s489 = sand.u32 %s59, 1
          %s490 = scalar_lea.sflag [#allocation7], %s489
          %s491 = sand.u32 %s59, 1
          %s492 = smul.addr %s491, 64
          %s493 = scalar_lea.vmem [#allocation6], %s492
          %s494 = smul.u32 8, %s43
          %496 = vsyncadd %s490, 0
          %s497 = smul.addr %s494, 2
          %s498 = sadd.s32 %s42, %s497
          %s499 = smul.addr %s498, 8
          %s500 = scalar_lea.hbm %s0, %s499
          %s501 = sshll.u32 %s500, 4
          %s502 = int_to_ptr.hbm [resolvable:$true] %s501
          %s503 = sshll.u32 %s493, 4
          %s504 = int_to_ptr.vmem [resolvable:$true] %s503
          %509 = dma.hbm_to_vmem [thread:$0]  %s502, 1024, %s504, %s490, 256, 128, 8
        $region56: #{tpu_custom_call.1} parent=51 // pred_fallthru
          _
        // Predicated region
        $region57: #{tpu_custom_call.1} parent=51 // pred_check
          %p510 = pneg %p95
        $region58: #{tpu_custom_call.1} parent=51 // pred_check_branch
          %512 = sbr.rel (%p510) target = $region60
        $region59: #{tpu_custom_call.1} parent=51 // pred_region
          %s513 = sand.u32 %s35, 1
          %s514 = scalar_lea.sflag [#allocation10], %s513
          %s515 = sand.u32 %s85, 1
          %s516 = smul.addr %s515, 8
          %s517 = scalar_lea.vmem [#allocation9], %s516
          %519 = vsyncadd %s514, 0
          %s520 = smul.addr %s42, 8
          %s521 = scalar_lea.hbm %s1, %s520
          %s523 = sshll.u32 %s521, 4
          %s524 = int_to_ptr.hbm [resolvable:$true] %s523
          %s525 = sshll.u32 %s517, 4
          %s526 = int_to_ptr.vmem [resolvable:$true] %s525
          %528 = dma.hbm_to_vmem [thread:$0]  %s524, 128, %s526, %s514
        $region60: #{tpu_custom_call.1} parent=51 // pred_fallthru
          _
        // Predicated region
        $region61: #{tpu_custom_call.1} parent=51 // pred_check
          %p529 = pneg %p121
        $region62: #{tpu_custom_call.1} parent=51 // pred_check_branch
          %531 = sbr.rel (%p529) target = $region64
        $region63: #{tpu_custom_call.1} parent=51 // pred_region
          %s532 = sand.u32 %s35, 1
          %s533 = scalar_lea.sflag [#allocation10], %s532
          %s534 = sand.u32 %s111, 1
          %s535 = smul.addr %s534, 24
          %s536 = scalar_lea.vmem [#allocation11], %s535
          %538 = vsyncadd %s533, 0
          %s539 = smul.addr %s42, 8
          %s540 = scalar_lea.hbm %s2, %s539
          %s541 = sshll.u32 %s540, 4
          %s542 = int_to_ptr.hbm [resolvable:$true] %s541
          %s543 = sshll.u32 %s536, 4
          %s544 = int_to_ptr.vmem [resolvable:$true] %s543
          %549 = dma.hbm_to_vmem [thread:$0]  %s542, 384, %s544, %s533, 256, 128, 8
        $region64: #{tpu_custom_call.1} parent=51 // pred_fallthru
          _
      $region52: #{tpu_custom_call.1} parent=5 // pred_fallthru
        _
      %p550 = scmp.le.s32.totalorder 1, %s35
      %p551 = scmp.lt.s32.totalorder %s35, 5
      %p552 = pnand %p550, %p551
      %p553 = pneg %p552
      // Predicated region
      $region65: #{tpu_custom_call.1} parent=5 // pred_check
        _
      $region66: #{tpu_custom_call.1} parent=5 // pred_check_branch
        %555 = sbr.rel (%p552) target = $region68
      $region67: #{tpu_custom_call.1} parent=5 // pred_region
        %s556 = ssub.s32 %s35, 1
        %s557 = sand.u32 %s62, 1
        %s558 = scalar_lea.sflag [#allocation7], %s557
        %s559 = sand.u32 %s62, 1
        %s560 = smul.addr %s559, 64
        %s561 = scalar_lea.vmem [#allocation6], %s560
        // Predicated region
        $region69: #{tpu_custom_call.1} parent=67 // pred_check
          %p562 = pneg %p75
        $region70: #{tpu_custom_call.1} parent=67 // pred_check_branch
          %564 = sbr.rel (%p562) target = $region72
        $region71: #{tpu_custom_call.1} parent=67 // pred_region
          %566 = dma.done %s558, 1024
        $region72: #{tpu_custom_call.1} parent=67 // pred_fallthru
          _
        %s567 = sand.u32 %s40, 1
        %s568 = scalar_lea.sflag [#allocation10], %s567
        %s569 = sand.u32 %s88, 1
        %s570 = smul.addr %s569, 8
        %s571 = scalar_lea.vmem [#allocation9], %s570
        // Predicated region
        $region73: #{tpu_custom_call.1} parent=67 // pred_check
          %p572 = pneg %p101
        $region74: #{tpu_custom_call.1} parent=67 // pred_check_branch
          %574 = sbr.rel (%p572) target = $region76
        $region75: #{tpu_custom_call.1} parent=67 // pred_region
          %576 = dma.done %s568, 128
        $region76: #{tpu_custom_call.1} parent=67 // pred_fallthru
          _
        %s577 = sand.u32 %s40, 1
        %s578 = scalar_lea.sflag [#allocation10], %s577
        %s579 = sand.u32 %s114, 1
        %s580 = smul.addr %s579, 24
        %s581 = scalar_lea.vmem [#allocation11], %s580
        // Predicated region
        $region77: #{tpu_custom_call.1} parent=67 // pred_check
          %p582 = pneg %p127
        $region78: #{tpu_custom_call.1} parent=67 // pred_check_branch
          %584 = sbr.rel (%p582) target = $region80
        $region79: #{tpu_custom_call.1} parent=67 // pred_region
          %586 = dma.done %s578, 384
        $region80: #{tpu_custom_call.1} parent=67 // pred_fallthru
          _
        // Predicated region
        $region81: #{tpu_custom_call.1} parent=67 // pred_check
          %p587 = pneg %p148
        $region82: #{tpu_custom_call.1} parent=67 // pred_check_branch
          %589 = sbr.rel (%p587) target = $region84
        $region83: #{tpu_custom_call.1} parent=67 // pred_region
          %591 = dma.done [#allocation13], 1024
        $region84: #{tpu_custom_call.1} parent=67 // pred_fallthru
          _
        // Predicated region
        $region85: #{tpu_custom_call.1} parent=67 // pred_check
          %p592 = pneg %p169
        $region86: #{tpu_custom_call.1} parent=67 // pred_check_branch
          %594 = sbr.rel (%p592) target = $region88
        $region87: #{tpu_custom_call.1} parent=67 // pred_region
          %596 = dma.done [#allocation13], 1024
        $region88: #{tpu_custom_call.1} parent=67 // pred_fallthru
          _
        // Predicated region
        $region89: #{tpu_custom_call.1} parent=67 // pred_check
          %p597 = pneg %p190
        $region90: #{tpu_custom_call.1} parent=67 // pred_check_branch
          %599 = sbr.rel (%p597) target = $region92
        $region91: #{tpu_custom_call.1} parent=67 // pred_region
          %601 = dma.done [#allocation16], 1024
        $region92: #{tpu_custom_call.1} parent=67 // pred_fallthru
          _
        // Predicated region
        $region93: #{tpu_custom_call.1} parent=67 // pred_check
          %p602 = pneg %p211
        $region94: #{tpu_custom_call.1} parent=67 // pred_check_branch
          %604 = sbr.rel (%p602) target = $region96
        $region95: #{tpu_custom_call.1} parent=67 // pred_region
          %606 = dma.done [#allocation16], 1024
        $region96: #{tpu_custom_call.1} parent=67 // pred_fallthru
          _
        %s607 = sand.u32 %s62, 1
        %s608 = scalar_lea.sflag [#allocation7], %s607
        %s609 = sand.u32 %s62, 1
        %s610 = smul.addr %s609, 64
        %s611 = scalar_lea.vmem [#allocation6], %s610
        %p612 = pneg %p75
        %p613 = pneg %p72
        %s614 = sand.u32 %s40, 1
        %s615 = scalar_lea.sflag [#allocation10], %s614
        %s616 = sand.u32 %s88, 1
        %s617 = smul.addr %s616, 8
        %s618 = scalar_lea.vmem [#allocation9], %s617
        %p619 = pneg %p101
        %p620 = pneg %p98
        %s621 = sand.u32 %s40, 1
        %s622 = scalar_lea.sflag [#allocation10], %s621
        %s623 = sand.u32 %s114, 1
        %s624 = smul.addr %s623, 24
        %s625 = scalar_lea.vmem [#allocation11], %s624
        %p626 = pneg %p127
        %p627 = pneg %p124
        %p628 = pneg %p148
        %p629 = pneg %p145
        %p630 = pneg %p169
        %p631 = pneg %p166
        %p632 = pneg %p190
        %p633 = pneg %p187
        %p634 = pneg %p211
        %p635 = pneg %p208
        %p636 = pneg %p232
        %p637 = pneg %p229
        %p638 = pneg %p253
        %p639 = pneg %p250
        %p640 = pneg %p274
        %p641 = pneg %p271
        %p642 = pneg %p295
        %p643 = pneg %p292
        %p644 = pneg %p316
        %p645 = pneg %p313
        %p646 = pneg %p344
        %p647 = pneg %p341
        %s648 = sand.u32 %s331, 1
        %s649 = scalar_lea.sflag [#allocation8], %s648
        %s650 = sand.u32 %s331, 1
        %s651 = smul.addr %s650, 64
        %s652 = scalar_lea.vmem [#allocation18], %s651
        %p653 = pneg %p370
        %p654 = pneg %p367
        %s655 = sand.u32 %s40, 1
        %s656 = scalar_lea.sflag [#allocation20], %s655
        %s657 = sand.u32 %s357, 1
        %s658 = smul.addr %s657, 8
        %s659 = scalar_lea.vmem [#allocation19], %s658
        %p660 = pneg %p396
        %p661 = pneg %p393
        %s662 = sand.u32 %s40, 1
        %s663 = scalar_lea.sflag [#allocation20], %s662
        %s664 = sand.u32 %s383, 1
        %s665 = smul.addr %s664, 24
        %s666 = scalar_lea.vmem [#allocation21], %s665
        %s667 = smul.u32 8, %s45
        %s668 = smul.u32 8, %s45
        %p669 = scmp.eq.s32.totalorder %s45, 0
        // Predicated region
        $region97: #{tpu_custom_call.1} parent=67 // pred_check
          %p670 = pneg %p669
        $region98: #{tpu_custom_call.1} parent=67 // pred_check_branch
          %672 = sbr.rel (%p670) target = $region100
        $region99: #{tpu_custom_call.1} parent=67 // pred_region
          %v673 = vld [vmem:[%s581] sm:$0xff]
          %674 = vst [vmem:[#allocation2] sm:$0xff] %v673
          %s675 = scalar_lea.vmem %s581, 8 [#allocation11]
          %v676 = vld [vmem:[%s675] sm:$0xff]
          %s677 = scalar_lea.vmem [#allocation2], 8
          %678 = vst [vmem:[%s677] sm:$0xff] %v676
          %s679 = scalar_lea.vmem %s581, 16 [#allocation11]
          %v680 = vld [vmem:[%s679] sm:$0xff]
          %s681 = scalar_lea.vmem [#allocation2], 16
          %682 = vst [vmem:[%s681] sm:$0xff] %v680
          %v683 = vld [vmem:[%s571] sm:$0xff]
          %s684 = scalar_lea.vmem [#allocation2], 24
          %685 = vst [vmem:[%s684] sm:$0xff] %v683
        $region100: #{tpu_custom_call.1} parent=67 // pred_fallthru
          _
        %v686 = vld [vmem:[%s561] sm:$0xff]
        %v687 = vld [vmem:[%s561 + $0x8] sm:$0xff]
        %v688 = vld [vmem:[%s561 + $0x10] sm:$0xff]
        %v689 = vld [vmem:[%s561 + $0x18] sm:$0xff]
        %v690 = vld [vmem:[%s561 + $0x20] sm:$0xff]
        %v691 = vld [vmem:[%s561 + $0x28] sm:$0xff]
        %v692 = vld [vmem:[%s561 + $0x30] sm:$0xff]
        %v693 = vld [vmem:[%s561 + $0x38] sm:$0xff]
        %s694 = scalar_lea.vmem [#allocation2], 24
        %v695 = vld [vmem:[%s694] sm:$0xff]
        %v696 = vsub.f32 %v686, %v695
        %v697 = vsub.f32 %v687, %v686
        %v698 = vsub.f32 %v688, %v687
        %v699 = vsub.f32 %v689, %v688
        %v700 = vsub.f32 %v690, %v689
        %v701 = vsub.f32 %v691, %v690
        %v702 = vsub.f32 %v692, %v691
        %v703 = vsub.f32 %v693, %v692
        %v704 = vld [vmem:[%s9] sm:$0x1]
        %v706 = vperm.slane %v704, 0
        %v708 = vmul.f32 %v696, %v706
        %v709 = vmul.f32 %v697, %v706
        %v710 = vmul.f32 %v698, %v706
        %v711 = vmul.f32 %v699, %v706
        %v712 = vmul.f32 %v700, %v706
        %v713 = vmul.f32 %v701, %v706
        %v714 = vmul.f32 %v702, %v706
        %v715 = vmul.f32 %v703, %v706
        %v716 = vadd.f32 %v695, %v708
        %v717 = vadd.f32 %v686, %v709
        %v718 = vadd.f32 %v687, %v710
        %v719 = vadd.f32 %v688, %v711
        %v720 = vadd.f32 %v689, %v712
        %v721 = vadd.f32 %v690, %v713
        %v722 = vadd.f32 %v691, %v714
        %v723 = vadd.f32 %v692, %v715
        %v724 = vld [vmem:[%s10] sm:$0x1]
        %v726 = vperm.slane %v724, 0
        %v728 = vmul.f32 %v696, %v726
        %v729 = vmul.f32 %v697, %v726
        %v730 = vmul.f32 %v698, %v726
        %v731 = vmul.f32 %v699, %v726
        %v732 = vmul.f32 %v700, %v726
        %v733 = vmul.f32 %v701, %v726
        %v734 = vmul.f32 %v702, %v726
        %v735 = vmul.f32 %v703, %v726
        %v736 = vadd.f32 %v695, %v728
        %v737 = vadd.f32 %v686, %v729
        %v738 = vadd.f32 %v687, %v730
        %v739 = vadd.f32 %v688, %v731
        %v740 = vadd.f32 %v689, %v732
        %v741 = vadd.f32 %v690, %v733
        %v742 = vadd.f32 %v691, %v734
        %v743 = vadd.f32 %v692, %v735
        %v744 = vld [vmem:[%s11] sm:$0x1]
        %v746 = vperm.slane %v744, 0
        %v748 = vmul.f32 %v696, %v746
        %v749 = vmul.f32 %v697, %v746
        %v750 = vmul.f32 %v698, %v746
        %v751 = vmul.f32 %v699, %v746
        %v752 = vmul.f32 %v700, %v746
        %v753 = vmul.f32 %v701, %v746
        %v754 = vmul.f32 %v702, %v746
        %v755 = vmul.f32 %v703, %v746
        %v756 = vadd.f32 %v695, %v748
        %v757 = vadd.f32 %v686, %v749
        %v758 = vadd.f32 %v687, %v750
        %v759 = vadd.f32 %v688, %v751
        %v760 = vadd.f32 %v689, %v752
        %v761 = vadd.f32 %v690, %v753
        %v762 = vadd.f32 %v691, %v754
        %v763 = vadd.f32 %v692, %v755
        %v764 = vpack.c.bf16 %v717, %v716
        %v765 = vpack.c.bf16 %v719, %v718
        %v766 = vpack.c.bf16 %v721, %v720
        %v767 = vpack.c.bf16 %v723, %v722
        %v768 = vld [vmem:[#allocation12] sm:$0xf]
        %v769 = vld [vmem:[#allocation12 + $0x4] sm:$0xf]
        %v770 = vld [vmem:[#allocation12 + $0x8] sm:$0xf]
        %v771 = vld [vmem:[#allocation12 + $0xc] sm:$0xf]
        %v772 = vld [vmem:[#allocation12 + $0x10] sm:$0xf]
        %v773 = vld [vmem:[#allocation12 + $0x14] sm:$0xf]
        %v774 = vld [vmem:[#allocation12 + $0x18] sm:$0xf]
        %v775 = vld [vmem:[#allocation12 + $0x1c] sm:$0xf]
        %v776 = vld [vmem:[#allocation12 + $0x20] sm:$0xf]
        %v777 = vld [vmem:[#allocation12 + $0x24] sm:$0xf]
        %v778 = vld [vmem:[#allocation12 + $0x28] sm:$0xf]
        %v779 = vld [vmem:[#allocation12 + $0x2c] sm:$0xf]
        %v780 = vld [vmem:[#allocation12 + $0x30] sm:$0xf]
        %v781 = vld [vmem:[#allocation12 + $0x34] sm:$0xf]
        %v782 = vld [vmem:[#allocation12 + $0x38] sm:$0xf]
        %v783 = vld [vmem:[#allocation12 + $0x3c] sm:$0xf]
        %v800 = vunpack.c.l.b16 %v768
        %v801 = vunpack.c.l.b16 %v769
        %v802 = vunpack.c.l.b16 %v770
        %v803 = vunpack.c.l.b16 %v771
        %v804 = vunpack.c.l.b16 %v772
        %v805 = vunpack.c.l.b16 %v773
        %v806 = vunpack.c.l.b16 %v774
        %v807 = vunpack.c.l.b16 %v775
        %v808 = vunpack.c.l.b16 %v776
        %v809 = vunpack.c.l.b16 %v777
        %v810 = vunpack.c.l.b16 %v778
        %v811 = vunpack.c.l.b16 %v779
        %v812 = vunpack.c.l.b16 %v780
        %v813 = vunpack.c.l.b16 %v781
        %v814 = vunpack.c.l.b16 %v782
        %v815 = vunpack.c.l.b16 %v783
        %v816 = vpack.c.b16 %v801, %v800
        %v817 = vpack.c.b16 %v803, %v802
        %v818 = vpack.c.b16 %v805, %v804
        %v819 = vpack.c.b16 %v807, %v806
        %v820 = vpack.c.b16 %v809, %v808
        %v821 = vpack.c.b16 %v811, %v810
        %v822 = vpack.c.b16 %v813, %v812
        %v823 = vpack.c.b16 %v815, %v814
        %832 = vmatpush.bf16.msra.mxu0 %v823
        %833 = vmatpush.bf16.msra.mxu0 %v822
        %834 = vmatpush.bf16.msra.mxu0 %v821
        %835 = vmatpush.bf16.msra.mxu0 %v820
        %836 = vmatpush.bf16.msra.mxu0 %v819
        %837 = vmatpush.bf16.msra.mxu0 %v818
        %838 = vmatpush.bf16.msra.mxu0 %v817
        %839 = vmatpush.bf16.msra.mxu0 %v816
        %840 = vmatmul.bf16.gmra.mxu0 %v764
        %v841 = vpop.f32.mrf.mxu0
        %v842 = vadd.f32 0.0, %v841
        %v843 = vpop.f32.mrf.mxu0
        %v844 = vadd.f32 0.0, %v843
        %845 = vmatmul.bf16.gmra.mxu0 %v765
        %v846 = vpop.f32.mrf.mxu0
        %v847 = vadd.f32 0.0, %v846
        %v848 = vpop.f32.mrf.mxu0
        %v849 = vadd.f32 0.0, %v848
        %850 = vmatmul.bf16.gmra.mxu0 %v766
        %v851 = vpop.f32.mrf.mxu0
        %v852 = vadd.f32 0.0, %v851
        %v853 = vpop.f32.mrf.mxu0
        %v854 = vadd.f32 0.0, %v853
        %855 = vmatmul.bf16.gmra.mxu0 %v767
        %v856 = vpop.f32.mrf.mxu0
        %v857 = vadd.f32 0.0, %v856
        %v858 = vpop.f32.mrf.mxu0
        %v859 = vadd.f32 0.0, %v858
        %860 = vdwg.mxu0
        %v861 = vpack.c.bf16 %v737, %v736
        %v862 = vpack.c.bf16 %v739, %v738
        %v863 = vpack.c.bf16 %v741, %v740
        %v864 = vpack.c.bf16 %v743, %v742
        %v865 = vld [vmem:[#allocation14] sm:$0xf]
        %v866 = vld [vmem:[#allocation14 + $0x4] sm:$0xf]
        %v867 = vld [vmem:[#allocation14 + $0x8] sm:$0xf]
        %v868 = vld [vmem:[#allocation14 + $0xc] sm:$0xf]
        %v869 = vld [vmem:[#allocation14 + $0x10] sm:$0xf]
        %v870 = vld [vmem:[#allocation14 + $0x14] sm:$0xf]
        %v871 = vld [vmem:[#allocation14 + $0x18] sm:$0xf]
        %v872 = vld [vmem:[#allocation14 + $0x1c] sm:$0xf]
        %v873 = vld [vmem:[#allocation14 + $0x20] sm:$0xf]
        %v874 = vld [vmem:[#allocation14 + $0x24] sm:$0xf]
        %v875 = vld [vmem:[#allocation14 + $0x28] sm:$0xf]
        %v876 = vld [vmem:[#allocation14 + $0x2c] sm:$0xf]
        %v877 = vld [vmem:[#allocation14 + $0x30] sm:$0xf]
        %v878 = vld [vmem:[#allocation14 + $0x34] sm:$0xf]
        %v879 = vld [vmem:[#allocation14 + $0x38] sm:$0xf]
        %v880 = vld [vmem:[#allocation14 + $0x3c] sm:$0xf]
        %v897 = vunpack.c.l.b16 %v865
        %v898 = vunpack.c.l.b16 %v866
        %v899 = vunpack.c.l.b16 %v867
        %v900 = vunpack.c.l.b16 %v868
        %v901 = vunpack.c.l.b16 %v869
        %v902 = vunpack.c.l.b16 %v870
        %v903 = vunpack.c.l.b16 %v871
        %v904 = vunpack.c.l.b16 %v872
        %v905 = vunpack.c.l.b16 %v873
        %v906 = vunpack.c.l.b16 %v874
        %v907 = vunpack.c.l.b16 %v875
        %v908 = vunpack.c.l.b16 %v876
        %v909 = vunpack.c.l.b16 %v877
        %v910 = vunpack.c.l.b16 %v878
        %v911 = vunpack.c.l.b16 %v879
        %v912 = vunpack.c.l.b16 %v880
        %v913 = vpack.c.b16 %v898, %v897
        %v914 = vpack.c.b16 %v900, %v899
        %v915 = vpack.c.b16 %v902, %v901
        %v916 = vpack.c.b16 %v904, %v903
        %v917 = vpack.c.b16 %v906, %v905
        %v918 = vpack.c.b16 %v908, %v907
        %v919 = vpack.c.b16 %v910, %v909
        %v920 = vpack.c.b16 %v912, %v911
        %929 = vmatpush.bf16.msra.mxu0 %v920
        %930 = vmatpush.bf16.msra.mxu0 %v919
        %931 = vmatpush.bf16.msra.mxu0 %v918
        %932 = vmatpush.bf16.msra.mxu0 %v917
        %933 = vmatpush.bf16.msra.mxu0 %v916
        %934 = vmatpush.bf16.msra.mxu0 %v915
        %935 = vmatpush.bf16.msra.mxu0 %v914
        %936 = vmatpush.bf16.msra.mxu0 %v913
        %937 = vmatmul.bf16.gmra.mxu0 %v861
        %v938 = vpop.f32.mrf.mxu0
        %v939 = vadd.f32 0.0, %v938
        %v940 = vpop.f32.mrf.mxu0
        %v941 = vadd.f32 0.0, %v940
        %942 = vmatmul.bf16.gmra.mxu0 %v862
        %v943 = vpop.f32.mrf.mxu0
        %v944 = vadd.f32 0.0, %v943
        %v945 = vpop.f32.mrf.mxu0
        %v946 = vadd.f32 0.0, %v945
        %947 = vmatmul.bf16.gmra.mxu0 %v863
        %v948 = vpop.f32.mrf.mxu0
        %v949 = vadd.f32 0.0, %v948
        %v950 = vpop.f32.mrf.mxu0
        %v951 = vadd.f32 0.0, %v950
        %952 = vmatmul.bf16.gmra.mxu0 %v864
        %v953 = vpop.f32.mrf.mxu0
        %v954 = vadd.f32 0.0, %v953
        %v955 = vpop.f32.mrf.mxu0
        %v956 = vadd.f32 0.0, %v955
        %957 = vdwg.mxu0
        %v958 = vpack.c.bf16 %v757, %v756
        %v959 = vpack.c.bf16 %v759, %v758
        %v960 = vpack.c.bf16 %v761, %v760
        %v961 = vpack.c.bf16 %v763, %v762
        %v962 = vld [vmem:[#allocation15] sm:$0xf]
        %v963 = vld [vmem:[#allocation15 + $0x4] sm:$0xf]
        %v964 = vld [vmem:[#allocation15 + $0x8] sm:$0xf]
        %v965 = vld [vmem:[#allocation15 + $0xc] sm:$0xf]
        %v966 = vld [vmem:[#allocation15 + $0x10] sm:$0xf]
        %v967 = vld [vmem:[#allocation15 + $0x14] sm:$0xf]
        %v968 = vld [vmem:[#allocation15 + $0x18] sm:$0xf]
        %v969 = vld [vmem:[#allocation15 + $0x1c] sm:$0xf]
        %v970 = vld [vmem:[#allocation15 + $0x20] sm:$0xf]
        %v971 = vld [vmem:[#allocation15 + $0x24] sm:$0xf]
        %v972 = vld [vmem:[#allocation15 + $0x28] sm:$0xf]
        %v973 = vld [vmem:[#allocation15 + $0x2c] sm:$0xf]
        %v974 = vld [vmem:[#allocation15 + $0x30] sm:$0xf]
        %v975 = vld [vmem:[#allocation15 + $0x34] sm:$0xf]
        %v976 = vld [vmem:[#allocation15 + $0x38] sm:$0xf]
        %v977 = vld [vmem:[#allocation15 + $0x3c] sm:$0xf]
        %v994 = vunpack.c.l.b16 %v962
        %v995 = vunpack.c.l.b16 %v963
        %v996 = vunpack.c.l.b16 %v964
        %v997 = vunpack.c.l.b16 %v965
        %v998 = vunpack.c.l.b16 %v966
        %v999 = vunpack.c.l.b16 %v967
        %v1000 = vunpack.c.l.b16 %v968
        %v1001 = vunpack.c.l.b16 %v969
        %v1002 = vunpack.c.l.b16 %v970
        %v1003 = vunpack.c.l.b16 %v971
        %v1004 = vunpack.c.l.b16 %v972
        %v1005 = vunpack.c.l.b16 %v973
        %v1006 = vunpack.c.l.b16 %v974
        %v1007 = vunpack.c.l.b16 %v975
        %v1008 = vunpack.c.l.b16 %v976
        %v1009 = vunpack.c.l.b16 %v977
        %v1010 = vpack.c.b16 %v995, %v994
        %v1011 = vpack.c.b16 %v997, %v996
        %v1012 = vpack.c.b16 %v999, %v998
        %v1013 = vpack.c.b16 %v1001, %v1000
        %v1014 = vpack.c.b16 %v1003, %v1002
        %v1015 = vpack.c.b16 %v1005, %v1004
        %v1016 = vpack.c.b16 %v1007, %v1006
        %v1017 = vpack.c.b16 %v1009, %v1008
        %1026 = vmatpush.bf16.msra.mxu0 %v1017
        %1027 = vmatpush.bf16.msra.mxu0 %v1016
        %1028 = vmatpush.bf16.msra.mxu0 %v1015
        %1029 = vmatpush.bf16.msra.mxu0 %v1014
        %1030 = vmatpush.bf16.msra.mxu0 %v1013
        %1031 = vmatpush.bf16.msra.mxu0 %v1012
        %1032 = vmatpush.bf16.msra.mxu0 %v1011
        %1033 = vmatpush.bf16.msra.mxu0 %v1010
        %1034 = vmatmul.bf16.gmra.mxu0 %v958
        %v1035 = vpop.f32.mrf.mxu0
        %v1036 = vadd.f32 0.0, %v1035
        %v1037 = vpop.f32.mrf.mxu0
        %v1038 = vadd.f32 0.0, %v1037
        %1039 = vmatmul.bf16.gmra.mxu0 %v959
        %v1040 = vpop.f32.mrf.mxu0
        %v1041 = vadd.f32 0.0, %v1040
        %v1042 = vpop.f32.mrf.mxu0
        %v1043 = vadd.f32 0.0, %v1042
        %1044 = vmatmul.bf16.gmra.mxu0 %v960
        %v1045 = vpop.f32.mrf.mxu0
        %v1046 = vadd.f32 0.0, %v1045
        %v1047 = vpop.f32.mrf.mxu0
        %v1048 = vadd.f32 0.0, %v1047
        %1049 = vmatmul.bf16.gmra.mxu0 %v961
        %v1050 = vpop.f32.mrf.mxu0
        %v1051 = vadd.f32 0.0, %v1050
        %v1052 = vpop.f32.mrf.mxu0
        %v1053 = vadd.f32 0.0, %v1052
        %1054 = vdwg.mxu0
        %1055 = vst [vmem:[#allocation3] sm:$0xff] %v842
        %1056 = vst [vmem:[#allocation3 + $0x8] sm:$0xff] %v844
        %1057 = vst [vmem:[#allocation3 + $0x10] sm:$0xff] %v847
        %1058 = vst [vmem:[#allocation3 + $0x18] sm:$0xff] %v849
        %1059 = vst [vmem:[#allocation3 + $0x20] sm:$0xff] %v852
        %1060 = vst [vmem:[#allocation3 + $0x28] sm:$0xff] %v854
        %1061 = vst [vmem:[#allocation3 + $0x30] sm:$0xff] %v857
        %1062 = vst [vmem:[#allocation3 + $0x38] sm:$0xff] %v859
        %1063 = vst [vmem:[#allocation4] sm:$0xff] %v939
        %1064 = vst [vmem:[#allocation4 + $0x8] sm:$0xff] %v941
        %1065 = vst [vmem:[#allocation4 + $0x10] sm:$0xff] %v944
        %1066 = vst [vmem:[#allocation4 + $0x18] sm:$0xff] %v946
        %1067 = vst [vmem:[#allocation4 + $0x20] sm:$0xff] %v949
        %1068 = vst [vmem:[#allocation4 + $0x28] sm:$0xff] %v951
        %1069 = vst [vmem:[#allocation4 + $0x30] sm:$0xff] %v954
        %1070 = vst [vmem:[#allocation4 + $0x38] sm:$0xff] %v956
        %v1071 = vsub.f32 0.0, %v1036
        %v1072 = vsub.f32 0.0, %v1038
        %v1073 = vsub.f32 0.0, %v1041
        %v1074 = vsub.f32 0.0, %v1043
        %v1075 = vsub.f32 0.0, %v1046
        %v1076 = vsub.f32 0.0, %v1048
        %v1077 = vsub.f32 0.0, %v1051
        %v1078 = vsub.f32 0.0, %v1053
        %v1079 = vmul.f32 %v1071, 1.442695
        %v1080 = vpow.pop %v1079
        %v1081 = vmul.f32 %v1072, 1.442695
        %v1082 = vpow.pop %v1081
        %v1083 = vmul.f32 %v1073, 1.442695
        %v1084 = vpow.pop %v1083
        %v1085 = vmul.f32 %v1074, 1.442695
        %v1086 = vpow.pop %v1085
        %v1087 = vmul.f32 %v1075, 1.442695
        %v1088 = vpow.pop %v1087
        %v1089 = vmul.f32 %v1076, 1.442695
        %v1090 = vpow.pop %v1089
        %v1091 = vmul.f32 %v1077, 1.442695
        %v1092 = vpow.pop %v1091
        %v1093 = vmul.f32 %v1078, 1.442695
        %v1094 = vpow.pop %v1093
        %v1095 = vadd.f32 %v1080, 1.0
        %v1096 = vadd.f32 %v1082, 1.0
        %v1097 = vadd.f32 %v1084, 1.0
        %v1098 = vadd.f32 %v1086, 1.0
        %v1099 = vadd.f32 %v1088, 1.0
        %v1100 = vadd.f32 %v1090, 1.0
        %v1101 = vadd.f32 %v1092, 1.0
        %v1102 = vadd.f32 %v1094, 1.0
        %v1103 = vrcp.pop %v1095
        %v1104 = vmul.f32 %v1095, %v1103
        %v1105 = vsub.f32 1.0, %v1104
        %v1106 = vmul.f32 %v1103, %v1105
        %v1107 = vadd.f32 %v1103, %v1106
        %vm1108 = vweird.f32 %v1095
        %vm1109 = vweird.f32 %v1103
        %vm1110 = vmor %vm1108, %vm1109
        %v1111 = vsel %vm1110, %v1103, %v1107
        %v1112 = vand.u32 2147483647, %v1095
        %vm1113 = vcmp.eq.f32.partialorder %v1112, 8.507059e+37
        %v1114 = vand.u32 %v1095, 2147483648
        %v1115 = vor.u32 1.1754944e-38, %v1114
        %v1116 = vsel %vm1113, %v1115, %v1111
        %v1117 = vmul.f32 1.0, %v1116
        %v1118 = vrcp.pop %v1096
        %v1119 = vmul.f32 %v1096, %v1118
        %v1120 = vsub.f32 1.0, %v1119
        %v1121 = vmul.f32 %v1118, %v1120
        %v1122 = vadd.f32 %v1118, %v1121
        %vm1123 = vweird.f32 %v1096
        %vm1124 = vweird.f32 %v1118
        %vm1125 = vmor %vm1123, %vm1124
        %v1126 = vsel %vm1125, %v1118, %v1122
        %v1127 = vand.u32 2147483647, %v1096
        %vm1128 = vcmp.eq.f32.partialorder %v1127, 8.507059e+37
        %v1129 = vand.u32 %v1096, 2147483648
        %v1130 = vor.u32 1.1754944e-38, %v1129
        %v1131 = vsel %vm1128, %v1130, %v1126
        %v1132 = vmul.f32 1.0, %v1131
        %v1133 = vrcp.pop %v1097
        %v1134 = vmul.f32 %v1097, %v1133
        %v1135 = vsub.f32 1.0, %v1134
        %v1136 = vmul.f32 %v1133, %v1135
        %v1137 = vadd.f32 %v1133, %v1136
        %vm1138 = vweird.f32 %v1097
        %vm1139 = vweird.f32 %v1133
        %vm1140 = vmor %vm1138, %vm1139
        %v1141 = vsel %vm1140, %v1133, %v1137
        %v1142 = vand.u32 2147483647, %v1097
        %vm1143 = vcmp.eq.f32.partialorder %v1142, 8.507059e+37
        %v1144 = vand.u32 %v1097, 2147483648
        %v1145 = vor.u32 1.1754944e-38, %v1144
        %v1146 = vsel %vm1143, %v1145, %v1141
        %v1147 = vmul.f32 1.0, %v1146
        %v1148 = vrcp.pop %v1098
        %v1149 = vmul.f32 %v1098, %v1148
        %v1150 = vsub.f32 1.0, %v1149
        %v1151 = vmul.f32 %v1148, %v1150
        %v1152 = vadd.f32 %v1148, %v1151
        %vm1153 = vweird.f32 %v1098
        %vm1154 = vweird.f32 %v1148
        %vm1155 = vmor %vm1153, %vm1154
        %v1156 = vsel %vm1155, %v1148, %v1152
        %v1157 = vand.u32 2147483647, %v1098
        %vm1158 = vcmp.eq.f32.partialorder %v1157, 8.507059e+37
        %v1159 = vand.u32 %v1098, 2147483648
        %v1160 = vor.u32 1.1754944e-38, %v1159
        %v1161 = vsel %vm1158, %v1160, %v1156
        %v1162 = vmul.f32 1.0, %v1161
        %v1163 = vrcp.pop %v1099
        %v1164 = vmul.f32 %v1099, %v1163
        %v1165 = vsub.f32 1.0, %v1164
        %v1166 = vmul.f32 %v1163, %v1165
        %v1167 = vadd.f32 %v1163, %v1166
        %vm1168 = vweird.f32 %v1099
        %vm1169 = vweird.f32 %v1163
        %vm1170 = vmor %vm1168, %vm1169
        %v1171 = vsel %vm1170, %v1163, %v1167
        %v1172 = vand.u32 2147483647, %v1099
        %vm1173 = vcmp.eq.f32.partialorder %v1172, 8.507059e+37
        %v1174 = vand.u32 %v1099, 2147483648
        %v1175 = vor.u32 1.1754944e-38, %v1174
        %v1176 = vsel %vm1173, %v1175, %v1171
        %v1177 = vmul.f32 1.0, %v1176
        %v1178 = vrcp.pop %v1100
        %v1179 = vmul.f32 %v1100, %v1178
        %v1180 = vsub.f32 1.0, %v1179
        %v1181 = vmul.f32 %v1178, %v1180
        %v1182 = vadd.f32 %v1178, %v1181
        %vm1183 = vweird.f32 %v1100
        %vm1184 = vweird.f32 %v1178
        %vm1185 = vmor %vm1183, %vm1184
        %v1186 = vsel %vm1185, %v1178, %v1182
        %v1187 = vand.u32 2147483647, %v1100
        %vm1188 = vcmp.eq.f32.partialorder %v1187, 8.507059e+37
        %v1189 = vand.u32 %v1100, 2147483648
        %v1190 = vor.u32 1.1754944e-38, %v1189
        %v1191 = vsel %vm1188, %v1190, %v1186
        %v1192 = vmul.f32 1.0, %v1191
        %v1193 = vrcp.pop %v1101
        %v1194 = vmul.f32 %v1101, %v1193
        %v1195 = vsub.f32 1.0, %v1194
        %v1196 = vmul.f32 %v1193, %v1195
        %v1197 = vadd.f32 %v1193, %v1196
        %vm1198 = vweird.f32 %v1101
        %vm1199 = vweird.f32 %v1193
        %vm1200 = vmor %vm1198, %vm1199
        %v1201 = vsel %vm1200, %v1193, %v1197
        %v1202 = vand.u32 2147483647, %v1101
        %vm1203 = vcmp.eq.f32.partialorder %v1202, 8.507059e+37
        %v1204 = vand.u32 %v1101, 2147483648
        %v1205 = vor.u32 1.1754944e-38, %v1204
        %v1206 = vsel %vm1203, %v1205, %v1201
        %v1207 = vmul.f32 1.0, %v1206
        %v1208 = vrcp.pop %v1102
        %v1209 = vmul.f32 %v1102, %v1208
        %v1210 = vsub.f32 1.0, %v1209
        %v1211 = vmul.f32 %v1208, %v1210
        %v1212 = vadd.f32 %v1208, %v1211
        %vm1213 = vweird.f32 %v1102
        %vm1214 = vweird.f32 %v1208
        %vm1215 = vmor %vm1213, %vm1214
        %v1216 = vsel %vm1215, %v1208, %v1212
        %v1217 = vand.u32 2147483647, %v1102
        %vm1218 = vcmp.eq.f32.partialorder %v1217, 8.507059e+37
        %v1219 = vand.u32 %v1102, 2147483648
        %v1220 = vor.u32 1.1754944e-38, %v1219
        %v1221 = vsel %vm1218, %v1220, %v1216
        %v1222 = vmul.f32 1.0, %v1221
        %v1223 = vpack.c.bf16 %v1117, %v1117
        %v1224 = vpack.c.bf16 %v1132, %v1132
        %v1225 = vpack.c.bf16 %v1147, %v1147
        %v1226 = vpack.c.bf16 %v1162, %v1162
        %v1227 = vpack.c.bf16 %v1177, %v1177
        %v1228 = vpack.c.bf16 %v1192, %v1192
        %v1229 = vpack.c.bf16 %v1207, %v1207
        %v1230 = vpack.c.bf16 %v1222, %v1222
        %1231 = vst [vmem:[#allocation5] sm:$0xf] %v1223
        %1232 = vst [vmem:[#allocation5 + $0x4] sm:$0xf] %v1224
        %1233 = vst [vmem:[#allocation5 + $0x8] sm:$0xf] %v1225
        %1234 = vst [vmem:[#allocation5 + $0xc] sm:$0xf] %v1226
        %1235 = vst [vmem:[#allocation5 + $0x10] sm:$0xf] %v1227
        %1236 = vst [vmem:[#allocation5 + $0x14] sm:$0xf] %v1228
        %1237 = vst [vmem:[#allocation5 + $0x18] sm:$0xf] %v1229
        %1238 = vst [vmem:[#allocation5 + $0x1c] sm:$0xf] %v1230
        %v1239 = vld [vmem:[%s8] sm:$0x1]
        %v1241 = vperm.slane %v1239, 0
        %v1243 = vld [vmem:[%s7] sm:$0x1]
        %v1244 = vmul.f32 %v1243, 1.442695
        %v1245 = vpow.pop %v1244
        %v1247 = vperm.slane %v1245, 0
        %v1249 = vld [vmem:[#allocation2] sm:$0xff]
        %s1250 = scalar_lea.vmem [#allocation2], 8
        %v1251 = vld [vmem:[%s1250] sm:$0xff]
        %s1252 = scalar_lea.vmem [#allocation2], 16
        %v1253 = vld [vmem:[%s1252] sm:$0xff]
        %v1254 = vld [vmem:[#allocation3] sm:$0xff]
        %v1255 = vld [vmem:[#allocation4] sm:$0xff]
        %v1256 = vadd.f32 %v1254, %v1241
        %v1257 = vsub.f32 %v1256, %v1253
        %v1258 = vand.u32 2147483647, %v1257
        %v1259 = vsub.f32 0.0, %v1258
        %v1260 = vmul.f32 %v1259, 1.442695
        %v1261 = vpow.pop %v1260
        %vm1262 = vcmp.ge.f32.partialorder %v1257, 0.0
        %v1263 = vsel %vm1262, %v1261, 1.0
        %v1264 = vsel %vm1262, 1.0, %v1261
        %v1265 = vmul.f32 %v1263, %v1249
        %v1266 = vmul.f32 %v1264, %v1255
        %v1267 = vadd.f32 %v1265, %v1266
        %v1268 = vmul.f32 %v1263, %v1251
        %v1269 = vadd.f32 %v1268, %v1264
        %v1270 = vrcp.pop %v1269
        %v1271 = vmul.f32 %v1267, %v1270
        %v1272 = vld [vmem:[#allocation5] sm:$0xf]
        %v1273 = vunpack.c.l.bf16 %v1272
        %v1274 = vmul.f32 %v1271, %v1273
        %v1275 = vpack.c.bf16 %v1274, %v1274
        %1276 = vst [vmem:[#allocation5] sm:$0xf] %v1275
        %v1277 = vsub.f32 %v1253, %v1247
        %v1278 = vsub.f32 %v1254, %v1277
        %v1279 = vand.u32 2147483647, %v1278
        %v1280 = vsub.f32 0.0, %v1279
        %v1281 = vmul.f32 %v1280, 1.442695
        %v1282 = vpow.pop %v1281
        %vm1283 = vcmp.ge.f32.partialorder %v1278, 0.0
        %v1284 = vsel %vm1283, %v1282, 1.0
        %v1285 = vsel %vm1283, 1.0, %v1282
        %v1286 = vmul.f32 %v1284, %v1249
        %v1287 = vmul.f32 %v1285, %v1255
        %v1288 = vadd.f32 %v1286, %v1287
        %v1289 = vmul.f32 %v1284, %v1251
        %v1290 = vadd.f32 %v1289, %v1285
        %v1291 = vmax.f32 %v1277, %v1254
        %s1292 = scalar_lea.vmem [#allocation3], 8
        %v1293 = vld [vmem:[%s1292] sm:$0xff]
        %s1294 = scalar_lea.vmem [#allocation4], 8
        %v1295 = vld [vmem:[%s1294] sm:$0xff]
        %v1296 = vadd.f32 %v1293, %v1241
        %v1297 = vsub.f32 %v1296, %v1291
        %v1298 = vand.u32 2147483647, %v1297
        %v1299 = vsub.f32 0.0, %v1298
        %v1300 = vmul.f32 %v1299, 1.442695
        %v1301 = vpow.pop %v1300
        %vm1302 = vcmp.ge.f32.partialorder %v1297, 0.0
        %v1303 = vsel %vm1302, %v1301, 1.0
        %v1304 = vsel %vm1302, 1.0, %v1301
        %v1305 = vmul.f32 %v1303, %v1288
        %v1306 = vmul.f32 %v1304, %v1295
        %v1307 = vadd.f32 %v1305, %v1306
        %v1308 = vmul.f32 %v1303, %v1290
        %v1309 = vadd.f32 %v1308, %v1304
        %v1310 = vrcp.pop %v1309
        %v1311 = vmul.f32 %v1307, %v1310
        %s1312 = scalar_lea.vmem [#allocation5], 4
        %v1313 = vld [vmem:[%s1312] sm:$0xf]
        %v1314 = vunpack.c.l.bf16 %v1313
        %v1315 = vmul.f32 %v1311, %v1314
        %v1316 = vpack.c.bf16 %v1315, %v1315
        %1317 = vst [vmem:[%s1312] sm:$0xf] %v1316
        %v1318 = vsub.f32 %v1291, %v1247
        %v1319 = vsub.f32 %v1293, %v1318
        %v1320 = vand.u32 2147483647, %v1319
        %v1321 = vsub.f32 0.0, %v1320
        %v1322 = vmul.f32 %v1321, 1.442695
        %v1323 = vpow.pop %v1322
        %vm1324 = vcmp.ge.f32.partialorder %v1319, 0.0
        %v1325 = vsel %vm1324, %v1323, 1.0
        %v1326 = vsel %vm1324, 1.0, %v1323
        %v1327 = vmul.f32 %v1325, %v1288
        %v1328 = vmul.f32 %v1326, %v1295
        %v1329 = vadd.f32 %v1327, %v1328
        %v1330 = vmul.f32 %v1325, %v1290
        %v1331 = vadd.f32 %v1330, %v1326
        %v1332 = vmax.f32 %v1318, %v1293
        %s1333 = scalar_lea.vmem [#allocation3], 16
        %v1334 = vld [vmem:[%s1333] sm:$0xff]
        %s1335 = scalar_lea.vmem [#allocation4], 16
        %v1336 = vld [vmem:[%s1335] sm:$0xff]
        %v1337 = vadd.f32 %v1334, %v1241
        %v1338 = vsub.f32 %v1337, %v1332
        %v1339 = vand.u32 2147483647, %v1338
        %v1340 = vsub.f32 0.0, %v1339
        %v1341 = vmul.f32 %v1340, 1.442695
        %v1342 = vpow.pop %v1341
        %vm1343 = vcmp.ge.f32.partialorder %v1338, 0.0
        %v1344 = vsel %vm1343, %v1342, 1.0
        %v1345 = vsel %vm1343, 1.0, %v1342
        %v1346 = vmul.f32 %v1344, %v1329
        %v1347 = vmul.f32 %v1345, %v1336
        %v1348 = vadd.f32 %v1346, %v1347
        %v1349 = vmul.f32 %v1344, %v1331
        %v1350 = vadd.f32 %v1349, %v1345
        %v1351 = vrcp.pop %v1350
        %v1352 = vmul.f32 %v1348, %v1351
        %s1353 = scalar_lea.vmem [#allocation5], 8
        %v1354 = vld [vmem:[%s1353] sm:$0xf]
        %v1355 = vunpack.c.l.bf16 %v1354
        %v1356 = vmul.f32 %v1352, %v1355
        %v1357 = vpack.c.bf16 %v1356, %v1356
        %1358 = vst [vmem:[%s1353] sm:$0xf] %v1357
        %v1359 = vsub.f32 %v1332, %v1247
        %v1360 = vsub.f32 %v1334, %v1359
        %v1361 = vand.u32 2147483647, %v1360
        %v1362 = vsub.f32 0.0, %v1361
        %v1363 = vmul.f32 %v1362, 1.442695
        %v1364 = vpow.pop %v1363
        %vm1365 = vcmp.ge.f32.partialorder %v1360, 0.0
        %v1366 = vsel %vm1365, %v1364, 1.0
        %v1367 = vsel %vm1365, 1.0, %v1364
        %v1368 = vmul.f32 %v1366, %v1329
        %v1369 = vmul.f32 %v1367, %v1336
        %v1370 = vadd.f32 %v1368, %v1369
        %v1371 = vmul.f32 %v1366, %v1331
        %v1372 = vadd.f32 %v1371, %v1367
        %v1373 = vmax.f32 %v1359, %v1334
        %s1374 = scalar_lea.vmem [#allocation3], 24
        %v1375 = vld [vmem:[%s1374] sm:$0xff]
        %s1376 = scalar_lea.vmem [#allocation4], 24
        %v1377 = vld [vmem:[%s1376] sm:$0xff]
        %v1378 = vadd.f32 %v1375, %v1241
        %v1379 = vsub.f32 %v1378, %v1373
        %v1380 = vand.u32 2147483647, %v1379
        %v1381 = vsub.f32 0.0, %v1380
        %v1382 = vmul.f32 %v1381, 1.442695
        %v1383 = vpow.pop %v1382
        %vm1384 = vcmp.ge.f32.partialorder %v1379, 0.0
        %v1385 = vsel %vm1384, %v1383, 1.0
        %v1386 = vsel %vm1384, 1.0, %v1383
        %v1387 = vmul.f32 %v1385, %v1370
        %v1388 = vmul.f32 %v1386, %v1377
        %v1389 = vadd.f32 %v1387, %v1388
        %v1390 = vmul.f32 %v1385, %v1372
        %v1391 = vadd.f32 %v1390, %v1386
        %v1392 = vrcp.pop %v1391
        %v1393 = vmul.f32 %v1389, %v1392
        %s1394 = scalar_lea.vmem [#allocation5], 12
        %v1395 = vld [vmem:[%s1394] sm:$0xf]
        %v1396 = vunpack.c.l.bf16 %v1395
        %v1397 = vmul.f32 %v1393, %v1396
        %v1398 = vpack.c.bf16 %v1397, %v1397
        %1399 = vst [vmem:[%s1394] sm:$0xf] %v1398
        %v1400 = vsub.f32 %v1373, %v1247
        %v1401 = vsub.f32 %v1375, %v1400
        %v1402 = vand.u32 2147483647, %v1401
        %v1403 = vsub.f32 0.0, %v1402
        %v1404 = vmul.f32 %v1403, 1.442695
        %v1405 = vpow.pop %v1404
        %vm1406 = vcmp.ge.f32.partialorder %v1401, 0.0
        %v1407 = vsel %vm1406, %v1405, 1.0
        %v1408 = vsel %vm1406, 1.0, %v1405
        %v1409 = vmul.f32 %v1407, %v1370
        %v1410 = vmul.f32 %v1408, %v1377
        %v1411 = vadd.f32 %v1409, %v1410
        %v1412 = vmul.f32 %v1407, %v1372
        %v1413 = vadd.f32 %v1412, %v1408
        %v1414 = vmax.f32 %v1400, %v1375
        %s1415 = scalar_lea.vmem [#allocation3], 32
        %v1416 = vld [vmem:[%s1415] sm:$0xff]
        %s1417 = scalar_lea.vmem [#allocation4], 32
        %v1418 = vld [vmem:[%s1417] sm:$0xff]
        %v1419 = vadd.f32 %v1416, %v1241
        %v1420 = vsub.f32 %v1419, %v1414
        %v1421 = vand.u32 2147483647, %v1420
        %v1422 = vsub.f32 0.0, %v1421
        %v1423 = vmul.f32 %v1422, 1.442695
        %v1424 = vpow.pop %v1423
        %vm1425 = vcmp.ge.f32.partialorder %v1420, 0.0
        %v1426 = vsel %vm1425, %v1424, 1.0
        %v1427 = vsel %vm1425, 1.0, %v1424
        %v1428 = vmul.f32 %v1426, %v1411
        %v1429 = vmul.f32 %v1427, %v1418
        %v1430 = vadd.f32 %v1428, %v1429
        %v1431 = vmul.f32 %v1426, %v1413
        %v1432 = vadd.f32 %v1431, %v1427
        %v1433 = vrcp.pop %v1432
        %v1434 = vmul.f32 %v1430, %v1433
        %s1435 = scalar_lea.vmem [#allocation5], 16
        %v1436 = vld [vmem:[%s1435] sm:$0xf]
        %v1437 = vunpack.c.l.bf16 %v1436
        %v1438 = vmul.f32 %v1434, %v1437
        %v1439 = vpack.c.bf16 %v1438, %v1438
        %1440 = vst [vmem:[%s1435] sm:$0xf] %v1439
        %v1441 = vsub.f32 %v1414, %v1247
        %v1442 = vsub.f32 %v1416, %v1441
        %v1443 = vand.u32 2147483647, %v1442
        %v1444 = vsub.f32 0.0, %v1443
        %v1445 = vmul.f32 %v1444, 1.442695
        %v1446 = vpow.pop %v1445
        %vm1447 = vcmp.ge.f32.partialorder %v1442, 0.0
        %v1448 = vsel %vm1447, %v1446, 1.0
        %v1449 = vsel %vm1447, 1.0, %v1446
        %v1450 = vmul.f32 %v1448, %v1411
        %v1451 = vmul.f32 %v1449, %v1418
        %v1452 = vadd.f32 %v1450, %v1451
        %v1453 = vmul.f32 %v1448, %v1413
        %v1454 = vadd.f32 %v1453, %v1449
        %v1455 = vmax.f32 %v1441, %v1416
        %s1456 = scalar_lea.vmem [#allocation3], 40
        %v1457 = vld [vmem:[%s1456] sm:$0xff]
        %s1458 = scalar_lea.vmem [#allocation4], 40
        %v1459 = vld [vmem:[%s1458] sm:$0xff]
        %v1460 = vadd.f32 %v1457, %v1241
        %v1461 = vsub.f32 %v1460, %v1455
        %v1462 = vand.u32 2147483647, %v1461
        %v1463 = vsub.f32 0.0, %v1462
        %v1464 = vmul.f32 %v1463, 1.442695
        %v1465 = vpow.pop %v1464
        %vm1466 = vcmp.ge.f32.partialorder %v1461, 0.0
        %v1467 = vsel %vm1466, %v1465, 1.0
        %v1468 = vsel %vm1466, 1.0, %v1465
        %v1469 = vmul.f32 %v1467, %v1452
        %v1470 = vmul.f32 %v1468, %v1459
        %v1471 = vadd.f32 %v1469, %v1470
        %v1472 = vmul.f32 %v1467, %v1454
        %v1473 = vadd.f32 %v1472, %v1468
        %v1474 = vrcp.pop %v1473
        %v1475 = vmul.f32 %v1471, %v1474
        %s1476 = scalar_lea.vmem [#allocation5], 20
        %v1477 = vld [vmem:[%s1476] sm:$0xf]
        %v1478 = vunpack.c.l.bf16 %v1477
        %v1479 = vmul.f32 %v1475, %v1478
        %v1480 = vpack.c.bf16 %v1479, %v1479
        %1481 = vst [vmem:[%s1476] sm:$0xf] %v1480
        %v1482 = vsub.f32 %v1455, %v1247
        %v1483 = vsub.f32 %v1457, %v1482
        %v1484 = vand.u32 2147483647, %v1483
        %v1485 = vsub.f32 0.0, %v1484
        %v1486 = vmul.f32 %v1485, 1.442695
        %v1487 = vpow.pop %v1486
        %vm1488 = vcmp.ge.f32.partialorder %v1483, 0.0
        %v1489 = vsel %vm1488, %v1487, 1.0
        %v1490 = vsel %vm1488, 1.0, %v1487
        %v1491 = vmul.f32 %v1489, %v1452
        %v1492 = vmul.f32 %v1490, %v1459
        %v1493 = vadd.f32 %v1491, %v1492
        %v1494 = vmul.f32 %v1489, %v1454
        %v1495 = vadd.f32 %v1494, %v1490
        %v1496 = vmax.f32 %v1482, %v1457
        %s1497 = scalar_lea.vmem [#allocation3], 48
        %v1498 = vld [vmem:[%s1497] sm:$0xff]
        %s1499 = scalar_lea.vmem [#allocation4], 48
        %v1500 = vld [vmem:[%s1499] sm:$0xff]
        %v1501 = vadd.f32 %v1498, %v1241
        %v1502 = vsub.f32 %v1501, %v1496
        %v1503 = vand.u32 2147483647, %v1502
        %v1504 = vsub.f32 0.0, %v1503
        %v1505 = vmul.f32 %v1504, 1.442695
        %v1506 = vpow.pop %v1505
        %vm1507 = vcmp.ge.f32.partialorder %v1502, 0.0
        %v1508 = vsel %vm1507, %v1506, 1.0
        %v1509 = vsel %vm1507, 1.0, %v1506
        %v1510 = vmul.f32 %v1508, %v1493
        %v1511 = vmul.f32 %v1509, %v1500
        %v1512 = vadd.f32 %v1510, %v1511
        %v1513 = vmul.f32 %v1508, %v1495
        %v1514 = vadd.f32 %v1513, %v1509
        %v1515 = vrcp.pop %v1514
        %v1516 = vmul.f32 %v1512, %v1515
        %s1517 = scalar_lea.vmem [#allocation5], 24
        %v1518 = vld [vmem:[%s1517] sm:$0xf]
        %v1519 = vunpack.c.l.bf16 %v1518
        %v1520 = vmul.f32 %v1516, %v1519
        %v1521 = vpack.c.bf16 %v1520, %v1520
        %1522 = vst [vmem:[%s1517] sm:$0xf] %v1521
        %v1523 = vsub.f32 %v1496, %v1247
        %v1524 = vsub.f32 %v1498, %v1523
        %v1525 = vand.u32 2147483647, %v1524
        %v1526 = vsub.f32 0.0, %v1525
        %v1527 = vmul.f32 %v1526, 1.442695
        %v1528 = vpow.pop %v1527
        %vm1529 = vcmp.ge.f32.partialorder %v1524, 0.0
        %v1530 = vsel %vm1529, %v1528, 1.0
        %v1531 = vsel %vm1529, 1.0, %v1528
        %v1532 = vmul.f32 %v1530, %v1493
        %v1533 = vmul.f32 %v1531, %v1500
        %v1534 = vadd.f32 %v1532, %v1533
        %v1535 = vmul.f32 %v1530, %v1495
        %v1536 = vadd.f32 %v1535, %v1531
        %v1537 = vmax.f32 %v1523, %v1498
        %s1538 = scalar_lea.vmem [#allocation3], 56
        %v1539 = vld [vmem:[%s1538] sm:$0xff]
        %s1540 = scalar_lea.vmem [#allocation4], 56
        %v1541 = vld [vmem:[%s1540] sm:$0xff]
        %v1542 = vadd.f32 %v1539, %v1241
        %v1543 = vsub.f32 %v1542, %v1537
        %v1544 = vand.u32 2147483647, %v1543
        %v1545 = vsub.f32 0.0, %v1544
        %v1546 = vmul.f32 %v1545, 1.442695
        %v1547 = vpow.pop %v1546
        %vm1548 = vcmp.ge.f32.partialorder %v1543, 0.0
        %v1549 = vsel %vm1548, %v1547, 1.0
        %v1550 = vsel %vm1548, 1.0, %v1547
        %v1551 = vmul.f32 %v1549, %v1534
        %v1552 = vmul.f32 %v1550, %v1541
        %v1553 = vadd.f32 %v1551, %v1552
        %v1554 = vmul.f32 %v1549, %v1536
        %v1555 = vadd.f32 %v1554, %v1550
        %v1556 = vrcp.pop %v1555
        %v1557 = vmul.f32 %v1553, %v1556
        %s1558 = scalar_lea.vmem [#allocation5], 28
        %v1559 = vld [vmem:[%s1558] sm:$0xf]
        %v1560 = vunpack.c.l.bf16 %v1559
        %v1561 = vmul.f32 %v1557, %v1560
        %v1562 = vpack.c.bf16 %v1561, %v1561
        %1563 = vst [vmem:[%s1558] sm:$0xf] %v1562
        %v1564 = vsub.f32 %v1537, %v1247
        %v1565 = vsub.f32 %v1539, %v1564
        %v1566 = vand.u32 2147483647, %v1565
        %v1567 = vsub.f32 0.0, %v1566
        %v1568 = vmul.f32 %v1567, 1.442695
        %v1569 = vpow.pop %v1568
        %vm1570 = vcmp.ge.f32.partialorder %v1565, 0.0
        %v1571 = vsel %vm1570, %v1569, 1.0
        %v1572 = vsel %vm1570, 1.0, %v1569
        %v1573 = vmul.f32 %v1571, %v1534
        %v1574 = vmul.f32 %v1572, %v1541
        %v1575 = vadd.f32 %v1573, %v1574
        %v1576 = vmul.f32 %v1571, %v1536
        %v1577 = vadd.f32 %v1576, %v1572
        %v1578 = vmax.f32 %v1564, %v1539
        %v1579 = vld [vmem:[#allocation5] sm:$0xf]
        %v1580 = vld [vmem:[#allocation5 + $0x4] sm:$0xf]
        %v1581 = vld [vmem:[#allocation5 + $0x8] sm:$0xf]
        %v1582 = vld [vmem:[#allocation5 + $0xc] sm:$0xf]
        %v1583 = vld [vmem:[#allocation5 + $0x10] sm:$0xf]
        %v1584 = vld [vmem:[#allocation5 + $0x14] sm:$0xf]
        %v1585 = vld [vmem:[#allocation5 + $0x18] sm:$0xf]
        %v1586 = vld [vmem:[#allocation5 + $0x1c] sm:$0xf]
        %v1587 = vld [vmem:[#allocation17] sm:$0xf]
        %v1588 = vld [vmem:[#allocation17 + $0x4] sm:$0xf]
        %v1589 = vld [vmem:[#allocation17 + $0x8] sm:$0xf]
        %v1590 = vld [vmem:[#allocation17 + $0xc] sm:$0xf]
        %v1591 = vld [vmem:[#allocation17 + $0x10] sm:$0xf]
        %v1592 = vld [vmem:[#allocation17 + $0x14] sm:$0xf]
        %v1593 = vld [vmem:[#allocation17 + $0x18] sm:$0xf]
        %v1594 = vld [vmem:[#allocation17 + $0x1c] sm:$0xf]
        %v1595 = vld [vmem:[#allocation17 + $0x20] sm:$0xf]
        %v1596 = vld [vmem:[#allocation17 + $0x24] sm:$0xf]
        %v1597 = vld [vmem:[#allocation17 + $0x28] sm:$0xf]
        %v1598 = vld [vmem:[#allocation17 + $0x2c] sm:$0xf]
        %v1599 = vld [vmem:[#allocation17 + $0x30] sm:$0xf]
        %v1600 = vld [vmem:[#allocation17 + $0x34] sm:$0xf]
        %v1601 = vld [vmem:[#allocation17 + $0x38] sm:$0xf]
        %v1602 = vld [vmem:[#allocation17 + $0x3c] sm:$0xf]
        %v1611 = vunpack.c.l.b16 %v1579
        %v1612 = vunpack.c.l.b16 %v1580
        %v1613 = vunpack.c.l.b16 %v1581
        %v1614 = vunpack.c.l.b16 %v1582
        %v1615 = vunpack.c.l.b16 %v1583
        %v1616 = vunpack.c.l.b16 %v1584
        %v1617 = vunpack.c.l.b16 %v1585
        %v1618 = vunpack.c.l.b16 %v1586
        %v1619 = vpack.c.b16 %v1612, %v1611
        %v1620 = vpack.c.b16 %v1614, %v1613
        %v1621 = vpack.c.b16 %v1616, %v1615
        %v1622 = vpack.c.b16 %v1618, %v1617
        %v1643 = vunpack.c.l.b16 %v1587
        %v1644 = vunpack.c.l.b16 %v1588
        %v1645 = vunpack.c.l.b16 %v1589
        %v1646 = vunpack.c.l.b16 %v1590
        %v1647 = vunpack.c.l.b16 %v1591
        %v1648 = vunpack.c.l.b16 %v1592
        %v1649 = vunpack.c.l.b16 %v1593
        %v1650 = vunpack.c.l.b16 %v1594
        %v1651 = vunpack.c.l.b16 %v1595
        %v1652 = vunpack.c.l.b16 %v1596
        %v1653 = vunpack.c.l.b16 %v1597
        %v1654 = vunpack.c.l.b16 %v1598
        %v1655 = vunpack.c.l.b16 %v1599
        %v1656 = vunpack.c.l.b16 %v1600
        %v1657 = vunpack.c.l.b16 %v1601
        %v1658 = vunpack.c.l.b16 %v1602
        %v1659 = vpack.c.b16 %v1644, %v1643
        %v1660 = vpack.c.b16 %v1646, %v1645
        %v1661 = vpack.c.b16 %v1648, %v1647
        %v1662 = vpack.c.b16 %v1650, %v1649
        %v1663 = vpack.c.b16 %v1652, %v1651
        %v1664 = vpack.c.b16 %v1654, %v1653
        %v1665 = vpack.c.b16 %v1656, %v1655
        %v1666 = vpack.c.b16 %v1658, %v1657
        %1675 = vmatpush.bf16.msra.mxu0 %v1666
        %1676 = vmatpush.bf16.msra.mxu0 %v1665
        %1677 = vmatpush.bf16.msra.mxu0 %v1664
        %1678 = vmatpush.bf16.msra.mxu0 %v1663
        %1679 = vmatpush.bf16.msra.mxu0 %v1662
        %1680 = vmatpush.bf16.msra.mxu0 %v1661
        %1681 = vmatpush.bf16.msra.mxu0 %v1660
        %1682 = vmatpush.bf16.msra.mxu0 %v1659
        %1683 = vmatmul.bf16.gmra.mxu0 %v1619
        %v1684 = vpop.f32.mrf.mxu0
        %v1685 = vadd.f32 0.0, %v1684
        %v1686 = vpop.f32.mrf.mxu0
        %v1687 = vadd.f32 0.0, %v1686
        %1688 = vmatmul.bf16.gmra.mxu0 %v1620
        %v1689 = vpop.f32.mrf.mxu0
        %v1690 = vadd.f32 0.0, %v1689
        %v1691 = vpop.f32.mrf.mxu0
        %v1692 = vadd.f32 0.0, %v1691
        %1693 = vmatmul.bf16.gmra.mxu0 %v1621
        %v1694 = vpop.f32.mrf.mxu0
        %v1695 = vadd.f32 0.0, %v1694
        %v1696 = vpop.f32.mrf.mxu0
        %v1697 = vadd.f32 0.0, %v1696
        %1698 = vmatmul.bf16.gmra.mxu0 %v1622
        %v1699 = vpop.f32.mrf.mxu0
        %v1700 = vadd.f32 0.0, %v1699
        %v1701 = vpop.f32.mrf.mxu0
        %v1702 = vadd.f32 0.0, %v1701
        %1703 = vdwg.mxu0
        %1704 = vst [vmem:[%s652] sm:$0xff] %v1685
        %1705 = vst [vmem:[%s652 + $0x8] sm:$0xff] %v1687
        %1706 = vst [vmem:[%s652 + $0x10] sm:$0xff] %v1690
        %1707 = vst [vmem:[%s652 + $0x18] sm:$0xff] %v1692
        %1708 = vst [vmem:[%s652 + $0x20] sm:$0xff] %v1695
        %1709 = vst [vmem:[%s652 + $0x28] sm:$0xff] %v1697
        %1710 = vst [vmem:[%s652 + $0x30] sm:$0xff] %v1700
        %1711 = vst [vmem:[%s652 + $0x38] sm:$0xff] %v1702
        %1712 = vst [vmem:[#allocation2] sm:$0xff] %v1575
        %1713 = vst [vmem:[%s1250] sm:$0xff] %v1577
        %1714 = vst [vmem:[%s1252] sm:$0xff] %v1578
        %1715 = vst [vmem:[%s694] sm:$0xff] %v693
        %p1716 = scmp.eq.s32.totalorder %s45, 1
        // Predicated region
        $region101: #{tpu_custom_call.1} parent=67 // pred_check
          %p1717 = pneg %p1716
        $region102: #{tpu_custom_call.1} parent=67 // pred_check_branch
          %1719 = sbr.rel (%p1717) target = $region104
        $region103: #{tpu_custom_call.1} parent=67 // pred_region
          %1720 = vst [vmem:[%s659] sm:$0xff] %v693
          %1721 = vst [vmem:[%s666] sm:$0xff] %v1575
          %s1722 = scalar_lea.vmem %s666, 8 [#allocation21]
          %1723 = vst [vmem:[%s1722] sm:$0xff] %v1577
          %s1724 = scalar_lea.vmem %s666, 16 [#allocation21]
          %1725 = vst [vmem:[%s1724] sm:$0xff] %v1578
        $region104: #{tpu_custom_call.1} parent=67 // pred_fallthru
          _
        %s1726 = sand.u32 %s331, 1
        %s1727 = scalar_lea.sflag [#allocation8], %s1726
        %s1728 = sand.u32 %s331, 1
        %s1729 = smul.addr %s1728, 64
        %s1730 = scalar_lea.vmem [#allocation18], %s1729
        %s1731 = sand.u32 %s40, 1
        %s1732 = scalar_lea.sflag [#allocation20], %s1731
        %s1733 = sand.u32 %s357, 1
        %s1734 = smul.addr %s1733, 8
        %s1735 = scalar_lea.vmem [#allocation19], %s1734
        %s1736 = sand.u32 %s40, 1
        %s1737 = scalar_lea.sflag [#allocation20], %s1736
        %s1738 = sand.u32 %s383, 1
        %s1739 = smul.addr %s1738, 24
        %s1740 = scalar_lea.vmem [#allocation21], %s1739
        // Predicated region
        $region105: #{tpu_custom_call.1} parent=67 // pred_check
          %p1741 = pneg %p341
        $region106: #{tpu_custom_call.1} parent=67 // pred_check_branch
          %1743 = sbr.rel (%p1741) target = $region108
        $region107: #{tpu_custom_call.1} parent=67 // pred_region
          %s1744 = smul.u32 8, %s45
          %1746 = vsyncadd %s1727, 0
          %s1747 = smul.addr %s1744, 2
          %s1748 = sadd.s32 %s44, %s1747
          %s1749 = smul.addr %s1748, 8
          %s1750 = scalar_lea.hbm %s12, %s1749
          %s1751 = sshll.u32 %s1730, 4
          %s1752 = int_to_ptr.vmem [resolvable:$true] %s1751
          %s1753 = sshll.u32 %s1750, 4
          %s1754 = int_to_ptr.hbm [resolvable:$true] %s1753
          %1759 = dma.vmem_to_hbm [thread:$0]  %s1752, 1024, %s1754, %s1727, 128, 256, 8
        $region108: #{tpu_custom_call.1} parent=67 // pred_fallthru
          _
        // Predicated region
        $region109: #{tpu_custom_call.1} parent=67 // pred_check
          %p1760 = pneg %p367
        $region110: #{tpu_custom_call.1} parent=67 // pred_check_branch
          %1762 = sbr.rel (%p1760) target = $region112
        $region111: #{tpu_custom_call.1} parent=67 // pred_region
          %1764 = vsyncadd %s1732, 0
          %s1765 = smul.addr %s44, 8
          %s1766 = scalar_lea.hbm %s13, %s1765
          %s1768 = sshll.u32 %s1735, 4
          %s1769 = int_to_ptr.vmem [resolvable:$true] %s1768
          %s1770 = sshll.u32 %s1766, 4
          %s1771 = int_to_ptr.hbm [resolvable:$true] %s1770
          %1773 = dma.vmem_to_hbm [thread:$0]  %s1769, 128, %s1771, %s1732
        $region112: #{tpu_custom_call.1} parent=67 // pred_fallthru
          _
        // Predicated region
        $region113: #{tpu_custom_call.1} parent=67 // pred_check
          %p1774 = pneg %p393
        $region114: #{tpu_custom_call.1} parent=67 // pred_check_branch
          %1776 = sbr.rel (%p1774) target = $region116
        $region115: #{tpu_custom_call.1} parent=67 // pred_region
          %1778 = vsyncadd %s1737, 0
          %s1779 = smul.addr %s44, 8
          %s1780 = scalar_lea.hbm %s14, %s1779
          %s1781 = sshll.u32 %s1740, 4
          %s1782 = int_to_ptr.vmem [resolvable:$true] %s1781
          %s1783 = sshll.u32 %s1780, 4
          %s1784 = int_to_ptr.hbm [resolvable:$true] %s1783
          %1789 = dma.vmem_to_hbm [thread:$0]  %s1782, 384, %s1784, %s1737, 128, 256, 8
        $region116: #{tpu_custom_call.1} parent=67 // pred_fallthru
          _
      $region68: #{tpu_custom_call.1} parent=5 // pred_fallthru
        _
      %p1790 = scmp.le.s32.totalorder 2, %s35
      // Predicated region
      $region117: #{tpu_custom_call.1} parent=5 // pred_check
        %p1791 = pneg %p1790
      $region118: #{tpu_custom_call.1} parent=5 // pred_check_branch
        %1793 = sbr.rel (%p1791) target = $region120
      $region119: #{tpu_custom_call.1} parent=5 // pred_region
        %s1794 = ssub.s32 %s35, 2
        // Predicated region
        $region121: #{tpu_custom_call.1} parent=119 // pred_check
          %p1795 = pneg %p347
        $region122: #{tpu_custom_call.1} parent=119 // pred_check_branch
          %1797 = sbr.rel (%p1795) target = $region124
        $region123: #{tpu_custom_call.1} parent=119 // pred_region
          %s1798 = sand.u32 %s332, 1
          %s1799 = scalar_lea.sflag [#allocation8], %s1798
          %s1800 = sand.u32 %s332, 1
          %s1801 = smul.addr %s1800, 64
          %s1802 = scalar_lea.vmem [#allocation18], %s1801
          %1804 = dma.done %s1799, 1024
        $region124: #{tpu_custom_call.1} parent=119 // pred_fallthru
          _
        // Predicated region
        $region125: #{tpu_custom_call.1} parent=119 // pred_check
          %p1805 = pneg %p373
        $region126: #{tpu_custom_call.1} parent=119 // pred_check_branch
          %1807 = sbr.rel (%p1805) target = $region128
        $region127: #{tpu_custom_call.1} parent=119 // pred_region
          %s1808 = sand.u32 %s41, 1
          %s1809 = scalar_lea.sflag [#allocation20], %s1808
          %s1810 = sand.u32 %s358, 1
          %s1811 = smul.addr %s1810, 8
          %s1812 = scalar_lea.vmem [#allocation19], %s1811
          %1814 = dma.done %s1809, 128
        $region128: #{tpu_custom_call.1} parent=119 // pred_fallthru
          _
        // Predicated region
        $region129: #{tpu_custom_call.1} parent=119 // pred_check
          %p1815 = pneg %p399
        $region130: #{tpu_custom_call.1} parent=119 // pred_check_branch
          %1817 = sbr.rel (%p1815) target = $region132
        $region131: #{tpu_custom_call.1} parent=119 // pred_region
          %s1818 = sand.u32 %s41, 1
          %s1819 = scalar_lea.sflag [#allocation20], %s1818
          %s1820 = sand.u32 %s384, 1
          %s1821 = smul.addr %s1820, 24
          %s1822 = scalar_lea.vmem [#allocation21], %s1821
          %1824 = dma.done %s1819, 384
        $region132: #{tpu_custom_call.1} parent=119 // pred_fallthru
          _
      $region120: #{tpu_custom_call.1} parent=5 // pred_fallthru
        _
    $region6: #{tpu_custom_call.1} parent=1 // loop_footer
      %s39 = sadd.s32 1, %s35
    $region7: #{tpu_custom_call.1} parent=1 // loop_footer_branch
      %34 = sbr.rel target = $region3
    $region8: #{tpu_custom_call.1} parent=1 // loop_exit
      _
    %1825 = vsyncpa [#allocation7], 1
    %s1826 = scalar_lea.sflag [#allocation7], 1
    %1827 = vsyncpa %s1826, 1
    %1828 = vsyncpa [#allocation10], 1
    %s1829 = scalar_lea.sflag [#allocation10], 1
    %1830 = vsyncpa %s1829, 1
    %1831 = vsyncpa [#allocation13], 1
    %1832 = vsyncpa [#allocation16], 1
    %1833 = vsyncpa [#allocation8], 1
    %s1834 = scalar_lea.sflag [#allocation8], 1
    %1835 = vsyncpa %s1834, 1
    %1836 = vsyncpa [#allocation20], 1
    %s1837 = scalar_lea.sflag [#allocation20], 1
    %1838 = vsyncpa %s1837, 1

</llo_original>
